<compile_context>
chip_gen: v5e
topology: v5e:2x2
jax: 0.10.0
libtpu: 0.0.40
codegen_flags: <defaults>
</compile_context>

<pallas_src>
import functools

import jax
import jax.numpy as jnp
from jax.experimental import pallas as pl
from jax.experimental.pallas import tpu as pltpu


def _ceil_to(x, m):
    return ((x + m - 1) // m) * m


def _lstm_kernel(x_ref, w_ref, b_ref, w_lin_ref, b_lin_ref, out_ref,
                 h_sc, c_sc, y_sc, *, seq_len, total_steps, hidden_pad, feed_back):
    """Entire LSTM+fc recurrence in one kernel invocation.

    Gate order follows PyTorch nn.LSTM: [i, f, g, o]; each gate occupies its own
    128-lane-aligned block of the fused weight / z tensor.
    """
    Hp = hidden_pad

    h_sc[...] = jnp.zeros_like(h_sc)
    c_sc[...] = jnp.zeros_like(c_sc)
    y_sc[...] = jnp.zeros_like(y_sc)

    # Loop-invariant weights: load once, outside the unrolled loop.
    w = w_ref[...]            # (in_pad + Hp, 4*Hp)   fused [W_ih ; W_hh]
    b = b_ref[...]            # (1, 4*Hp)
    w_lin = w_lin_ref[...]    # (Hp, out_pad)
    b_lin = b_lin_ref[...]    # (1, out_pad)

    @pl.loop(0, total_steps, unroll=True)
    def _(t):
        h = h_sc[...]
        c = c_sc[...]

        x_t = x_ref[t]                               # (Bp, in_pad)
        if feed_back:
            # "future" steps feed the previous fc output back as the input
            x_t = jnp.where(t < seq_len, x_t, y_sc[...])

        # single fused MXU issue per step
        xh = jnp.concatenate([x_t, h], axis=-1)      # (Bp, in_pad + Hp)
        z = jnp.dot(xh, w, preferred_element_type=jnp.float32) + b

        i_g = jax.nn.sigmoid(z[:, 0 * Hp:1 * Hp])
        f_g = jax.nn.sigmoid(z[:, 1 * Hp:2 * Hp])
        g_g = jnp.tanh(z[:, 2 * Hp:3 * Hp])
        o_g = jax.nn.sigmoid(z[:, 3 * Hp:4 * Hp])

        c_new = f_g * c + i_g * g_g
        h_new = o_g * jnp.tanh(c_new)

        y = jnp.dot(h_new, w_lin, preferred_element_type=jnp.float32) + b_lin

        h_sc[...] = h_new
        c_sc[...] = c_new
        y_sc[...] = y
        out_ref[t] = y.astype(out_ref.dtype)         # full (Bp, 128) tile, unmasked store


def rnn_forward(x, params, future=0):
    """Pallas implementation of RNN.forward.

    x: (batch, seq, input_size) float32
    returns: (batch, seq + future, output_size) float32
    """
    w_ih, w_hh, b_ih, b_hh, w_lin, b_lin = (params[k] for k in
                                            ("w_ih", "w_hh", "b_ih", "b_hh", "w_lin", "b_lin"))
    batch, seq, input_size = x.shape
    hidden = w_hh.shape[1]
    output_size = w_lin.shape[0]
    total = seq + future
    if future > 0 and output_size != input_size:
        raise ValueError("feeding outputs back requires output_size == input_size")

    f32 = jnp.float32
    H = hidden
    Bp = _ceil_to(max(batch, 8), 8)            # full-sublane batch tile
    Hp = _ceil_to(hidden, 128)                 # gate slices on lane-tile boundaries
    Ip = _ceil_to(input_size, 128)
    Op = _ceil_to(output_size, 128)
    if future > 0:
        Ip = Op = max(Ip, Op)                  # padded y must be reusable as padded x

    # --- gate-block padded weights (gate k -> columns [k*Hp, k*Hp+H)) ----------
    w_ih_t = w_ih.T.astype(f32)                # (input, 4H)
    w_hh_t = w_hh.T.astype(f32)                # (hidden, 4H)
    bias = (b_ih + b_hh).astype(f32)           # (4H,)

    w_ih_p = jnp.zeros((Ip, 4 * Hp), f32)
    w_hh_p = jnp.zeros((Hp, 4 * Hp), f32)
    b_p = jnp.zeros((1, 4 * Hp), f32)
    for k in range(4):
        w_ih_p = w_ih_p.at[:input_size, k * Hp:k * Hp + H].set(w_ih_t[:, k * H:(k + 1) * H])
        w_hh_p = w_hh_p.at[:hidden, k * Hp:k * Hp + H].set(w_hh_t[:, k * H:(k + 1) * H])
        b_p = b_p.at[0, k * Hp:k * Hp + H].set(bias[k * H:(k + 1) * H])
    w_fused = jnp.concatenate([w_ih_p, w_hh_p], axis=0)          # (Ip + Hp, 4*Hp)

    w_lin_p = jnp.zeros((Hp, Op), f32).at[:hidden, :output_size].set(w_lin.T.astype(f32))
    b_lin_p = jnp.zeros((1, Op), f32).at[0, :output_size].set(b_lin.astype(f32))

    # --- time-major, batch/lane padded input (future slots are zeros) ----------
    x_tm = jnp.zeros((total, Bp, Ip), f32)
    x_tm = x_tm.at[:seq, :batch, :input_size].set(jnp.transpose(x, (1, 0, 2)).astype(f32))

    kernel = functools.partial(_lstm_kernel, seq_len=seq, total_steps=total,
                               hidden_pad=Hp, feed_back=(future > 0))

    # TODO(synk): if batch is ever scaled up, add a leading "parallel" grid axis
    # over batch tiles so v7x's second TensorCore gets used.
    out_tm = pl.pallas_call(
        kernel,
        out_shape=jax.ShapeDtypeStruct((total, Bp, Op), f32),
        grid_spec=pltpu.PrefetchScalarGridSpec(
            num_scalar_prefetch=0,
            grid=(1,),                         # whole recurrence in one grid point
            in_specs=[
                pl.BlockSpec((total, Bp, Ip), lambda i: (0, 0, 0)),
                pl.BlockSpec((Ip + Hp, 4 * Hp), lambda i: (0, 0)),
                pl.BlockSpec((1, 4 * Hp), lambda i: (0, 0)),
                pl.BlockSpec((Hp, Op), lambda i: (0, 0)),
                pl.BlockSpec((1, Op), lambda i: (0, 0)),
            ],
            out_specs=pl.BlockSpec((total, Bp, Op), lambda i: (0, 0, 0)),
            scratch_shapes=[
                pltpu.VMEM((Bp, Hp), f32),     # h_t
                pltpu.VMEM((Bp, Hp), f32),     # c_t
                pltpu.VMEM((Bp, Op), f32),     # last fc output (feedback)
            ],
        ),
        compiler_params=pltpu.CompilerParams(
            dimension_semantics=("arbitrary",)),
    )(x_tm, w_fused, b_p, w_lin_p, b_lin_p)

    return jnp.transpose(out_tm, (1, 0, 2))[:batch, :, :output_size]


def rnn_forward_reference(x, params, future=0):
    """Pure-JAX reference mirroring PyTorch semantics."""
    w_ih, w_hh, b_ih, b_hh, w_lin, b_lin = (params[k] for k in
                                            ("w_ih", "w_hh", "b_ih", "b_hh", "w_lin", "b_lin"))
    batch = x.shape[0]
    hidden = w_hh.shape[1]
    H = hidden

    def cell(carry, x_t):
        h, c = carry
        z = x_t @ w_ih.T + b_ih + h @ w_hh.T + b_hh
        i = jax.nn.sigmoid(z[:, 0 * H:1 * H])
        f = jax.nn.sigmoid(z[:, 1 * H:2 * H])
        g = jnp.tanh(z[:, 2 * H:3 * H])
        o = jax.nn.sigmoid(z[:, 3 * H:4 * H])
        c_new = f * c + i * g
        h_new = o * jnp.tanh(c_new)
        y = h_new @ w_lin.T + b_lin
        return (h_new, c_new), y

    carry = (jnp.zeros((batch, hidden), jnp.float32),
             jnp.zeros((batch, hidden), jnp.float32))
    ys = []
    for t in range(x.shape[1]):
        carry, y = cell(carry, x[:, t, :])
        ys.append(y)
    for _ in range(future):
        carry, y = cell(carry, y)
        ys.append(y)
    return jnp.stack(ys, axis=1)


def init_params(key, input_size, hidden_size, output_size):
    """Deterministic init matching PyTorch parameter shapes (uniform +-1/sqrt(H))."""
    ks = jax.random.split(key, 6)
    s = 1.0 / jnp.sqrt(hidden_size)
    return {
        "w_ih": jax.random.uniform(ks[0], (4 * hidden_size, input_size), jnp.float32, -s, s),
        "w_hh": jax.random.uniform(ks[1], (4 * hidden_size, hidden_size), jnp.float32, -s, s),
        "b_ih": jax.random.uniform(ks[2], (4 * hidden_size,), jnp.float32, -s, s),
        "b_hh": jax.random.uniform(ks[3], (4 * hidden_size,), jnp.float32, -s, s),
        "w_lin": jax.random.uniform(ks[4], (output_size, hidden_size), jnp.float32, -s, s),
        "b_lin": jax.random.uniform(ks[5], (output_size,), jnp.float32, -s, s),
    }


if __name__ == "__main__":
    # module hardcodes hidden state size 51 in forward -> hidden_size = 51
    batch, seq, input_size, hidden_size, output_size, future = 2, 8, 1, 51, 1, 2

    key = jax.random.PRNGKey(0)
    k_x, k_p = jax.random.split(key)
    x = jax.random.normal(k_x, (batch, seq, input_size), jnp.float32)
    params = init_params(k_p, input_size, hidden_size, output_size)

    out = rnn_forward(x, params, future=future)
    out = jax.block_until_ready(out)

    ref = rnn_forward_reference(x, params, future=future)
    assert out.shape == (batch, seq + future, output_size), out.shape
    assert jnp.allclose(out, ref, atol=1e-4, rtol=1e-4), float(jnp.abs(out - ref).max())

    print("KERNEL_OK")
</pallas_src>

<mosaic_0001>
module attributes {stable_mosaic.version = 11 : i64} {
  func.func @_lstm_kernel(%arg0: i32, %arg1: memref<10x8x128xf32, #tpu.memory_space<vmem>>, %arg2: memref<256x512xf32, #tpu.memory_space<vmem>>, %arg3: memref<1x512xf32, #tpu.memory_space<vmem>>, %arg4: memref<128x128xf32, #tpu.memory_space<vmem>>, %arg5: memref<1x128xf32, #tpu.memory_space<vmem>>, %arg6: memref<10x8x128xf32, #tpu.memory_space<vmem>>, %arg7: memref<8x128xf32, #tpu.memory_space<vmem>>, %arg8: memref<8x128xf32, #tpu.memory_space<vmem>>, %arg9: memref<8x128xf32, #tpu.memory_space<vmem>>) attributes {dimension_semantics = [#tpu.dimension_semantics<arbitrary>], iteration_bounds = array<i64: 1>, scalar_prefetch = 0 : i64, scratch_operands = 3 : i64, tpu.core_type = #tpu.core_type<tc>, window_params = [{pipeline_mode = #tpu.pipeline_mode<synchronous>, transform_indices = @transform_0, window_bounds = array<i64: 10, 8, 128>}, {pipeline_mode = #tpu.pipeline_mode<synchronous>, transform_indices = @transform_1, window_bounds = array<i64: 256, 512>}, {pipeline_mode = #tpu.pipeline_mode<synchronous>, transform_indices = @transform_2, window_bounds = array<i64: 1, 512>}, {pipeline_mode = #tpu.pipeline_mode<synchronous>, transform_indices = @transform_3, window_bounds = array<i64: 128, 128>}, {pipeline_mode = #tpu.pipeline_mode<synchronous>, transform_indices = @transform_4, window_bounds = array<i64: 1, 128>}, {pipeline_mode = #tpu.pipeline_mode<synchronous>, transform_indices = @transform_5, window_bounds = array<i64: 10, 8, 128>}]} {
    %cst = arith.constant 0.000000e+00 : f32
    %0 = vector.broadcast %cst : f32 to vector<8x128xf32>
    %c0 = arith.constant 0 : index
    %c0_0 = arith.constant 0 : index
    %1 = vector.load %arg7[%c0, %c0_0] : memref<8x128xf32, #tpu.memory_space<vmem>>, vector<8x128xf32>
    tpu.vector_store %arg7[%c0, %c0_0], %0 {strides = array<i32>} : memref<8x128xf32, #tpu.memory_space<vmem>>, vector<8x128xf32>,
    %cst_1 = arith.constant 0.000000e+00 : f32
    %2 = vector.broadcast %cst_1 : f32 to vector<8x128xf32>
    %c0_2 = arith.constant 0 : index
    %c0_3 = arith.constant 0 : index
    %3 = vector.load %arg8[%c0_2, %c0_3] : memref<8x128xf32, #tpu.memory_space<vmem>>, vector<8x128xf32>
    tpu.vector_store %arg8[%c0_2, %c0_3], %2 {strides = array<i32>} : memref<8x128xf32, #tpu.memory_space<vmem>>, vector<8x128xf32>,
    %cst_4 = arith.constant 0.000000e+00 : f32
    %4 = vector.broadcast %cst_4 : f32 to vector<8x128xf32>
    %c0_5 = arith.constant 0 : index
    %c0_6 = arith.constant 0 : index
    %5 = vector.load %arg9[%c0_5, %c0_6] : memref<8x128xf32, #tpu.memory_space<vmem>>, vector<8x128xf32>
    tpu.vector_store %arg9[%c0_5, %c0_6], %4 {strides = array<i32>} : memref<8x128xf32, #tpu.memory_space<vmem>>, vector<8x128xf32>,
    %c0_7 = arith.constant 0 : index
    %c0_8 = arith.constant 0 : index
    %6 = vector.load %arg2[%c0_7, %c0_8] : memref<256x512xf32, #tpu.memory_space<vmem>>, vector<256x512xf32>
    %c0_9 = arith.constant 0 : index
    %c0_10 = arith.constant 0 : index
    %7 = vector.load %arg3[%c0_9, %c0_10] : memref<1x512xf32, #tpu.memory_space<vmem>>, vector<1x512xf32>
    %c0_11 = arith.constant 0 : index
    %c0_12 = arith.constant 0 : index
    %8 = vector.load %arg4[%c0_11, %c0_12] : memref<128x128xf32, #tpu.memory_space<vmem>>, vector<128x128xf32>
    %c0_13 = arith.constant 0 : index
    %c0_14 = arith.constant 0 : index
    %9 = vector.load %arg5[%c0_13, %c0_14] : memref<1x128xf32, #tpu.memory_space<vmem>>, vector<1x128xf32>
    %c0_i32 = arith.constant 0 : i32
    %c1_i32 = arith.constant 1 : i32
    %10 = arith.muli %c0_i32, %c1_i32 : i32
    %c0_i32_15 = arith.constant 0 : i32
    %11 = arith.addi %c0_i32_15, %10 : i32
    %c0_16 = arith.constant 0 : index
    %c0_17 = arith.constant 0 : index
    %12 = vector.load %arg7[%c0_16, %c0_17] : memref<8x128xf32, #tpu.memory_space<vmem>>, vector<8x128xf32>
    %c0_18 = arith.constant 0 : index
    %c0_19 = arith.constant 0 : index
    %13 = vector.load %arg8[%c0_18, %c0_19] : memref<8x128xf32, #tpu.memory_space<vmem>>, vector<8x128xf32>
    %14 = arith.index_cast %11 : i32 to index
    %c0_20 = arith.constant 0 : index
    %c0_21 = arith.constant 0 : index
    %15 = vector.load %arg1[%14, %c0_20, %c0_21] : memref<10x8x128xf32, #tpu.memory_space<vmem>>, vector<1x8x128xf32>
    %16 = vector.shape_cast %15 : vector<1x8x128xf32> to vector<8x128xf32>
    %c8_i32 = arith.constant 8 : i32
    %17 = arith.cmpi slt, %11, %c8_i32 : i32
    %c0_22 = arith.constant 0 : index
    %c0_23 = arith.constant 0 : index
    %18 = vector.load %arg9[%c0_22, %c0_23] : memref<8x128xf32, #tpu.memory_space<vmem>>, vector<8x128xf32>
    %19 = arith.select %17, %16, %18 : vector<8x128xf32>
    %20 = tpu.concatenate %19, %12 in 1 : vector<8x128xf32>, vector<8x128xf32> -> vector<8x256xf32>
    %cst_24 = arith.constant dense<0.000000e+00> : vector<8x512xf32>
    %21 = tpu.matmul %20, %6, %cst_24 {dimension_numbers = #tpu.dot_dimension_numbers<[1], [0], [0], [1], [0, 0, 1, 1], [], []>} : vector<8x256xf32>, vector<256x512xf32>, vector<8x512xf32> -> vector<8x512xf32>
    %22 = vector.broadcast %7 : vector<1x512xf32> to vector<8x512xf32>
    %23 = arith.addf %21, %22 : vector<8x512xf32>
    %24 = vector.extract_strided_slice %23 {offsets = [0, 0], sizes = [8, 128], strides = [1, 1]} : vector<8x512xf32> to vector<8x128xf32>
    %25 = arith.negf %24 : vector<8x128xf32>
    %26 = math.exp %25 : vector<8x128xf32>
    %cst_25 = arith.constant 1.000000e+00 : f32
    %27 = vector.broadcast %cst_25 : f32 to vector<8x128xf32>
    %28 = arith.addf %27, %26 : vector<8x128xf32>
    %29 = arith.divf %27, %28 : vector<8x128xf32>
    %30 = vector.extract_strided_slice %23 {offsets = [0, 128], sizes = [8, 128], strides = [1, 1]} : vector<8x512xf32> to vector<8x128xf32>
    %31 = arith.negf %30 : vector<8x128xf32>
    %32 = math.exp %31 : vector<8x128xf32>
    %cst_26 = arith.constant 1.000000e+00 : f32
    %33 = vector.broadcast %cst_26 : f32 to vector<8x128xf32>
    %34 = arith.addf %33, %32 : vector<8x128xf32>
    %35 = arith.divf %33, %34 : vector<8x128xf32>
    %36 = vector.extract_strided_slice %23 {offsets = [0, 256], sizes = [8, 128], strides = [1, 1]} : vector<8x512xf32> to vector<8x128xf32>
    %37 = math.tanh %36 : vector<8x128xf32>
    %38 = vector.extract_strided_slice %23 {offsets = [0, 384], sizes = [8, 128], strides = [1, 1]} : vector<8x512xf32> to vector<8x128xf32>
    %39 = arith.negf %38 : vector<8x128xf32>
    %40 = math.exp %39 : vector<8x128xf32>
    %cst_27 = arith.constant 1.000000e+00 : f32
    %41 = vector.broadcast %cst_27 : f32 to vector<8x128xf32>
    %42 = arith.addf %41, %40 : vector<8x128xf32>
    %43 = arith.divf %41, %42 : vector<8x128xf32>
    %44 = arith.mulf %35, %13 : vector<8x128xf32>
    %45 = arith.mulf %29, %37 : vector<8x128xf32>
    %46 = arith.addf %44, %45 : vector<8x128xf32>
    %47 = math.tanh %46 : vector<8x128xf32>
    %48 = arith.mulf %43, %47 : vector<8x128xf32>
    %cst_28 = arith.constant dense<0.000000e+00> : vector<8x128xf32>
    %49 = tpu.matmul %48, %8, %cst_28 {dimension_numbers = #tpu.dot_dimension_numbers<[1], [0], [0], [1], [0, 0, 1, 1], [], []>} : vector<8x128xf32>, vector<128x128xf32>, vector<8x128xf32> -> vector<8x128xf32>
    %50 = vector.broadcast %9 : vector<1x128xf32> to vector<8x128xf32>
    %51 = arith.addf %49, %50 : vector<8x128xf32>
    %c0_29 = arith.constant 0 : index
    %c0_30 = arith.constant 0 : index
    %52 = vector.load %arg7[%c0_29, %c0_30] : memref<8x128xf32, #tpu.memory_space<vmem>>, vector<8x128xf32>
    tpu.vector_store %arg7[%c0_29, %c0_30], %48 {strides = array<i32>} : memref<8x128xf32, #tpu.memory_space<vmem>>, vector<8x128xf32>,
    %c0_31 = arith.constant 0 : index
    %c0_32 = arith.constant 0 : index
    %53 = vector.load %arg8[%c0_31, %c0_32] : memref<8x128xf32, #tpu.memory_space<vmem>>, vector<8x128xf32>
    tpu.vector_store %arg8[%c0_31, %c0_32], %46 {strides = array<i32>} : memref<8x128xf32, #tpu.memory_space<vmem>>, vector<8x128xf32>,
    %c0_33 = arith.constant 0 : index
    %c0_34 = arith.constant 0 : index
    %54 = vector.load %arg9[%c0_33, %c0_34] : memref<8x128xf32, #tpu.memory_space<vmem>>, vector<8x128xf32>
    tpu.vector_store %arg9[%c0_33, %c0_34], %51 {strides = array<i32>} : memref<8x128xf32, #tpu.memory_space<vmem>>, vector<8x128xf32>,
    %55 = arith.index_cast %11 : i32 to index
    %c0_35 = arith.constant 0 : index
    %c0_36 = arith.constant 0 : index
    %56 = vector.load %arg6[%55, %c0_35, %c0_36] : memref<10x8x128xf32, #tpu.memory_space<vmem>>, vector<1x8x128xf32>
    %57 = vector.shape_cast %56 : vector<1x8x128xf32> to vector<8x128xf32>
    %58 = vector.shape_cast %51 : vector<8x128xf32> to vector<1x8x128xf32>
    tpu.vector_store %arg6[%55, %c0_35, %c0_36], %58 {strides = array<i32>} : memref<10x8x128xf32, #tpu.memory_space<vmem>>, vector<1x8x128xf32>,
    %c1_i32_37 = arith.constant 1 : i32
    %c1_i32_38 = arith.constant 1 : i32
    %59 = arith.muli %c1_i32_37, %c1_i32_38 : i32
    %c0_i32_39 = arith.constant 0 : i32
    %60 = arith.addi %c0_i32_39, %59 : i32
    %c0_40 = arith.constant 0 : index
    %c0_41 = arith.constant 0 : index
    %61 = vector.load %arg7[%c0_40, %c0_41] : memref<8x128xf32, #tpu.memory_space<vmem>>, vector<8x128xf32>
    %c0_42 = arith.constant 0 : index
    %c0_43 = arith.constant 0 : index
    %62 = vector.load %arg8[%c0_42, %c0_43] : memref<8x128xf32, #tpu.memory_space<vmem>>, vector<8x128xf32>
    %63 = arith.index_cast %60 : i32 to index
    %c0_44 = arith.constant 0 : index
    %c0_45 = arith.constant 0 : index
    %64 = vector.load %arg1[%63, %c0_44, %c0_45] : memref<10x8x128xf32, #tpu.memory_space<vmem>>, vector<1x8x128xf32>
    %65 = vector.shape_cast %64 : vector<1x8x128xf32> to vector<8x128xf32>
    %c8_i32_46 = arith.constant 8 : i32
    %66 = arith.cmpi slt, %60, %c8_i32_46 : i32
    %c0_47 = arith.constant 0 : index
    %c0_48 = arith.constant 0 : index
    %67 = vector.load %arg9[%c0_47, %c0_48] : memref<8x128xf32, #tpu.memory_space<vmem>>, vector<8x128xf32>
    %68 = arith.select %66, %65, %67 : vector<8x128xf32>
    %69 = tpu.concatenate %68, %61 in 1 : vector<8x128xf32>, vector<8x128xf32> -> vector<8x256xf32>
    %cst_49 = arith.constant dense<0.000000e+00> : vector<8x512xf32>
    %70 = tpu.matmul %69, %6, %cst_49 {dimension_numbers = #tpu.dot_dimension_numbers<[1], [0], [0], [1], [0, 0, 1, 1], [], []>} : vector<8x256xf32>, vector<256x512xf32>, vector<8x512xf32> -> vector<8x512xf32>
    %71 = vector.broadcast %7 : vector<1x512xf32> to vector<8x512xf32>
    %72 = arith.addf %70, %71 : vector<8x512xf32>
    %73 = vector.extract_strided_slice %72 {offsets = [0, 0], sizes = [8, 128], strides = [1, 1]} : vector<8x512xf32> to vector<8x128xf32>
    %74 = arith.negf %73 : vector<8x128xf32>
    %75 = math.exp %74 : vector<8x128xf32>
    %cst_50 = arith.constant 1.000000e+00 : f32
    %76 = vector.broadcast %cst_50 : f32 to vector<8x128xf32>
    %77 = arith.addf %76, %75 : vector<8x128xf32>
    %78 = arith.divf %76, %77 : vector<8x128xf32>
    %79 = vector.extract_strided_slice %72 {offsets = [0, 128], sizes = [8, 128], strides = [1, 1]} : vector<8x512xf32> to vector<8x128xf32>
    %80 = arith.negf %79 : vector<8x128xf32>
    %81 = math.exp %80 : vector<8x128xf32>
    %cst_51 = arith.constant 1.000000e+00 : f32
    %82 = vector.broadcast %cst_51 : f32 to vector<8x128xf32>
    %83 = arith.addf %82, %81 : vector<8x128xf32>
    %84 = arith.divf %82, %83 : vector<8x128xf32>
    %85 = vector.extract_strided_slice %72 {offsets = [0, 256], sizes = [8, 128], strides = [1, 1]} : vector<8x512xf32> to vector<8x128xf32>
    %86 = math.tanh %85 : vector<8x128xf32>
    %87 = vector.extract_strided_slice %72 {offsets = [0, 384], sizes = [8, 128], strides = [1, 1]} : vector<8x512xf32> to vector<8x128xf32>
    %88 = arith.negf %87 : vector<8x128xf32>
    %89 = math.exp %88 : vector<8x128xf32>
    %cst_52 = arith.constant 1.000000e+00 : f32
    %90 = vector.broadcast %cst_52 : f32 to vector<8x128xf32>
    %91 = arith.addf %90, %89 : vector<8x128xf32>
    %92 = arith.divf %90, %91 : vector<8x128xf32>
    %93 = arith.mulf %84, %62 : vector<8x128xf32>
    %94 = arith.mulf %78, %86 : vector<8x128xf32>
    %95 = arith.addf %93, %94 : vector<8x128xf32>
    %96 = math.tanh %95 : vector<8x128xf32>
    %97 = arith.mulf %92, %96 : vector<8x128xf32>
    %cst_53 = arith.constant dense<0.000000e+00> : vector<8x128xf32>
    %98 = tpu.matmul %97, %8, %cst_53 {dimension_numbers = #tpu.dot_dimension_numbers<[1], [0], [0], [1], [0, 0, 1, 1], [], []>} : vector<8x128xf32>, vector<128x128xf32>, vector<8x128xf32> -> vector<8x128xf32>
    %99 = vector.broadcast %9 : vector<1x128xf32> to vector<8x128xf32>
    %100 = arith.addf %98, %99 : vector<8x128xf32>
    %c0_54 = arith.constant 0 : index
    %c0_55 = arith.constant 0 : index
    %101 = vector.load %arg7[%c0_54, %c0_55] : memref<8x128xf32, #tpu.memory_space<vmem>>, vector<8x128xf32>
    tpu.vector_store %arg7[%c0_54, %c0_55], %97 {strides = array<i32>} : memref<8x128xf32, #tpu.memory_space<vmem>>, vector<8x128xf32>,
    %c0_56 = arith.constant 0 : index
    %c0_57 = arith.constant 0 : index
    %102 = vector.load %arg8[%c0_56, %c0_57] : memref<8x128xf32, #tpu.memory_space<vmem>>, vector<8x128xf32>
    tpu.vector_store %arg8[%c0_56, %c0_57], %95 {strides = array<i32>} : memref<8x128xf32, #tpu.memory_space<vmem>>, vector<8x128xf32>,
    %c0_58 = arith.constant 0 : index
    %c0_59 = arith.constant 0 : index
    %103 = vector.load %arg9[%c0_58, %c0_59] : memref<8x128xf32, #tpu.memory_space<vmem>>, vector<8x128xf32>
    tpu.vector_store %arg9[%c0_58, %c0_59], %100 {strides = array<i32>} : memref<8x128xf32, #tpu.memory_space<vmem>>, vector<8x128xf32>,
    %104 = arith.index_cast %60 : i32 to index
    %c0_60 = arith.constant 0 : index
    %c0_61 = arith.constant 0 : index
    %105 = vector.load %arg6[%104, %c0_60, %c0_61] : memref<10x8x128xf32, #tpu.memory_space<vmem>>, vector<1x8x128xf32>
    %106 = vector.shape_cast %105 : vector<1x8x128xf32> to vector<8x128xf32>
    %107 = vector.shape_cast %100 : vector<8x128xf32> to vector<1x8x128xf32>
    tpu.vector_store %arg6[%104, %c0_60, %c0_61], %107 {strides = array<i32>} : memref<10x8x128xf32, #tpu.memory_space<vmem>>, vector<1x8x128xf32>,
    %c2_i32 = arith.constant 2 : i32
    %c1_i32_62 = arith.constant 1 : i32
    %108 = arith.muli %c2_i32, %c1_i32_62 : i32
    %c0_i32_63 = arith.constant 0 : i32
    %109 = arith.addi %c0_i32_63, %108 : i32
    %c0_64 = arith.constant 0 : index
    %c0_65 = arith.constant 0 : index
    %110 = vector.load %arg7[%c0_64, %c0_65] : memref<8x128xf32, #tpu.memory_space<vmem>>, vector<8x128xf32>
    %c0_66 = arith.constant 0 : index
    %c0_67 = arith.constant 0 : index
    %111 = vector.load %arg8[%c0_66, %c0_67] : memref<8x128xf32, #tpu.memory_space<vmem>>, vector<8x128xf32>
    %112 = arith.index_cast %109 : i32 to index
    %c0_68 = arith.constant 0 : index
    %c0_69 = arith.constant 0 : index
    %113 = vector.load %arg1[%112, %c0_68, %c0_69] : memref<10x8x128xf32, #tpu.memory_space<vmem>>, vector<1x8x128xf32>
    %114 = vector.shape_cast %113 : vector<1x8x128xf32> to vector<8x128xf32>
    %c8_i32_70 = arith.constant 8 : i32
    %115 = arith.cmpi slt, %109, %c8_i32_70 : i32
    %c0_71 = arith.constant 0 : index
    %c0_72 = arith.constant 0 : index
    %116 = vector.load %arg9[%c0_71, %c0_72] : memref<8x128xf32, #tpu.memory_space<vmem>>, vector<8x128xf32>
    %117 = arith.select %115, %114, %116 : vector<8x128xf32>
    %118 = tpu.concatenate %117, %110 in 1 : vector<8x128xf32>, vector<8x128xf32> -> vector<8x256xf32>
    %cst_73 = arith.constant dense<0.000000e+00> : vector<8x512xf32>
    %119 = tpu.matmul %118, %6, %cst_73 {dimension_numbers = #tpu.dot_dimension_numbers<[1], [0], [0], [1], [0, 0, 1, 1], [], []>} : vector<8x256xf32>, vector<256x512xf32>, vector<8x512xf32> -> vector<8x512xf32>
    %120 = vector.broadcast %7 : vector<1x512xf32> to vector<8x512xf32>
    %121 = arith.addf %119, %120 : vector<8x512xf32>
    %122 = vector.extract_strided_slice %121 {offsets = [0, 0], sizes = [8, 128], strides = [1, 1]} : vector<8x512xf32> to vector<8x128xf32>
    %123 = arith.negf %122 : vector<8x128xf32>
    %124 = math.exp %123 : vector<8x128xf32>
    %cst_74 = arith.constant 1.000000e+00 : f32
    %125 = vector.broadcast %cst_74 : f32 to vector<8x128xf32>
    %126 = arith.addf %125, %124 : vector<8x128xf32>
    %127 = arith.divf %125, %126 : vector<8x128xf32>
    %128 = vector.extract_strided_slice %121 {offsets = [0, 128], sizes = [8, 128], strides = [1, 1]} : vector<8x512xf32> to vector<8x128xf32>
    %129 = arith.negf %128 : vector<8x128xf32>
    %130 = math.exp %129 : vector<8x128xf32>
    %cst_75 = arith.constant 1.000000e+00 : f32
    %131 = vector.broadcast %cst_75 : f32 to vector<8x128xf32>
    %132 = arith.addf %131, %130 : vector<8x128xf32>
    %133 = arith.divf %131, %132 : vector<8x128xf32>
    %134 = vector.extract_strided_slice %121 {offsets = [0, 256], sizes = [8, 128], strides = [1, 1]} : vector<8x512xf32> to vector<8x128xf32>
    %135 = math.tanh %134 : vector<8x128xf32>
    %136 = vector.extract_strided_slice %121 {offsets = [0, 384], sizes = [8, 128], strides = [1, 1]} : vector<8x512xf32> to vector<8x128xf32>
    %137 = arith.negf %136 : vector<8x128xf32>
    %138 = math.exp %137 : vector<8x128xf32>
    %cst_76 = arith.constant 1.000000e+00 : f32
    %139 = vector.broadcast %cst_76 : f32 to vector<8x128xf32>
    %140 = arith.addf %139, %138 : vector<8x128xf32>
    %141 = arith.divf %139, %140 : vector<8x128xf32>
    %142 = arith.mulf %133, %111 : vector<8x128xf32>
    %143 = arith.mulf %127, %135 : vector<8x128xf32>
    %144 = arith.addf %142, %143 : vector<8x128xf32>
    %145 = math.tanh %144 : vector<8x128xf32>
    %146 = arith.mulf %141, %145 : vector<8x128xf32>
    %cst_77 = arith.constant dense<0.000000e+00> : vector<8x128xf32>
    %147 = tpu.matmul %146, %8, %cst_77 {dimension_numbers = #tpu.dot_dimension_numbers<[1], [0], [0], [1], [0, 0, 1, 1], [], []>} : vector<8x128xf32>, vector<128x128xf32>, vector<8x128xf32> -> vector<8x128xf32>
    %148 = vector.broadcast %9 : vector<1x128xf32> to vector<8x128xf32>
    %149 = arith.addf %147, %148 : vector<8x128xf32>
    %c0_78 = arith.constant 0 : index
    %c0_79 = arith.constant 0 : index
    %150 = vector.load %arg7[%c0_78, %c0_79] : memref<8x128xf32, #tpu.memory_space<vmem>>, vector<8x128xf32>
    tpu.vector_store %arg7[%c0_78, %c0_79], %146 {strides = array<i32>} : memref<8x128xf32, #tpu.memory_space<vmem>>, vector<8x128xf32>,
    %c0_80 = arith.constant 0 : index
    %c0_81 = arith.constant 0 : index
    %151 = vector.load %arg8[%c0_80, %c0_81] : memref<8x128xf32, #tpu.memory_space<vmem>>, vector<8x128xf32>
    tpu.vector_store %arg8[%c0_80, %c0_81], %144 {strides = array<i32>} : memref<8x128xf32, #tpu.memory_space<vmem>>, vector<8x128xf32>,
    %c0_82 = arith.constant 0 : index
    %c0_83 = arith.constant 0 : index
    %152 = vector.load %arg9[%c0_82, %c0_83] : memref<8x128xf32, #tpu.memory_space<vmem>>, vector<8x128xf32>
    tpu.vector_store %arg9[%c0_82, %c0_83], %149 {strides = array<i32>} : memref<8x128xf32, #tpu.memory_space<vmem>>, vector<8x128xf32>,
    %153 = arith.index_cast %109 : i32 to index
    %c0_84 = arith.constant 0 : index
    %c0_85 = arith.constant 0 : index
    %154 = vector.load %arg6[%153, %c0_84, %c0_85] : memref<10x8x128xf32, #tpu.memory_space<vmem>>, vector<1x8x128xf32>
    %155 = vector.shape_cast %154 : vector<1x8x128xf32> to vector<8x128xf32>
    %156 = vector.shape_cast %149 : vector<8x128xf32> to vector<1x8x128xf32>
    tpu.vector_store %arg6[%153, %c0_84, %c0_85], %156 {strides = array<i32>} : memref<10x8x128xf32, #tpu.memory_space<vmem>>, vector<1x8x128xf32>,
    %c3_i32 = arith.constant 3 : i32
    %c1_i32_86 = arith.constant 1 : i32
    %157 = arith.muli %c3_i32, %c1_i32_86 : i32
    %c0_i32_87 = arith.constant 0 : i32
    %158 = arith.addi %c0_i32_87, %157 : i32
    %c0_88 = arith.constant 0 : index
    %c0_89 = arith.constant 0 : index
    %159 = vector.load %arg7[%c0_88, %c0_89] : memref<8x128xf32, #tpu.memory_space<vmem>>, vector<8x128xf32>
    %c0_90 = arith.constant 0 : index
    %c0_91 = arith.constant 0 : index
    %160 = vector.load %arg8[%c0_90, %c0_91] : memref<8x128xf32, #tpu.memory_space<vmem>>, vector<8x128xf32>
    %161 = arith.index_cast %158 : i32 to index
    %c0_92 = arith.constant 0 : index
    %c0_93 = arith.constant 0 : index
    %162 = vector.load %arg1[%161, %c0_92, %c0_93] : memref<10x8x128xf32, #tpu.memory_space<vmem>>, vector<1x8x128xf32>
    %163 = vector.shape_cast %162 : vector<1x8x128xf32> to vector<8x128xf32>
    %c8_i32_94 = arith.constant 8 : i32
    %164 = arith.cmpi slt, %158, %c8_i32_94 : i32
    %c0_95 = arith.constant 0 : index
    %c0_96 = arith.constant 0 : index
    %165 = vector.load %arg9[%c0_95, %c0_96] : memref<8x128xf32, #tpu.memory_space<vmem>>, vector<8x128xf32>
    %166 = arith.select %164, %163, %165 : vector<8x128xf32>
    %167 = tpu.concatenate %166, %159 in 1 : vector<8x128xf32>, vector<8x128xf32> -> vector<8x256xf32>
    %cst_97 = arith.constant dense<0.000000e+00> : vector<8x512xf32>
    %168 = tpu.matmul %167, %6, %cst_97 {dimension_numbers = #tpu.dot_dimension_numbers<[1], [0], [0], [1], [0, 0, 1, 1], [], []>} : vector<8x256xf32>, vector<256x512xf32>, vector<8x512xf32> -> vector<8x512xf32>
    %169 = vector.broadcast %7 : vector<1x512xf32> to vector<8x512xf32>
    %170 = arith.addf %168, %169 : vector<8x512xf32>
    %171 = vector.extract_strided_slice %170 {offsets = [0, 0], sizes = [8, 128], strides = [1, 1]} : vector<8x512xf32> to vector<8x128xf32>
    %172 = arith.negf %171 : vector<8x128xf32>
    %173 = math.exp %172 : vector<8x128xf32>
    %cst_98 = arith.constant 1.000000e+00 : f32
    %174 = vector.broadcast %cst_98 : f32 to vector<8x128xf32>
    %175 = arith.addf %174, %173 : vector<8x128xf32>
    %176 = arith.divf %174, %175 : vector<8x128xf32>
    %177 = vector.extract_strided_slice %170 {offsets = [0, 128], sizes = [8, 128], strides = [1, 1]} : vector<8x512xf32> to vector<8x128xf32>
    %178 = arith.negf %177 : vector<8x128xf32>
    %179 = math.exp %178 : vector<8x128xf32>
    %cst_99 = arith.constant 1.000000e+00 : f32
    %180 = vector.broadcast %cst_99 : f32 to vector<8x128xf32>
    %181 = arith.addf %180, %179 : vector<8x128xf32>
    %182 = arith.divf %180, %181 : vector<8x128xf32>
    %183 = vector.extract_strided_slice %170 {offsets = [0, 256], sizes = [8, 128], strides = [1, 1]} : vector<8x512xf32> to vector<8x128xf32>
    %184 = math.tanh %183 : vector<8x128xf32>
    %185 = vector.extract_strided_slice %170 {offsets = [0, 384], sizes = [8, 128], strides = [1, 1]} : vector<8x512xf32> to vector<8x128xf32>
    %186 = arith.negf %185 : vector<8x128xf32>
    %187 = math.exp %186 : vector<8x128xf32>
    %cst_100 = arith.constant 1.000000e+00 : f32
    %188 = vector.broadcast %cst_100 : f32 to vector<8x128xf32>
    %189 = arith.addf %188, %187 : vector<8x128xf32>
    %190 = arith.divf %188, %189 : vector<8x128xf32>
    %191 = arith.mulf %182, %160 : vector<8x128xf32>
    %192 = arith.mulf %176, %184 : vector<8x128xf32>
    %193 = arith.addf %191, %192 : vector<8x128xf32>
    %194 = math.tanh %193 : vector<8x128xf32>
    %195 = arith.mulf %190, %194 : vector<8x128xf32>
    %cst_101 = arith.constant dense<0.000000e+00> : vector<8x128xf32>
    %196 = tpu.matmul %195, %8, %cst_101 {dimension_numbers = #tpu.dot_dimension_numbers<[1], [0], [0], [1], [0, 0, 1, 1], [], []>} : vector<8x128xf32>, vector<128x128xf32>, vector<8x128xf32> -> vector<8x128xf32>
    %197 = vector.broadcast %9 : vector<1x128xf32> to vector<8x128xf32>
    %198 = arith.addf %196, %197 : vector<8x128xf32>
    %c0_102 = arith.constant 0 : index
    %c0_103 = arith.constant 0 : index
    %199 = vector.load %arg7[%c0_102, %c0_103] : memref<8x128xf32, #tpu.memory_space<vmem>>, vector<8x128xf32>
    tpu.vector_store %arg7[%c0_102, %c0_103], %195 {strides = array<i32>} : memref<8x128xf32, #tpu.memory_space<vmem>>, vector<8x128xf32>,
    %c0_104 = arith.constant 0 : index
    %c0_105 = arith.constant 0 : index
    %200 = vector.load %arg8[%c0_104, %c0_105] : memref<8x128xf32, #tpu.memory_space<vmem>>, vector<8x128xf32>
    tpu.vector_store %arg8[%c0_104, %c0_105], %193 {strides = array<i32>} : memref<8x128xf32, #tpu.memory_space<vmem>>, vector<8x128xf32>,
    %c0_106 = arith.constant 0 : index
    %c0_107 = arith.constant 0 : index
    %201 = vector.load %arg9[%c0_106, %c0_107] : memref<8x128xf32, #tpu.memory_space<vmem>>, vector<8x128xf32>
    tpu.vector_store %arg9[%c0_106, %c0_107], %198 {strides = array<i32>} : memref<8x128xf32, #tpu.memory_space<vmem>>, vector<8x128xf32>,
    %202 = arith.index_cast %158 : i32 to index
    %c0_108 = arith.constant 0 : index
    %c0_109 = arith.constant 0 : index
    %203 = vector.load %arg6[%202, %c0_108, %c0_109] : memref<10x8x128xf32, #tpu.memory_space<vmem>>, vector<1x8x128xf32>
    %204 = vector.shape_cast %203 : vector<1x8x128xf32> to vector<8x128xf32>
    %205 = vector.shape_cast %198 : vector<8x128xf32> to vector<1x8x128xf32>
    tpu.vector_store %arg6[%202, %c0_108, %c0_109], %205 {strides = array<i32>} : memref<10x8x128xf32, #tpu.memory_space<vmem>>, vector<1x8x128xf32>,
    %c4_i32 = arith.constant 4 : i32
    %c1_i32_110 = arith.constant 1 : i32
    %206 = arith.muli %c4_i32, %c1_i32_110 : i32
    %c0_i32_111 = arith.constant 0 : i32
    %207 = arith.addi %c0_i32_111, %206 : i32
    %c0_112 = arith.constant 0 : index
    %c0_113 = arith.constant 0 : index
    %208 = vector.load %arg7[%c0_112, %c0_113] : memref<8x128xf32, #tpu.memory_space<vmem>>, vector<8x128xf32>
    %c0_114 = arith.constant 0 : index
    %c0_115 = arith.constant 0 : index
    %209 = vector.load %arg8[%c0_114, %c0_115] : memref<8x128xf32, #tpu.memory_space<vmem>>, vector<8x128xf32>
    %210 = arith.index_cast %207 : i32 to index
    %c0_116 = arith.constant 0 : index
    %c0_117 = arith.constant 0 : index
    %211 = vector.load %arg1[%210, %c0_116, %c0_117] : memref<10x8x128xf32, #tpu.memory_space<vmem>>, vector<1x8x128xf32>
    %212 = vector.shape_cast %211 : vector<1x8x128xf32> to vector<8x128xf32>
    %c8_i32_118 = arith.constant 8 : i32
    %213 = arith.cmpi slt, %207, %c8_i32_118 : i32
    %c0_119 = arith.constant 0 : index
    %c0_120 = arith.constant 0 : index
    %214 = vector.load %arg9[%c0_119, %c0_120] : memref<8x128xf32, #tpu.memory_space<vmem>>, vector<8x128xf32>
    %215 = arith.select %213, %212, %214 : vector<8x128xf32>
    %216 = tpu.concatenate %215, %208 in 1 : vector<8x128xf32>, vector<8x128xf32> -> vector<8x256xf32>
    %cst_121 = arith.constant dense<0.000000e+00> : vector<8x512xf32>
    %217 = tpu.matmul %216, %6, %cst_121 {dimension_numbers = #tpu.dot_dimension_numbers<[1], [0], [0], [1], [0, 0, 1, 1], [], []>} : vector<8x256xf32>, vector<256x512xf32>, vector<8x512xf32> -> vector<8x512xf32>
    %218 = vector.broadcast %7 : vector<1x512xf32> to vector<8x512xf32>
    %219 = arith.addf %217, %218 : vector<8x512xf32>
    %220 = vector.extract_strided_slice %219 {offsets = [0, 0], sizes = [8, 128], strides = [1, 1]} : vector<8x512xf32> to vector<8x128xf32>
    %221 = arith.negf %220 : vector<8x128xf32>
    %222 = math.exp %221 : vector<8x128xf32>
    %cst_122 = arith.constant 1.000000e+00 : f32
    %223 = vector.broadcast %cst_122 : f32 to vector<8x128xf32>
    %224 = arith.addf %223, %222 : vector<8x128xf32>
    %225 = arith.divf %223, %224 : vector<8x128xf32>
    %226 = vector.extract_strided_slice %219 {offsets = [0, 128], sizes = [8, 128], strides = [1, 1]} : vector<8x512xf32> to vector<8x128xf32>
    %227 = arith.negf %226 : vector<8x128xf32>
    %228 = math.exp %227 : vector<8x128xf32>
    %cst_123 = arith.constant 1.000000e+00 : f32
    %229 = vector.broadcast %cst_123 : f32 to vector<8x128xf32>
    %230 = arith.addf %229, %228 : vector<8x128xf32>
    %231 = arith.divf %229, %230 : vector<8x128xf32>
    %232 = vector.extract_strided_slice %219 {offsets = [0, 256], sizes = [8, 128], strides = [1, 1]} : vector<8x512xf32> to vector<8x128xf32>
    %233 = math.tanh %232 : vector<8x128xf32>
    %234 = vector.extract_strided_slice %219 {offsets = [0, 384], sizes = [8, 128], strides = [1, 1]} : vector<8x512xf32> to vector<8x128xf32>
    %235 = arith.negf %234 : vector<8x128xf32>
    %236 = math.exp %235 : vector<8x128xf32>
    %cst_124 = arith.constant 1.000000e+00 : f32
    %237 = vector.broadcast %cst_124 : f32 to vector<8x128xf32>
    %238 = arith.addf %237, %236 : vector<8x128xf32>
    %239 = arith.divf %237, %238 : vector<8x128xf32>
    %240 = arith.mulf %231, %209 : vector<8x128xf32>
    %241 = arith.mulf %225, %233 : vector<8x128xf32>
    %242 = arith.addf %240, %241 : vector<8x128xf32>
    %243 = math.tanh %242 : vector<8x128xf32>
    %244 = arith.mulf %239, %243 : vector<8x128xf32>
    %cst_125 = arith.constant dense<0.000000e+00> : vector<8x128xf32>
    %245 = tpu.matmul %244, %8, %cst_125 {dimension_numbers = #tpu.dot_dimension_numbers<[1], [0], [0], [1], [0, 0, 1, 1], [], []>} : vector<8x128xf32>, vector<128x128xf32>, vector<8x128xf32> -> vector<8x128xf32>
    %246 = vector.broadcast %9 : vector<1x128xf32> to vector<8x128xf32>
    %247 = arith.addf %245, %246 : vector<8x128xf32>
    %c0_126 = arith.constant 0 : index
    %c0_127 = arith.constant 0 : index
    %248 = vector.load %arg7[%c0_126, %c0_127] : memref<8x128xf32, #tpu.memory_space<vmem>>, vector<8x128xf32>
    tpu.vector_store %arg7[%c0_126, %c0_127], %244 {strides = array<i32>} : memref<8x128xf32, #tpu.memory_space<vmem>>, vector<8x128xf32>,
    %c0_128 = arith.constant 0 : index
    %c0_129 = arith.constant 0 : index
    %249 = vector.load %arg8[%c0_128, %c0_129] : memref<8x128xf32, #tpu.memory_space<vmem>>, vector<8x128xf32>
    tpu.vector_store %arg8[%c0_128, %c0_129], %242 {strides = array<i32>} : memref<8x128xf32, #tpu.memory_space<vmem>>, vector<8x128xf32>,
    %c0_130 = arith.constant 0 : index
    %c0_131 = arith.constant 0 : index
    %250 = vector.load %arg9[%c0_130, %c0_131] : memref<8x128xf32, #tpu.memory_space<vmem>>, vector<8x128xf32>
    tpu.vector_store %arg9[%c0_130, %c0_131], %247 {strides = array<i32>} : memref<8x128xf32, #tpu.memory_space<vmem>>, vector<8x128xf32>,
    %251 = arith.index_cast %207 : i32 to index
    %c0_132 = arith.constant 0 : index
    %c0_133 = arith.constant 0 : index
    %252 = vector.load %arg6[%251, %c0_132, %c0_133] : memref<10x8x128xf32, #tpu.memory_space<vmem>>, vector<1x8x128xf32>
    %253 = vector.shape_cast %252 : vector<1x8x128xf32> to vector<8x128xf32>
    %254 = vector.shape_cast %247 : vector<8x128xf32> to vector<1x8x128xf32>
    tpu.vector_store %arg6[%251, %c0_132, %c0_133], %254 {strides = array<i32>} : memref<10x8x128xf32, #tpu.memory_space<vmem>>, vector<1x8x128xf32>,
    %c5_i32 = arith.constant 5 : i32
    %c1_i32_134 = arith.constant 1 : i32
    %255 = arith.muli %c5_i32, %c1_i32_134 : i32
    %c0_i32_135 = arith.constant 0 : i32
    %256 = arith.addi %c0_i32_135, %255 : i32
    %c0_136 = arith.constant 0 : index
    %c0_137 = arith.constant 0 : index
    %257 = vector.load %arg7[%c0_136, %c0_137] : memref<8x128xf32, #tpu.memory_space<vmem>>, vector<8x128xf32>
    %c0_138 = arith.constant 0 : index
    %c0_139 = arith.constant 0 : index
    %258 = vector.load %arg8[%c0_138, %c0_139] : memref<8x128xf32, #tpu.memory_space<vmem>>, vector<8x128xf32>
    %259 = arith.index_cast %256 : i32 to index
    %c0_140 = arith.constant 0 : index
    %c0_141 = arith.constant 0 : index
    %260 = vector.load %arg1[%259, %c0_140, %c0_141] : memref<10x8x128xf32, #tpu.memory_space<vmem>>, vector<1x8x128xf32>
    %261 = vector.shape_cast %260 : vector<1x8x128xf32> to vector<8x128xf32>
    %c8_i32_142 = arith.constant 8 : i32
    %262 = arith.cmpi slt, %256, %c8_i32_142 : i32
    %c0_143 = arith.constant 0 : index
    %c0_144 = arith.constant 0 : index
    %263 = vector.load %arg9[%c0_143, %c0_144] : memref<8x128xf32, #tpu.memory_space<vmem>>, vector<8x128xf32>
    %264 = arith.select %262, %261, %263 : vector<8x128xf32>
    %265 = tpu.concatenate %264, %257 in 1 : vector<8x128xf32>, vector<8x128xf32> -> vector<8x256xf32>
    %cst_145 = arith.constant dense<0.000000e+00> : vector<8x512xf32>
    %266 = tpu.matmul %265, %6, %cst_145 {dimension_numbers = #tpu.dot_dimension_numbers<[1], [0], [0], [1], [0, 0, 1, 1], [], []>} : vector<8x256xf32>, vector<256x512xf32>, vector<8x512xf32> -> vector<8x512xf32>
    %267 = vector.broadcast %7 : vector<1x512xf32> to vector<8x512xf32>
    %268 = arith.addf %266, %267 : vector<8x512xf32>
    %269 = vector.extract_strided_slice %268 {offsets = [0, 0], sizes = [8, 128], strides = [1, 1]} : vector<8x512xf32> to vector<8x128xf32>
    %270 = arith.negf %269 : vector<8x128xf32>
    %271 = math.exp %270 : vector<8x128xf32>
    %cst_146 = arith.constant 1.000000e+00 : f32
    %272 = vector.broadcast %cst_146 : f32 to vector<8x128xf32>
    %273 = arith.addf %272, %271 : vector<8x128xf32>
    %274 = arith.divf %272, %273 : vector<8x128xf32>
    %275 = vector.extract_strided_slice %268 {offsets = [0, 128], sizes = [8, 128], strides = [1, 1]} : vector<8x512xf32> to vector<8x128xf32>
    %276 = arith.negf %275 : vector<8x128xf32>
    %277 = math.exp %276 : vector<8x128xf32>
    %cst_147 = arith.constant 1.000000e+00 : f32
    %278 = vector.broadcast %cst_147 : f32 to vector<8x128xf32>
    %279 = arith.addf %278, %277 : vector<8x128xf32>
    %280 = arith.divf %278, %279 : vector<8x128xf32>
    %281 = vector.extract_strided_slice %268 {offsets = [0, 256], sizes = [8, 128], strides = [1, 1]} : vector<8x512xf32> to vector<8x128xf32>
    %282 = math.tanh %281 : vector<8x128xf32>
    %283 = vector.extract_strided_slice %268 {offsets = [0, 384], sizes = [8, 128], strides = [1, 1]} : vector<8x512xf32> to vector<8x128xf32>
    %284 = arith.negf %283 : vector<8x128xf32>
    %285 = math.exp %284 : vector<8x128xf32>
    %cst_148 = arith.constant 1.000000e+00 : f32
    %286 = vector.broadcast %cst_148 : f32 to vector<8x128xf32>
    %287 = arith.addf %286, %285 : vector<8x128xf32>
    %288 = arith.divf %286, %287 : vector<8x128xf32>
    %289 = arith.mulf %280, %258 : vector<8x128xf32>
    %290 = arith.mulf %274, %282 : vector<8x128xf32>
    %291 = arith.addf %289, %290 : vector<8x128xf32>
    %292 = math.tanh %291 : vector<8x128xf32>
    %293 = arith.mulf %288, %292 : vector<8x128xf32>
    %cst_149 = arith.constant dense<0.000000e+00> : vector<8x128xf32>
    %294 = tpu.matmul %293, %8, %cst_149 {dimension_numbers = #tpu.dot_dimension_numbers<[1], [0], [0], [1], [0, 0, 1, 1], [], []>} : vector<8x128xf32>, vector<128x128xf32>, vector<8x128xf32> -> vector<8x128xf32>
    %295 = vector.broadcast %9 : vector<1x128xf32> to vector<8x128xf32>
    %296 = arith.addf %294, %295 : vector<8x128xf32>
    %c0_150 = arith.constant 0 : index
    %c0_151 = arith.constant 0 : index
    %297 = vector.load %arg7[%c0_150, %c0_151] : memref<8x128xf32, #tpu.memory_space<vmem>>, vector<8x128xf32>
    tpu.vector_store %arg7[%c0_150, %c0_151], %293 {strides = array<i32>} : memref<8x128xf32, #tpu.memory_space<vmem>>, vector<8x128xf32>,
    %c0_152 = arith.constant 0 : index
    %c0_153 = arith.constant 0 : index
    %298 = vector.load %arg8[%c0_152, %c0_153] : memref<8x128xf32, #tpu.memory_space<vmem>>, vector<8x128xf32>
    tpu.vector_store %arg8[%c0_152, %c0_153], %291 {strides = array<i32>} : memref<8x128xf32, #tpu.memory_space<vmem>>, vector<8x128xf32>,
    %c0_154 = arith.constant 0 : index
    %c0_155 = arith.constant 0 : index
    %299 = vector.load %arg9[%c0_154, %c0_155] : memref<8x128xf32, #tpu.memory_space<vmem>>, vector<8x128xf32>
    tpu.vector_store %arg9[%c0_154, %c0_155], %296 {strides = array<i32>} : memref<8x128xf32, #tpu.memory_space<vmem>>, vector<8x128xf32>,
    %300 = arith.index_cast %256 : i32 to index
    %c0_156 = arith.constant 0 : index
    %c0_157 = arith.constant 0 : index
    %301 = vector.load %arg6[%300, %c0_156, %c0_157] : memref<10x8x128xf32, #tpu.memory_space<vmem>>, vector<1x8x128xf32>
    %302 = vector.shape_cast %301 : vector<1x8x128xf32> to vector<8x128xf32>
    %303 = vector.shape_cast %296 : vector<8x128xf32> to vector<1x8x128xf32>
    tpu.vector_store %arg6[%300, %c0_156, %c0_157], %303 {strides = array<i32>} : memref<10x8x128xf32, #tpu.memory_space<vmem>>, vector<1x8x128xf32>,
    %c6_i32 = arith.constant 6 : i32
    %c1_i32_158 = arith.constant 1 : i32
    %304 = arith.muli %c6_i32, %c1_i32_158 : i32
    %c0_i32_159 = arith.constant 0 : i32
    %305 = arith.addi %c0_i32_159, %304 : i32
    %c0_160 = arith.constant 0 : index
    %c0_161 = arith.constant 0 : index
    %306 = vector.load %arg7[%c0_160, %c0_161] : memref<8x128xf32, #tpu.memory_space<vmem>>, vector<8x128xf32>
    %c0_162 = arith.constant 0 : index
    %c0_163 = arith.constant 0 : index
    %307 = vector.load %arg8[%c0_162, %c0_163] : memref<8x128xf32, #tpu.memory_space<vmem>>, vector<8x128xf32>
    %308 = arith.index_cast %305 : i32 to index
    %c0_164 = arith.constant 0 : index
    %c0_165 = arith.constant 0 : index
    %309 = vector.load %arg1[%308, %c0_164, %c0_165] : memref<10x8x128xf32, #tpu.memory_space<vmem>>, vector<1x8x128xf32>
    %310 = vector.shape_cast %309 : vector<1x8x128xf32> to vector<8x128xf32>
    %c8_i32_166 = arith.constant 8 : i32
    %311 = arith.cmpi slt, %305, %c8_i32_166 : i32
    %c0_167 = arith.constant 0 : index
    %c0_168 = arith.constant 0 : index
    %312 = vector.load %arg9[%c0_167, %c0_168] : memref<8x128xf32, #tpu.memory_space<vmem>>, vector<8x128xf32>
    %313 = arith.select %311, %310, %312 : vector<8x128xf32>
    %314 = tpu.concatenate %313, %306 in 1 : vector<8x128xf32>, vector<8x128xf32> -> vector<8x256xf32>
    %cst_169 = arith.constant dense<0.000000e+00> : vector<8x512xf32>
    %315 = tpu.matmul %314, %6, %cst_169 {dimension_numbers = #tpu.dot_dimension_numbers<[1], [0], [0], [1], [0, 0, 1, 1], [], []>} : vector<8x256xf32>, vector<256x512xf32>, vector<8x512xf32> -> vector<8x512xf32>
    %316 = vector.broadcast %7 : vector<1x512xf32> to vector<8x512xf32>
    %317 = arith.addf %315, %316 : vector<8x512xf32>
    %318 = vector.extract_strided_slice %317 {offsets = [0, 0], sizes = [8, 128], strides = [1, 1]} : vector<8x512xf32> to vector<8x128xf32>
    %319 = arith.negf %318 : vector<8x128xf32>
    %320 = math.exp %319 : vector<8x128xf32>
    %cst_170 = arith.constant 1.000000e+00 : f32
    %321 = vector.broadcast %cst_170 : f32 to vector<8x128xf32>
    %322 = arith.addf %321, %320 : vector<8x128xf32>
    %323 = arith.divf %321, %322 : vector<8x128xf32>
    %324 = vector.extract_strided_slice %317 {offsets = [0, 128], sizes = [8, 128], strides = [1, 1]} : vector<8x512xf32> to vector<8x128xf32>
    %325 = arith.negf %324 : vector<8x128xf32>
    %326 = math.exp %325 : vector<8x128xf32>
    %cst_171 = arith.constant 1.000000e+00 : f32
    %327 = vector.broadcast %cst_171 : f32 to vector<8x128xf32>
    %328 = arith.addf %327, %326 : vector<8x128xf32>
    %329 = arith.divf %327, %328 : vector<8x128xf32>
    %330 = vector.extract_strided_slice %317 {offsets = [0, 256], sizes = [8, 128], strides = [1, 1]} : vector<8x512xf32> to vector<8x128xf32>
    %331 = math.tanh %330 : vector<8x128xf32>
    %332 = vector.extract_strided_slice %317 {offsets = [0, 384], sizes = [8, 128], strides = [1, 1]} : vector<8x512xf32> to vector<8x128xf32>
    %333 = arith.negf %332 : vector<8x128xf32>
    %334 = math.exp %333 : vector<8x128xf32>
    %cst_172 = arith.constant 1.000000e+00 : f32
    %335 = vector.broadcast %cst_172 : f32 to vector<8x128xf32>
    %336 = arith.addf %335, %334 : vector<8x128xf32>
    %337 = arith.divf %335, %336 : vector<8x128xf32>
    %338 = arith.mulf %329, %307 : vector<8x128xf32>
    %339 = arith.mulf %323, %331 : vector<8x128xf32>
    %340 = arith.addf %338, %339 : vector<8x128xf32>
    %341 = math.tanh %340 : vector<8x128xf32>
    %342 = arith.mulf %337, %341 : vector<8x128xf32>
    %cst_173 = arith.constant dense<0.000000e+00> : vector<8x128xf32>
    %343 = tpu.matmul %342, %8, %cst_173 {dimension_numbers = #tpu.dot_dimension_numbers<[1], [0], [0], [1], [0, 0, 1, 1], [], []>} : vector<8x128xf32>, vector<128x128xf32>, vector<8x128xf32> -> vector<8x128xf32>
    %344 = vector.broadcast %9 : vector<1x128xf32> to vector<8x128xf32>
    %345 = arith.addf %343, %344 : vector<8x128xf32>
    %c0_174 = arith.constant 0 : index
    %c0_175 = arith.constant 0 : index
    %346 = vector.load %arg7[%c0_174, %c0_175] : memref<8x128xf32, #tpu.memory_space<vmem>>, vector<8x128xf32>
    tpu.vector_store %arg7[%c0_174, %c0_175], %342 {strides = array<i32>} : memref<8x128xf32, #tpu.memory_space<vmem>>, vector<8x128xf32>,
    %c0_176 = arith.constant 0 : index
    %c0_177 = arith.constant 0 : index
    %347 = vector.load %arg8[%c0_176, %c0_177] : memref<8x128xf32, #tpu.memory_space<vmem>>, vector<8x128xf32>
    tpu.vector_store %arg8[%c0_176, %c0_177], %340 {strides = array<i32>} : memref<8x128xf32, #tpu.memory_space<vmem>>, vector<8x128xf32>,
    %c0_178 = arith.constant 0 : index
    %c0_179 = arith.constant 0 : index
    %348 = vector.load %arg9[%c0_178, %c0_179] : memref<8x128xf32, #tpu.memory_space<vmem>>, vector<8x128xf32>
    tpu.vector_store %arg9[%c0_178, %c0_179], %345 {strides = array<i32>} : memref<8x128xf32, #tpu.memory_space<vmem>>, vector<8x128xf32>,
    %349 = arith.index_cast %305 : i32 to index
    %c0_180 = arith.constant 0 : index
    %c0_181 = arith.constant 0 : index
    %350 = vector.load %arg6[%349, %c0_180, %c0_181] : memref<10x8x128xf32, #tpu.memory_space<vmem>>, vector<1x8x128xf32>
    %351 = vector.shape_cast %350 : vector<1x8x128xf32> to vector<8x128xf32>
    %352 = vector.shape_cast %345 : vector<8x128xf32> to vector<1x8x128xf32>
    tpu.vector_store %arg6[%349, %c0_180, %c0_181], %352 {strides = array<i32>} : memref<10x8x128xf32, #tpu.memory_space<vmem>>, vector<1x8x128xf32>,
    %c7_i32 = arith.constant 7 : i32
    %c1_i32_182 = arith.constant 1 : i32
    %353 = arith.muli %c7_i32, %c1_i32_182 : i32
    %c0_i32_183 = arith.constant 0 : i32
    %354 = arith.addi %c0_i32_183, %353 : i32
    %c0_184 = arith.constant 0 : index
    %c0_185 = arith.constant 0 : index
    %355 = vector.load %arg7[%c0_184, %c0_185] : memref<8x128xf32, #tpu.memory_space<vmem>>, vector<8x128xf32>
    %c0_186 = arith.constant 0 : index
    %c0_187 = arith.constant 0 : index
    %356 = vector.load %arg8[%c0_186, %c0_187] : memref<8x128xf32, #tpu.memory_space<vmem>>, vector<8x128xf32>
    %357 = arith.index_cast %354 : i32 to index
    %c0_188 = arith.constant 0 : index
    %c0_189 = arith.constant 0 : index
    %358 = vector.load %arg1[%357, %c0_188, %c0_189] : memref<10x8x128xf32, #tpu.memory_space<vmem>>, vector<1x8x128xf32>
    %359 = vector.shape_cast %358 : vector<1x8x128xf32> to vector<8x128xf32>
    %c8_i32_190 = arith.constant 8 : i32
    %360 = arith.cmpi slt, %354, %c8_i32_190 : i32
    %c0_191 = arith.constant 0 : index
    %c0_192 = arith.constant 0 : index
    %361 = vector.load %arg9[%c0_191, %c0_192] : memref<8x128xf32, #tpu.memory_space<vmem>>, vector<8x128xf32>
    %362 = arith.select %360, %359, %361 : vector<8x128xf32>
    %363 = tpu.concatenate %362, %355 in 1 : vector<8x128xf32>, vector<8x128xf32> -> vector<8x256xf32>
    %cst_193 = arith.constant dense<0.000000e+00> : vector<8x512xf32>
    %364 = tpu.matmul %363, %6, %cst_193 {dimension_numbers = #tpu.dot_dimension_numbers<[1], [0], [0], [1], [0, 0, 1, 1], [], []>} : vector<8x256xf32>, vector<256x512xf32>, vector<8x512xf32> -> vector<8x512xf32>
    %365 = vector.broadcast %7 : vector<1x512xf32> to vector<8x512xf32>
    %366 = arith.addf %364, %365 : vector<8x512xf32>
    %367 = vector.extract_strided_slice %366 {offsets = [0, 0], sizes = [8, 128], strides = [1, 1]} : vector<8x512xf32> to vector<8x128xf32>
    %368 = arith.negf %367 : vector<8x128xf32>
    %369 = math.exp %368 : vector<8x128xf32>
    %cst_194 = arith.constant 1.000000e+00 : f32
    %370 = vector.broadcast %cst_194 : f32 to vector<8x128xf32>
    %371 = arith.addf %370, %369 : vector<8x128xf32>
    %372 = arith.divf %370, %371 : vector<8x128xf32>
    %373 = vector.extract_strided_slice %366 {offsets = [0, 128], sizes = [8, 128], strides = [1, 1]} : vector<8x512xf32> to vector<8x128xf32>
    %374 = arith.negf %373 : vector<8x128xf32>
    %375 = math.exp %374 : vector<8x128xf32>
    %cst_195 = arith.constant 1.000000e+00 : f32
    %376 = vector.broadcast %cst_195 : f32 to vector<8x128xf32>
    %377 = arith.addf %376, %375 : vector<8x128xf32>
    %378 = arith.divf %376, %377 : vector<8x128xf32>
    %379 = vector.extract_strided_slice %366 {offsets = [0, 256], sizes = [8, 128], strides = [1, 1]} : vector<8x512xf32> to vector<8x128xf32>
    %380 = math.tanh %379 : vector<8x128xf32>
    %381 = vector.extract_strided_slice %366 {offsets = [0, 384], sizes = [8, 128], strides = [1, 1]} : vector<8x512xf32> to vector<8x128xf32>
    %382 = arith.negf %381 : vector<8x128xf32>
    %383 = math.exp %382 : vector<8x128xf32>
    %cst_196 = arith.constant 1.000000e+00 : f32
    %384 = vector.broadcast %cst_196 : f32 to vector<8x128xf32>
    %385 = arith.addf %384, %383 : vector<8x128xf32>
    %386 = arith.divf %384, %385 : vector<8x128xf32>
    %387 = arith.mulf %378, %356 : vector<8x128xf32>
    %388 = arith.mulf %372, %380 : vector<8x128xf32>
    %389 = arith.addf %387, %388 : vector<8x128xf32>
    %390 = math.tanh %389 : vector<8x128xf32>
    %391 = arith.mulf %386, %390 : vector<8x128xf32>
    %cst_197 = arith.constant dense<0.000000e+00> : vector<8x128xf32>
    %392 = tpu.matmul %391, %8, %cst_197 {dimension_numbers = #tpu.dot_dimension_numbers<[1], [0], [0], [1], [0, 0, 1, 1], [], []>} : vector<8x128xf32>, vector<128x128xf32>, vector<8x128xf32> -> vector<8x128xf32>
    %393 = vector.broadcast %9 : vector<1x128xf32> to vector<8x128xf32>
    %394 = arith.addf %392, %393 : vector<8x128xf32>
    %c0_198 = arith.constant 0 : index
    %c0_199 = arith.constant 0 : index
    %395 = vector.load %arg7[%c0_198, %c0_199] : memref<8x128xf32, #tpu.memory_space<vmem>>, vector<8x128xf32>
    tpu.vector_store %arg7[%c0_198, %c0_199], %391 {strides = array<i32>} : memref<8x128xf32, #tpu.memory_space<vmem>>, vector<8x128xf32>,
    %c0_200 = arith.constant 0 : index
    %c0_201 = arith.constant 0 : index
    %396 = vector.load %arg8[%c0_200, %c0_201] : memref<8x128xf32, #tpu.memory_space<vmem>>, vector<8x128xf32>
    tpu.vector_store %arg8[%c0_200, %c0_201], %389 {strides = array<i32>} : memref<8x128xf32, #tpu.memory_space<vmem>>, vector<8x128xf32>,
    %c0_202 = arith.constant 0 : index
    %c0_203 = arith.constant 0 : index
    %397 = vector.load %arg9[%c0_202, %c0_203] : memref<8x128xf32, #tpu.memory_space<vmem>>, vector<8x128xf32>
    tpu.vector_store %arg9[%c0_202, %c0_203], %394 {strides = array<i32>} : memref<8x128xf32, #tpu.memory_space<vmem>>, vector<8x128xf32>,
    %398 = arith.index_cast %354 : i32 to index
    %c0_204 = arith.constant 0 : index
    %c0_205 = arith.constant 0 : index
    %399 = vector.load %arg6[%398, %c0_204, %c0_205] : memref<10x8x128xf32, #tpu.memory_space<vmem>>, vector<1x8x128xf32>
    %400 = vector.shape_cast %399 : vector<1x8x128xf32> to vector<8x128xf32>
    %401 = vector.shape_cast %394 : vector<8x128xf32> to vector<1x8x128xf32>
    tpu.vector_store %arg6[%398, %c0_204, %c0_205], %401 {strides = array<i32>} : memref<10x8x128xf32, #tpu.memory_space<vmem>>, vector<1x8x128xf32>,
    %c8_i32_206 = arith.constant 8 : i32
    %c1_i32_207 = arith.constant 1 : i32
    %402 = arith.muli %c8_i32_206, %c1_i32_207 : i32
    %c0_i32_208 = arith.constant 0 : i32
    %403 = arith.addi %c0_i32_208, %402 : i32
    %c0_209 = arith.constant 0 : index
    %c0_210 = arith.constant 0 : index
    %404 = vector.load %arg7[%c0_209, %c0_210] : memref<8x128xf32, #tpu.memory_space<vmem>>, vector<8x128xf32>
    %c0_211 = arith.constant 0 : index
    %c0_212 = arith.constant 0 : index
    %405 = vector.load %arg8[%c0_211, %c0_212] : memref<8x128xf32, #tpu.memory_space<vmem>>, vector<8x128xf32>
    %406 = arith.index_cast %403 : i32 to index
    %c0_213 = arith.constant 0 : index
    %c0_214 = arith.constant 0 : index
    %407 = vector.load %arg1[%406, %c0_213, %c0_214] : memref<10x8x128xf32, #tpu.memory_space<vmem>>, vector<1x8x128xf32>
    %408 = vector.shape_cast %407 : vector<1x8x128xf32> to vector<8x128xf32>
    %c8_i32_215 = arith.constant 8 : i32
    %409 = arith.cmpi slt, %403, %c8_i32_215 : i32
    %c0_216 = arith.constant 0 : index
    %c0_217 = arith.constant 0 : index
    %410 = vector.load %arg9[%c0_216, %c0_217] : memref<8x128xf32, #tpu.memory_space<vmem>>, vector<8x128xf32>
    %411 = arith.select %409, %408, %410 : vector<8x128xf32>
    %412 = tpu.concatenate %411, %404 in 1 : vector<8x128xf32>, vector<8x128xf32> -> vector<8x256xf32>
    %cst_218 = arith.constant dense<0.000000e+00> : vector<8x512xf32>
    %413 = tpu.matmul %412, %6, %cst_218 {dimension_numbers = #tpu.dot_dimension_numbers<[1], [0], [0], [1], [0, 0, 1, 1], [], []>} : vector<8x256xf32>, vector<256x512xf32>, vector<8x512xf32> -> vector<8x512xf32>
    %414 = vector.broadcast %7 : vector<1x512xf32> to vector<8x512xf32>
    %415 = arith.addf %413, %414 : vector<8x512xf32>
    %416 = vector.extract_strided_slice %415 {offsets = [0, 0], sizes = [8, 128], strides = [1, 1]} : vector<8x512xf32> to vector<8x128xf32>
    %417 = arith.negf %416 : vector<8x128xf32>
    %418 = math.exp %417 : vector<8x128xf32>
    %cst_219 = arith.constant 1.000000e+00 : f32
    %419 = vector.broadcast %cst_219 : f32 to vector<8x128xf32>
    %420 = arith.addf %419, %418 : vector<8x128xf32>
    %421 = arith.divf %419, %420 : vector<8x128xf32>
    %422 = vector.extract_strided_slice %415 {offsets = [0, 128], sizes = [8, 128], strides = [1, 1]} : vector<8x512xf32> to vector<8x128xf32>
    %423 = arith.negf %422 : vector<8x128xf32>
    %424 = math.exp %423 : vector<8x128xf32>
    %cst_220 = arith.constant 1.000000e+00 : f32
    %425 = vector.broadcast %cst_220 : f32 to vector<8x128xf32>
    %426 = arith.addf %425, %424 : vector<8x128xf32>
    %427 = arith.divf %425, %426 : vector<8x128xf32>
    %428 = vector.extract_strided_slice %415 {offsets = [0, 256], sizes = [8, 128], strides = [1, 1]} : vector<8x512xf32> to vector<8x128xf32>
    %429 = math.tanh %428 : vector<8x128xf32>
    %430 = vector.extract_strided_slice %415 {offsets = [0, 384], sizes = [8, 128], strides = [1, 1]} : vector<8x512xf32> to vector<8x128xf32>
    %431 = arith.negf %430 : vector<8x128xf32>
    %432 = math.exp %431 : vector<8x128xf32>
    %cst_221 = arith.constant 1.000000e+00 : f32
    %433 = vector.broadcast %cst_221 : f32 to vector<8x128xf32>
    %434 = arith.addf %433, %432 : vector<8x128xf32>
    %435 = arith.divf %433, %434 : vector<8x128xf32>
    %436 = arith.mulf %427, %405 : vector<8x128xf32>
    %437 = arith.mulf %421, %429 : vector<8x128xf32>
    %438 = arith.addf %436, %437 : vector<8x128xf32>
    %439 = math.tanh %438 : vector<8x128xf32>
    %440 = arith.mulf %435, %439 : vector<8x128xf32>
    %cst_222 = arith.constant dense<0.000000e+00> : vector<8x128xf32>
    %441 = tpu.matmul %440, %8, %cst_222 {dimension_numbers = #tpu.dot_dimension_numbers<[1], [0], [0], [1], [0, 0, 1, 1], [], []>} : vector<8x128xf32>, vector<128x128xf32>, vector<8x128xf32> -> vector<8x128xf32>
    %442 = vector.broadcast %9 : vector<1x128xf32> to vector<8x128xf32>
    %443 = arith.addf %441, %442 : vector<8x128xf32>
    %c0_223 = arith.constant 0 : index
    %c0_224 = arith.constant 0 : index
    %444 = vector.load %arg7[%c0_223, %c0_224] : memref<8x128xf32, #tpu.memory_space<vmem>>, vector<8x128xf32>
    tpu.vector_store %arg7[%c0_223, %c0_224], %440 {strides = array<i32>} : memref<8x128xf32, #tpu.memory_space<vmem>>, vector<8x128xf32>,
    %c0_225 = arith.constant 0 : index
    %c0_226 = arith.constant 0 : index
    %445 = vector.load %arg8[%c0_225, %c0_226] : memref<8x128xf32, #tpu.memory_space<vmem>>, vector<8x128xf32>
    tpu.vector_store %arg8[%c0_225, %c0_226], %438 {strides = array<i32>} : memref<8x128xf32, #tpu.memory_space<vmem>>, vector<8x128xf32>,
    %c0_227 = arith.constant 0 : index
    %c0_228 = arith.constant 0 : index
    %446 = vector.load %arg9[%c0_227, %c0_228] : memref<8x128xf32, #tpu.memory_space<vmem>>, vector<8x128xf32>
    tpu.vector_store %arg9[%c0_227, %c0_228], %443 {strides = array<i32>} : memref<8x128xf32, #tpu.memory_space<vmem>>, vector<8x128xf32>,
    %447 = arith.index_cast %403 : i32 to index
    %c0_229 = arith.constant 0 : index
    %c0_230 = arith.constant 0 : index
    %448 = vector.load %arg6[%447, %c0_229, %c0_230] : memref<10x8x128xf32, #tpu.memory_space<vmem>>, vector<1x8x128xf32>
    %449 = vector.shape_cast %448 : vector<1x8x128xf32> to vector<8x128xf32>
    %450 = vector.shape_cast %443 : vector<8x128xf32> to vector<1x8x128xf32>
    tpu.vector_store %arg6[%447, %c0_229, %c0_230], %450 {strides = array<i32>} : memref<10x8x128xf32, #tpu.memory_space<vmem>>, vector<1x8x128xf32>,
    %c9_i32 = arith.constant 9 : i32
    %c1_i32_231 = arith.constant 1 : i32
    %451 = arith.muli %c9_i32, %c1_i32_231 : i32
    %c0_i32_232 = arith.constant 0 : i32
    %452 = arith.addi %c0_i32_232, %451 : i32
    %c0_233 = arith.constant 0 : index
    %c0_234 = arith.constant 0 : index
    %453 = vector.load %arg7[%c0_233, %c0_234] : memref<8x128xf32, #tpu.memory_space<vmem>>, vector<8x128xf32>
    %c0_235 = arith.constant 0 : index
    %c0_236 = arith.constant 0 : index
    %454 = vector.load %arg8[%c0_235, %c0_236] : memref<8x128xf32, #tpu.memory_space<vmem>>, vector<8x128xf32>
    %455 = arith.index_cast %452 : i32 to index
    %c0_237 = arith.constant 0 : index
    %c0_238 = arith.constant 0 : index
    %456 = vector.load %arg1[%455, %c0_237, %c0_238] : memref<10x8x128xf32, #tpu.memory_space<vmem>>, vector<1x8x128xf32>
    %457 = vector.shape_cast %456 : vector<1x8x128xf32> to vector<8x128xf32>
    %c8_i32_239 = arith.constant 8 : i32
    %458 = arith.cmpi slt, %452, %c8_i32_239 : i32
    %c0_240 = arith.constant 0 : index
    %c0_241 = arith.constant 0 : index
    %459 = vector.load %arg9[%c0_240, %c0_241] : memref<8x128xf32, #tpu.memory_space<vmem>>, vector<8x128xf32>
    %460 = arith.select %458, %457, %459 : vector<8x128xf32>
    %461 = tpu.concatenate %460, %453 in 1 : vector<8x128xf32>, vector<8x128xf32> -> vector<8x256xf32>
    %cst_242 = arith.constant dense<0.000000e+00> : vector<8x512xf32>
    %462 = tpu.matmul %461, %6, %cst_242 {dimension_numbers = #tpu.dot_dimension_numbers<[1], [0], [0], [1], [0, 0, 1, 1], [], []>} : vector<8x256xf32>, vector<256x512xf32>, vector<8x512xf32> -> vector<8x512xf32>
    %463 = vector.broadcast %7 : vector<1x512xf32> to vector<8x512xf32>
    %464 = arith.addf %462, %463 : vector<8x512xf32>
    %465 = vector.extract_strided_slice %464 {offsets = [0, 0], sizes = [8, 128], strides = [1, 1]} : vector<8x512xf32> to vector<8x128xf32>
    %466 = arith.negf %465 : vector<8x128xf32>
    %467 = math.exp %466 : vector<8x128xf32>
    %cst_243 = arith.constant 1.000000e+00 : f32
    %468 = vector.broadcast %cst_243 : f32 to vector<8x128xf32>
    %469 = arith.addf %468, %467 : vector<8x128xf32>
    %470 = arith.divf %468, %469 : vector<8x128xf32>
    %471 = vector.extract_strided_slice %464 {offsets = [0, 128], sizes = [8, 128], strides = [1, 1]} : vector<8x512xf32> to vector<8x128xf32>
    %472 = arith.negf %471 : vector<8x128xf32>
    %473 = math.exp %472 : vector<8x128xf32>
    %cst_244 = arith.constant 1.000000e+00 : f32
    %474 = vector.broadcast %cst_244 : f32 to vector<8x128xf32>
    %475 = arith.addf %474, %473 : vector<8x128xf32>
    %476 = arith.divf %474, %475 : vector<8x128xf32>
    %477 = vector.extract_strided_slice %464 {offsets = [0, 256], sizes = [8, 128], strides = [1, 1]} : vector<8x512xf32> to vector<8x128xf32>
    %478 = math.tanh %477 : vector<8x128xf32>
    %479 = vector.extract_strided_slice %464 {offsets = [0, 384], sizes = [8, 128], strides = [1, 1]} : vector<8x512xf32> to vector<8x128xf32>
    %480 = arith.negf %479 : vector<8x128xf32>
    %481 = math.exp %480 : vector<8x128xf32>
    %cst_245 = arith.constant 1.000000e+00 : f32
    %482 = vector.broadcast %cst_245 : f32 to vector<8x128xf32>
    %483 = arith.addf %482, %481 : vector<8x128xf32>
    %484 = arith.divf %482, %483 : vector<8x128xf32>
    %485 = arith.mulf %476, %454 : vector<8x128xf32>
    %486 = arith.mulf %470, %478 : vector<8x128xf32>
    %487 = arith.addf %485, %486 : vector<8x128xf32>
    %488 = math.tanh %487 : vector<8x128xf32>
    %489 = arith.mulf %484, %488 : vector<8x128xf32>
    %cst_246 = arith.constant dense<0.000000e+00> : vector<8x128xf32>
    %490 = tpu.matmul %489, %8, %cst_246 {dimension_numbers = #tpu.dot_dimension_numbers<[1], [0], [0], [1], [0, 0, 1, 1], [], []>} : vector<8x128xf32>, vector<128x128xf32>, vector<8x128xf32> -> vector<8x128xf32>
    %491 = vector.broadcast %9 : vector<1x128xf32> to vector<8x128xf32>
    %492 = arith.addf %490, %491 : vector<8x128xf32>
    %c0_247 = arith.constant 0 : index
    %c0_248 = arith.constant 0 : index
    %493 = vector.load %arg7[%c0_247, %c0_248] : memref<8x128xf32, #tpu.memory_space<vmem>>, vector<8x128xf32>
    tpu.vector_store %arg7[%c0_247, %c0_248], %489 {strides = array<i32>} : memref<8x128xf32, #tpu.memory_space<vmem>>, vector<8x128xf32>,
    %c0_249 = arith.constant 0 : index
    %c0_250 = arith.constant 0 : index
    %494 = vector.load %arg8[%c0_249, %c0_250] : memref<8x128xf32, #tpu.memory_space<vmem>>, vector<8x128xf32>
    tpu.vector_store %arg8[%c0_249, %c0_250], %487 {strides = array<i32>} : memref<8x128xf32, #tpu.memory_space<vmem>>, vector<8x128xf32>,
    %c0_251 = arith.constant 0 : index
    %c0_252 = arith.constant 0 : index
    %495 = vector.load %arg9[%c0_251, %c0_252] : memref<8x128xf32, #tpu.memory_space<vmem>>, vector<8x128xf32>
    tpu.vector_store %arg9[%c0_251, %c0_252], %492 {strides = array<i32>} : memref<8x128xf32, #tpu.memory_space<vmem>>, vector<8x128xf32>,
    %496 = arith.index_cast %452 : i32 to index
    %c0_253 = arith.constant 0 : index
    %c0_254 = arith.constant 0 : index
    %497 = vector.load %arg6[%496, %c0_253, %c0_254] : memref<10x8x128xf32, #tpu.memory_space<vmem>>, vector<1x8x128xf32>
    %498 = vector.shape_cast %497 : vector<1x8x128xf32> to vector<8x128xf32>
    %499 = vector.shape_cast %492 : vector<8x128xf32> to vector<1x8x128xf32>
    tpu.vector_store %arg6[%496, %c0_253, %c0_254], %499 {strides = array<i32>} : memref<10x8x128xf32, #tpu.memory_space<vmem>>, vector<1x8x128xf32>,
    %c10_i32 = arith.constant 10 : i32
    return
  }
  func.func @transform_0(%arg0: i32) -> (i32, i32, i32) {
    %c0_i32 = arith.constant 0 : i32
    %c0_i32_0 = arith.constant 0 : i32
    %c0_i32_1 = arith.constant 0 : i32
    %c0_i32_2 = arith.constant 0 : i32
    return %c0_i32, %c0_i32_0, %c0_i32_1 : i32, i32, i32
  }
  func.func @transform_1(%arg0: i32) -> (i32, i32) {
    %c0_i32 = arith.constant 0 : i32
    %c0_i32_0 = arith.constant 0 : i32
    %c0_i32_1 = arith.constant 0 : i32
    return %c0_i32, %c0_i32_0 : i32, i32
  }
  func.func @transform_2(%arg0: i32) -> (i32, i32) {
    %c0_i32 = arith.constant 0 : i32
    %c0_i32_0 = arith.constant 0 : i32
    %c0_i32_1 = arith.constant 0 : i32
    return %c0_i32, %c0_i32_0 : i32, i32
  }
  func.func @transform_3(%arg0: i32) -> (i32, i32) {
    %c0_i32 = arith.constant 0 : i32
    %c0_i32_0 = arith.constant 0 : i32
    %c0_i32_1 = arith.constant 0 : i32
    return %c0_i32, %c0_i32_0 : i32, i32
  }
  func.func @transform_4(%arg0: i32) -> (i32, i32) {
    %c0_i32 = arith.constant 0 : i32
    %c0_i32_0 = arith.constant 0 : i32
    %c0_i32_1 = arith.constant 0 : i32
    return %c0_i32, %c0_i32_0 : i32, i32
  }
  func.func @transform_5(%arg0: i32) -> (i32, i32, i32) {
    %c0_i32 = arith.constant 0 : i32
    %c0_i32_0 = arith.constant 0 : i32
    %c0_i32_1 = arith.constant 0 : i32
    %c0_i32_2 = arith.constant 0 : i32
    return %c0_i32, %c0_i32_0, %c0_i32_1 : i32, i32, i32
  }
}

</mosaic_0001>

<llo_original>
// kernel: tpu_custom_call.1
$region0: #{tpu_custom_call.1}
  #allocation0 [shape = 'u32[]', space=smem, size = 0x4, offset = 0x4, fixed_abs, tag = 'smem constant byte address 0x4 - core index']
  #allocation1 [shape = 'u32[72,128]{1,0:T(1,128)}', space=vmem, size = 0x9000, scoped, tag = 'internal scratch']
  #allocation2 [shape = 'f32[8,128]{1,0:T(8,128)}', space=vmem, size = 0x1000, scoped, tag = 'scratch operand']
  #allocation3 [shape = 'f32[8,128]{1,0:T(8,128)}', space=vmem, size = 0x1000, scoped, tag = 'scratch operand']
  #allocation4 [shape = 'f32[8,128]{1,0:T(8,128)}', space=vmem, size = 0x1000, scoped, tag = 'scratch operand']
  %s0 = inlined_call_operand.hbm [shape: f32[10,8,128], index: 0, kind: input, shape index: {}]
  %s1 = inlined_call_operand.hbm [shape: f32[256,512], index: 1, kind: input, shape index: {}]
  %s2 = inlined_call_operand.hbm [shape: f32[1,512], index: 2, kind: input, shape index: {}]
  %s3 = inlined_call_operand.hbm [shape: f32[128,128], index: 3, kind: input, shape index: {}]
  %s4 = inlined_call_operand.vmem [shape: f32[1,128], index: 4, kind: input, shape index: {}]
  %s5 = inlined_call_operand.hbm [shape: f32[10,8,128], index: 5, kind: output, shape index: {}]
  %s6 = sld [smem:[#allocation0]]
  $region46: #{tpu_custom_call.1} parent=0
    _
  %s8 = ssub.s32 1, %s6
  %s9 = scalar_select 0, %s8, %s6
  $region1: #{tpu_custom_call.1} parent=0
    #allocation5 [shape = 'u8[40960]{0}', space=vmem, size = 0xa000, scoped, tag = 'input window, operand 0, single buffered']
    #allocation6 [shape = 's32[1]{0}', space=sflag, size = 0x4, scoped, tag = 'scoped memory for tpu_custom_call.1']
    #allocation7 [shape = 's32[1]{0}', space=sflag, size = 0x4, scoped, tag = 'scoped memory for tpu_custom_call.1']
    #allocation8 [shape = 'u8[524288]{0}', space=vmem, size = 0x80000, scoped, tag = 'input window, operand 1, single buffered']
    #allocation9 [shape = 's32[1]{0}', space=sflag, size = 0x4, scoped, tag = 'scoped memory for tpu_custom_call.1']
    #allocation10 [shape = 'u8[2048]{0}', space=vmem, size = 0x800, scoped, tag = 'input window, operand 2, single buffered']
    #allocation11 [shape = 'u8[65536]{0}', space=vmem, size = 0x10000, scoped, tag = 'input window, operand 3, single buffered']
    #allocation12 [shape = 's32[1]{0}', space=sflag, size = 0x4, scoped, tag = 'scoped memory for tpu_custom_call.1']
    #allocation13 [shape = 'u8[40960]{0}', space=vmem, size = 0xa000, scoped, tag = 'output window, operand 0, single buffered']
    %10 = vsyncpa [#allocation6], 0
    %11 = vsyncpa [#allocation9], 0
    %12 = vsyncpa [#allocation12], 0
    %13 = vsyncpa [#allocation7], 0
    // Predicated region
    $region2: #{tpu_custom_call.1} parent=1 // pred_check
      _
    $region3: #{tpu_custom_call.1} parent=1 // pred_check_branch
      %15 = sbr.rel (0) target = $region5
    $region4: #{tpu_custom_call.1} parent=1 // pred_region
      %17 = vsyncadd [#allocation6], 0
      %s18 = sshll.u32 %s0, 4
      %s19 = int_to_ptr.hbm [resolvable:$true] %s18
      %s20 = sshll.u32 [#allocation5], 4
      %s21 = int_to_ptr.vmem [resolvable:$true] %s20
      %26 = dma.hbm_to_vmem [thread:$0]  %s19, 1280, %s21, [#allocation6], 128, 128, 8
    $region5: #{tpu_custom_call.1} parent=1 // pred_fallthru
      _
    // Predicated region
    $region6: #{tpu_custom_call.1} parent=1 // pred_check
      _
    $region7: #{tpu_custom_call.1} parent=1 // pred_check_branch
      %28 = sbr.rel (0) target = $region9
    $region8: #{tpu_custom_call.1} parent=1 // pred_region
      %30 = vsyncadd [#allocation9], 0
      %s31 = sshll.u32 %s1, 4
      %s32 = int_to_ptr.hbm [resolvable:$true] %s31
      %s33 = sshll.u32 [#allocation8], 4
      %s34 = int_to_ptr.vmem [resolvable:$true] %s33
      %39 = dma.hbm_to_vmem [thread:$0]  %s32, 16384, %s34, [#allocation9], 512, 512, 32
    $region9: #{tpu_custom_call.1} parent=1 // pred_fallthru
      _
    // Predicated region
    $region10: #{tpu_custom_call.1} parent=1 // pred_check
      _
    $region11: #{tpu_custom_call.1} parent=1 // pred_check_branch
      %41 = sbr.rel (0) target = $region13
    $region12: #{tpu_custom_call.1} parent=1 // pred_region
      %43 = vsyncadd [#allocation9], 0
      %s45 = sshll.u32 %s2, 4
      %s46 = int_to_ptr.hbm [resolvable:$true] %s45
      %s47 = sshll.u32 [#allocation10], 4
      %s48 = int_to_ptr.vmem [resolvable:$true] %s47
      %50 = dma.hbm_to_vmem [thread:$0]  %s46, 64, %s48, [#allocation9]
    $region13: #{tpu_custom_call.1} parent=1 // pred_fallthru
      _
    // Predicated region
    $region14: #{tpu_custom_call.1} parent=1 // pred_check
      _
    $region15: #{tpu_custom_call.1} parent=1 // pred_check_branch
      %52 = sbr.rel (0) target = $region17
    $region16: #{tpu_custom_call.1} parent=1 // pred_region
      %54 = vsyncadd [#allocation12], 0
      %s55 = sshll.u32 %s3, 4
      %s56 = int_to_ptr.hbm [resolvable:$true] %s55
      %s57 = sshll.u32 [#allocation11], 4
      %s58 = int_to_ptr.vmem [resolvable:$true] %s57
      %63 = dma.hbm_to_vmem [thread:$0]  %s56, 2048, %s58, [#allocation12], 128, 128, 8
    $region17: #{tpu_custom_call.1} parent=1 // pred_fallthru
      _
    // Predicated region
    $region18: #{tpu_custom_call.1} parent=1 // pred_check
      _
    $region19: #{tpu_custom_call.1} parent=1 // pred_check_branch
      %65 = sbr.rel (0) target = $region21
    $region20: #{tpu_custom_call.1} parent=1 // pred_region
      _
    $region21: #{tpu_custom_call.1} parent=1 // pred_fallthru
      _
    // Predicated region
    $region22: #{tpu_custom_call.1} parent=1 // pred_check
      _
    $region23: #{tpu_custom_call.1} parent=1 // pred_check_branch
      %67 = sbr.rel (0) target = $region25
    $region24: #{tpu_custom_call.1} parent=1 // pred_region
      %69 = dma.done [#allocation6], 1280
    $region25: #{tpu_custom_call.1} parent=1 // pred_fallthru
      _
    // Predicated region
    $region26: #{tpu_custom_call.1} parent=1 // pred_check
      _
    $region27: #{tpu_custom_call.1} parent=1 // pred_check_branch
      %71 = sbr.rel (0) target = $region29
    $region28: #{tpu_custom_call.1} parent=1 // pred_region
      %73 = dma.done [#allocation9], 16384
    $region29: #{tpu_custom_call.1} parent=1 // pred_fallthru
      _
    // Predicated region
    $region30: #{tpu_custom_call.1} parent=1 // pred_check
      _
    $region31: #{tpu_custom_call.1} parent=1 // pred_check_branch
      %75 = sbr.rel (0) target = $region33
    $region32: #{tpu_custom_call.1} parent=1 // pred_region
      %77 = dma.done [#allocation9], 64
    $region33: #{tpu_custom_call.1} parent=1 // pred_fallthru
      _
    // Predicated region
    $region34: #{tpu_custom_call.1} parent=1 // pred_check
      _
    $region35: #{tpu_custom_call.1} parent=1 // pred_check_branch
      %79 = sbr.rel (0) target = $region37
    $region36: #{tpu_custom_call.1} parent=1 // pred_region
      %81 = dma.done [#allocation12], 2048
    $region37: #{tpu_custom_call.1} parent=1 // pred_fallthru
      _
    %82 = vst [vmem:[#allocation2] sm:$0xff] 0.0
    %83 = vst [vmem:[#allocation3] sm:$0xff] 0.0
    %84 = vst [vmem:[#allocation4] sm:$0xff] 0.0
    %v85 = vld [vmem:[#allocation8] sm:$0xff]
    %v86 = vld [vmem:[#allocation8 + $0x8] sm:$0xff]
    %v87 = vld [vmem:[#allocation8 + $0x10] sm:$0xff]
    %v88 = vld [vmem:[#allocation8 + $0x18] sm:$0xff]
    %v89 = vld [vmem:[#allocation8 + $0x20] sm:$0xff]
    %v90 = vld [vmem:[#allocation8 + $0x28] sm:$0xff]
    %v91 = vld [vmem:[#allocation8 + $0x30] sm:$0xff]
    %v92 = vld [vmem:[#allocation8 + $0x38] sm:$0xff]
    %v93 = vld [vmem:[#allocation8 + $0x40] sm:$0xff]
    %v94 = vld [vmem:[#allocation8 + $0x48] sm:$0xff]
    %v95 = vld [vmem:[#allocation8 + $0x50] sm:$0xff]
    %v96 = vld [vmem:[#allocation8 + $0x58] sm:$0xff]
    %v97 = vld [vmem:[#allocation8 + $0x60] sm:$0xff]
    %v98 = vld [vmem:[#allocation8 + $0x68] sm:$0xff]
    %v99 = vld [vmem:[#allocation8 + $0x70] sm:$0xff]
    %v100 = vld [vmem:[#allocation8 + $0x78] sm:$0xff]
    %v101 = vld [vmem:[#allocation8 + $0x80] sm:$0xff]
    %v102 = vld [vmem:[#allocation8 + $0x88] sm:$0xff]
    %v103 = vld [vmem:[#allocation8 + $0x90] sm:$0xff]
    %v104 = vld [vmem:[#allocation8 + $0x98] sm:$0xff]
    %v105 = vld [vmem:[#allocation8 + $0xa0] sm:$0xff]
    %v106 = vld [vmem:[#allocation8 + $0xa8] sm:$0xff]
    %v107 = vld [vmem:[#allocation8 + $0xb0] sm:$0xff]
    %v108 = vld [vmem:[#allocation8 + $0xb8] sm:$0xff]
    %v109 = vld [vmem:[#allocation8 + $0xc0] sm:$0xff]
    %v110 = vld [vmem:[#allocation8 + $0xc8] sm:$0xff]
    %v111 = vld [vmem:[#allocation8 + $0xd0] sm:$0xff]
    %v112 = vld [vmem:[#allocation8 + $0xd8] sm:$0xff]
    %v113 = vld [vmem:[#allocation8 + $0xe0] sm:$0xff]
    %v114 = vld [vmem:[#allocation8 + $0xe8] sm:$0xff]
    %v115 = vld [vmem:[#allocation8 + $0xf0] sm:$0xff]
    %v116 = vld [vmem:[#allocation8 + $0xf8] sm:$0xff]
    %v117 = vld [vmem:[#allocation8 + $0x100] sm:$0xff]
    %v118 = vld [vmem:[#allocation8 + $0x108] sm:$0xff]
    %v119 = vld [vmem:[#allocation8 + $0x110] sm:$0xff]
    %v120 = vld [vmem:[#allocation8 + $0x118] sm:$0xff]
    %v121 = vld [vmem:[#allocation8 + $0x120] sm:$0xff]
    %v122 = vld [vmem:[#allocation8 + $0x128] sm:$0xff]
    %v123 = vld [vmem:[#allocation8 + $0x130] sm:$0xff]
    %v124 = vld [vmem:[#allocation8 + $0x138] sm:$0xff]
    %v125 = vld [vmem:[#allocation8 + $0x140] sm:$0xff]
    %v126 = vld [vmem:[#allocation8 + $0x148] sm:$0xff]
    %v127 = vld [vmem:[#allocation8 + $0x150] sm:$0xff]
    %v128 = vld [vmem:[#allocation8 + $0x158] sm:$0xff]
    %v129 = vld [vmem:[#allocation8 + $0x160] sm:$0xff]
    %v130 = vld [vmem:[#allocation8 + $0x168] sm:$0xff]
    %v131 = vld [vmem:[#allocation8 + $0x170] sm:$0xff]
    %v132 = vld [vmem:[#allocation8 + $0x178] sm:$0xff]
    %v133 = vld [vmem:[#allocation8 + $0x180] sm:$0xff]
    %v134 = vld [vmem:[#allocation8 + $0x188] sm:$0xff]
    %v135 = vld [vmem:[#allocation8 + $0x190] sm:$0xff]
    %v136 = vld [vmem:[#allocation8 + $0x198] sm:$0xff]
    %v137 = vld [vmem:[#allocation8 + $0x1a0] sm:$0xff]
    %v138 = vld [vmem:[#allocation8 + $0x1a8] sm:$0xff]
    %v139 = vld [vmem:[#allocation8 + $0x1b0] sm:$0xff]
    %v140 = vld [vmem:[#allocation8 + $0x1b8] sm:$0xff]
    %v141 = vld [vmem:[#allocation8 + $0x1c0] sm:$0xff]
    %v142 = vld [vmem:[#allocation8 + $0x1c8] sm:$0xff]
    %v143 = vld [vmem:[#allocation8 + $0x1d0] sm:$0xff]
    %v144 = vld [vmem:[#allocation8 + $0x1d8] sm:$0xff]
    %v145 = vld [vmem:[#allocation8 + $0x1e0] sm:$0xff]
    %v146 = vld [vmem:[#allocation8 + $0x1e8] sm:$0xff]
    %v147 = vld [vmem:[#allocation8 + $0x1f0] sm:$0xff]
    %v148 = vld [vmem:[#allocation8 + $0x1f8] sm:$0xff]
    %v149 = vld [vmem:[#allocation8 + $0x200] sm:$0xff]
    %v150 = vld [vmem:[#allocation8 + $0x208] sm:$0xff]
    %v151 = vld [vmem:[#allocation8 + $0x210] sm:$0xff]
    %v152 = vld [vmem:[#allocation8 + $0x218] sm:$0xff]
    %v153 = vld [vmem:[#allocation8 + $0x220] sm:$0xff]
    %v154 = vld [vmem:[#allocation8 + $0x228] sm:$0xff]
    %v155 = vld [vmem:[#allocation8 + $0x230] sm:$0xff]
    %v156 = vld [vmem:[#allocation8 + $0x238] sm:$0xff]
    %v157 = vld [vmem:[#allocation8 + $0x240] sm:$0xff]
    %v158 = vld [vmem:[#allocation8 + $0x248] sm:$0xff]
    %v159 = vld [vmem:[#allocation8 + $0x250] sm:$0xff]
    %v160 = vld [vmem:[#allocation8 + $0x258] sm:$0xff]
    %v161 = vld [vmem:[#allocation8 + $0x260] sm:$0xff]
    %v162 = vld [vmem:[#allocation8 + $0x268] sm:$0xff]
    %v163 = vld [vmem:[#allocation8 + $0x270] sm:$0xff]
    %v164 = vld [vmem:[#allocation8 + $0x278] sm:$0xff]
    %v165 = vld [vmem:[#allocation8 + $0x280] sm:$0xff]
    %v166 = vld [vmem:[#allocation8 + $0x288] sm:$0xff]
    %v167 = vld [vmem:[#allocation8 + $0x290] sm:$0xff]
    %v168 = vld [vmem:[#allocation8 + $0x298] sm:$0xff]
    %v169 = vld [vmem:[#allocation8 + $0x2a0] sm:$0xff]
    %v170 = vld [vmem:[#allocation8 + $0x2a8] sm:$0xff]
    %v171 = vld [vmem:[#allocation8 + $0x2b0] sm:$0xff]
    %v172 = vld [vmem:[#allocation8 + $0x2b8] sm:$0xff]
    %v173 = vld [vmem:[#allocation8 + $0x2c0] sm:$0xff]
    %v174 = vld [vmem:[#allocation8 + $0x2c8] sm:$0xff]
    %v175 = vld [vmem:[#allocation8 + $0x2d0] sm:$0xff]
    %v176 = vld [vmem:[#allocation8 + $0x2d8] sm:$0xff]
    %v177 = vld [vmem:[#allocation8 + $0x2e0] sm:$0xff]
    %v178 = vld [vmem:[#allocation8 + $0x2e8] sm:$0xff]
    %v179 = vld [vmem:[#allocation8 + $0x2f0] sm:$0xff]
    %v180 = vld [vmem:[#allocation8 + $0x2f8] sm:$0xff]
    %v181 = vld [vmem:[#allocation8 + $0x300] sm:$0xff]
    %v182 = vld [vmem:[#allocation8 + $0x308] sm:$0xff]
    %v183 = vld [vmem:[#allocation8 + $0x310] sm:$0xff]
    %v184 = vld [vmem:[#allocation8 + $0x318] sm:$0xff]
    %v185 = vld [vmem:[#allocation8 + $0x320] sm:$0xff]
    %v186 = vld [vmem:[#allocation8 + $0x328] sm:$0xff]
    %v187 = vld [vmem:[#allocation8 + $0x330] sm:$0xff]
    %v188 = vld [vmem:[#allocation8 + $0x338] sm:$0xff]
    %v189 = vld [vmem:[#allocation8 + $0x340] sm:$0xff]
    %v190 = vld [vmem:[#allocation8 + $0x348] sm:$0xff]
    %v191 = vld [vmem:[#allocation8 + $0x350] sm:$0xff]
    %v192 = vld [vmem:[#allocation8 + $0x358] sm:$0xff]
    %v193 = vld [vmem:[#allocation8 + $0x360] sm:$0xff]
    %v194 = vld [vmem:[#allocation8 + $0x368] sm:$0xff]
    %v195 = vld [vmem:[#allocation8 + $0x370] sm:$0xff]
    %v196 = vld [vmem:[#allocation8 + $0x378] sm:$0xff]
    %v197 = vld [vmem:[#allocation8 + $0x380] sm:$0xff]
    %v198 = vld [vmem:[#allocation8 + $0x388] sm:$0xff]
    %v199 = vld [vmem:[#allocation8 + $0x390] sm:$0xff]
    %v200 = vld [vmem:[#allocation8 + $0x398] sm:$0xff]
    %v201 = vld [vmem:[#allocation8 + $0x3a0] sm:$0xff]
    %v202 = vld [vmem:[#allocation8 + $0x3a8] sm:$0xff]
    %v203 = vld [vmem:[#allocation8 + $0x3b0] sm:$0xff]
    %v204 = vld [vmem:[#allocation8 + $0x3b8] sm:$0xff]
    %v205 = vld [vmem:[#allocation8 + $0x3c0] sm:$0xff]
    %v206 = vld [vmem:[#allocation8 + $0x3c8] sm:$0xff]
    %v207 = vld [vmem:[#allocation8 + $0x3d0] sm:$0xff]
    %v208 = vld [vmem:[#allocation8 + $0x3d8] sm:$0xff]
    %v209 = vld [vmem:[#allocation8 + $0x3e0] sm:$0xff]
    %v210 = vld [vmem:[#allocation8 + $0x3e8] sm:$0xff]
    %v211 = vld [vmem:[#allocation8 + $0x3f0] sm:$0xff]
    %v212 = vld [vmem:[#allocation8 + $0x3f8] sm:$0xff]
    %v213 = vld [vmem:[#allocation10] sm:$0xf]
    %v214 = vld [vmem:[#allocation11] sm:$0xff]
    %v215 = vld [vmem:[#allocation11 + $0x8] sm:$0xff]
    %v216 = vld [vmem:[#allocation11 + $0x10] sm:$0xff]
    %v217 = vld [vmem:[#allocation11 + $0x18] sm:$0xff]
    %v218 = vld [vmem:[#allocation11 + $0x20] sm:$0xff]
    %v219 = vld [vmem:[#allocation11 + $0x28] sm:$0xff]
    %v220 = vld [vmem:[#allocation11 + $0x30] sm:$0xff]
    %v221 = vld [vmem:[#allocation11 + $0x38] sm:$0xff]
    %v222 = vld [vmem:[#allocation11 + $0x40] sm:$0xff]
    %v223 = vld [vmem:[#allocation11 + $0x48] sm:$0xff]
    %v224 = vld [vmem:[#allocation11 + $0x50] sm:$0xff]
    %v225 = vld [vmem:[#allocation11 + $0x58] sm:$0xff]
    %v226 = vld [vmem:[#allocation11 + $0x60] sm:$0xff]
    %v227 = vld [vmem:[#allocation11 + $0x68] sm:$0xff]
    %v228 = vld [vmem:[#allocation11 + $0x70] sm:$0xff]
    %v229 = vld [vmem:[#allocation11 + $0x78] sm:$0xff]
    %v230 = vld [vmem:[%s4] sm:$0x1]
    %v231 = vld [vmem:[#allocation2] sm:$0xff]
    %v232 = vld [vmem:[#allocation3] sm:$0xff]
    %v233 = vld [vmem:[#allocation5] sm:$0xff]
    %v235 = vperm.slane %v213, 0
    %v236 = vperm.slane %v213, 1
    %v237 = vperm.slane %v213, 2
    %v238 = vperm.slane %v213, 3
    %243 = vmatpush.msra.mxu0 %v145
    %244 = vmatpush.msra.mxu0 %v141
    %245 = vmatpush.msra.mxu0 %v137
    %246 = vmatpush.msra.mxu0 %v133
    %247 = vmatpush.msra.mxu0 %v129
    %248 = vmatpush.msra.mxu0 %v125
    %249 = vmatpush.msra.mxu0 %v121
    %250 = vmatpush.msra.mxu0 %v117
    %251 = vmatpush.msra.mxu0 %v113
    %252 = vmatpush.msra.mxu0 %v109
    %253 = vmatpush.msra.mxu0 %v105
    %254 = vmatpush.msra.mxu0 %v101
    %255 = vmatpush.msra.mxu0 %v97
    %256 = vmatpush.msra.mxu0 %v93
    %257 = vmatpush.msra.mxu0 %v89
    %258 = vmatpush.msra.mxu0 %v85
    %259 = vmatmul.f32.gmra.mxu0 %v233
    %v260 = vpop.f32.mrf.mxu0
    %v261 = vadd.f32 %v235, %v260
    %262 = vdwg.mxu0
    %263 = vmatpush.msra.mxu0 %v209
    %264 = vmatpush.msra.mxu0 %v205
    %265 = vmatpush.msra.mxu0 %v201
    %266 = vmatpush.msra.mxu0 %v197
    %267 = vmatpush.msra.mxu0 %v193
    %268 = vmatpush.msra.mxu0 %v189
    %269 = vmatpush.msra.mxu0 %v185
    %270 = vmatpush.msra.mxu0 %v181
    %271 = vmatpush.msra.mxu0 %v177
    %272 = vmatpush.msra.mxu0 %v173
    %273 = vmatpush.msra.mxu0 %v169
    %274 = vmatpush.msra.mxu0 %v165
    %275 = vmatpush.msra.mxu0 %v161
    %276 = vmatpush.msra.mxu0 %v157
    %277 = vmatpush.msra.mxu0 %v153
    %278 = vmatpush.msra.mxu0 %v149
    %279 = vmatmul.f32.gmra.mxu0 %v231
    %v280 = vpop.f32.mrf.mxu0
    %v281 = vadd.f32 %v261, %v280
    %282 = vdwg.mxu0
    %283 = vmatpush.msra.mxu0 %v146
    %284 = vmatpush.msra.mxu0 %v142
    %285 = vmatpush.msra.mxu0 %v138
    %286 = vmatpush.msra.mxu0 %v134
    %287 = vmatpush.msra.mxu0 %v130
    %288 = vmatpush.msra.mxu0 %v126
    %289 = vmatpush.msra.mxu0 %v122
    %290 = vmatpush.msra.mxu0 %v118
    %291 = vmatpush.msra.mxu0 %v114
    %292 = vmatpush.msra.mxu0 %v110
    %293 = vmatpush.msra.mxu0 %v106
    %294 = vmatpush.msra.mxu0 %v102
    %295 = vmatpush.msra.mxu0 %v98
    %296 = vmatpush.msra.mxu0 %v94
    %297 = vmatpush.msra.mxu0 %v90
    %298 = vmatpush.msra.mxu0 %v86
    %299 = vmatmul.f32.gmra.mxu0 %v233
    %v300 = vpop.f32.mrf.mxu0
    %v301 = vadd.f32 %v236, %v300
    %302 = vdwg.mxu0
    %303 = vmatpush.msra.mxu0 %v210
    %304 = vmatpush.msra.mxu0 %v206
    %305 = vmatpush.msra.mxu0 %v202
    %306 = vmatpush.msra.mxu0 %v198
    %307 = vmatpush.msra.mxu0 %v194
    %308 = vmatpush.msra.mxu0 %v190
    %309 = vmatpush.msra.mxu0 %v186
    %310 = vmatpush.msra.mxu0 %v182
    %311 = vmatpush.msra.mxu0 %v178
    %312 = vmatpush.msra.mxu0 %v174
    %313 = vmatpush.msra.mxu0 %v170
    %314 = vmatpush.msra.mxu0 %v166
    %315 = vmatpush.msra.mxu0 %v162
    %316 = vmatpush.msra.mxu0 %v158
    %317 = vmatpush.msra.mxu0 %v154
    %318 = vmatpush.msra.mxu0 %v150
    %319 = vmatmul.f32.gmra.mxu0 %v231
    %v320 = vpop.f32.mrf.mxu0
    %v321 = vadd.f32 %v301, %v320
    %322 = vdwg.mxu0
    %323 = vmatpush.msra.mxu0 %v147
    %324 = vmatpush.msra.mxu0 %v143
    %325 = vmatpush.msra.mxu0 %v139
    %326 = vmatpush.msra.mxu0 %v135
    %327 = vmatpush.msra.mxu0 %v131
    %328 = vmatpush.msra.mxu0 %v127
    %329 = vmatpush.msra.mxu0 %v123
    %330 = vmatpush.msra.mxu0 %v119
    %331 = vmatpush.msra.mxu0 %v115
    %332 = vmatpush.msra.mxu0 %v111
    %333 = vmatpush.msra.mxu0 %v107
    %334 = vmatpush.msra.mxu0 %v103
    %335 = vmatpush.msra.mxu0 %v99
    %336 = vmatpush.msra.mxu0 %v95
    %337 = vmatpush.msra.mxu0 %v91
    %338 = vmatpush.msra.mxu0 %v87
    %339 = vmatmul.f32.gmra.mxu0 %v233
    %v340 = vpop.f32.mrf.mxu0
    %v341 = vadd.f32 %v237, %v340
    %342 = vdwg.mxu0
    %343 = vmatpush.msra.mxu0 %v211
    %344 = vmatpush.msra.mxu0 %v207
    %345 = vmatpush.msra.mxu0 %v203
    %346 = vmatpush.msra.mxu0 %v199
    %347 = vmatpush.msra.mxu0 %v195
    %348 = vmatpush.msra.mxu0 %v191
    %349 = vmatpush.msra.mxu0 %v187
    %350 = vmatpush.msra.mxu0 %v183
    %351 = vmatpush.msra.mxu0 %v179
    %352 = vmatpush.msra.mxu0 %v175
    %353 = vmatpush.msra.mxu0 %v171
    %354 = vmatpush.msra.mxu0 %v167
    %355 = vmatpush.msra.mxu0 %v163
    %356 = vmatpush.msra.mxu0 %v159
    %357 = vmatpush.msra.mxu0 %v155
    %358 = vmatpush.msra.mxu0 %v151
    %359 = vmatmul.f32.gmra.mxu0 %v231
    %v360 = vpop.f32.mrf.mxu0
    %v361 = vadd.f32 %v341, %v360
    %362 = vdwg.mxu0
    %363 = vmatpush.msra.mxu0 %v148
    %364 = vmatpush.msra.mxu0 %v144
    %365 = vmatpush.msra.mxu0 %v140
    %366 = vmatpush.msra.mxu0 %v136
    %367 = vmatpush.msra.mxu0 %v132
    %368 = vmatpush.msra.mxu0 %v128
    %369 = vmatpush.msra.mxu0 %v124
    %370 = vmatpush.msra.mxu0 %v120
    %371 = vmatpush.msra.mxu0 %v116
    %372 = vmatpush.msra.mxu0 %v112
    %373 = vmatpush.msra.mxu0 %v108
    %374 = vmatpush.msra.mxu0 %v104
    %375 = vmatpush.msra.mxu0 %v100
    %376 = vmatpush.msra.mxu0 %v96
    %377 = vmatpush.msra.mxu0 %v92
    %378 = vmatpush.msra.mxu0 %v88
    %379 = vmatmul.f32.gmra.mxu0 %v233
    %v380 = vpop.f32.mrf.mxu0
    %v381 = vadd.f32 %v238, %v380
    %382 = vdwg.mxu0
    %383 = vmatpush.msra.mxu0 %v212
    %384 = vmatpush.msra.mxu0 %v208
    %385 = vmatpush.msra.mxu0 %v204
    %386 = vmatpush.msra.mxu0 %v200
    %387 = vmatpush.msra.mxu0 %v196
    %388 = vmatpush.msra.mxu0 %v192
    %389 = vmatpush.msra.mxu0 %v188
    %390 = vmatpush.msra.mxu0 %v184
    %391 = vmatpush.msra.mxu0 %v180
    %392 = vmatpush.msra.mxu0 %v176
    %393 = vmatpush.msra.mxu0 %v172
    %394 = vmatpush.msra.mxu0 %v168
    %395 = vmatpush.msra.mxu0 %v164
    %396 = vmatpush.msra.mxu0 %v160
    %397 = vmatpush.msra.mxu0 %v156
    %398 = vmatpush.msra.mxu0 %v152
    %399 = vmatmul.f32.gmra.mxu0 %v231
    %v400 = vpop.f32.mrf.mxu0
    %v401 = vadd.f32 %v381, %v400
    %402 = vdwg.mxu0
    %v403 = vxor.u32 %v281, 2147483648
    %v404 = vmul.f32 %v403, 1.442695
    %v405 = vpow.pop %v404
    %v406 = vadd.f32 %v405, 1.0
    %v407 = vrcp.pop %v406
    %v408 = vmul.f32 %v406, %v407
    %v409 = vsub.f32 1.0, %v408
    %v410 = vmul.f32 %v407, %v409
    %v411 = vadd.f32 %v407, %v410
    %vm412 = vweird.f32 %v406
    %vm413 = vweird.f32 %v407
    %vm414 = vmor %vm412, %vm413
    %v415 = vsel %vm414, %v407, %v411
    %v416 = vand.u32 2147483647, %v406
    %vm417 = vcmp.eq.f32.partialorder %v416, 8.507059e+37
    %v418 = vand.u32 %v406, 2147483648
    %v419 = vor.u32 1.1754944e-38, %v418
    %v420 = vsel %vm417, %v419, %v415
    %v421 = vmul.f32 1.0, %v420
    %v422 = vxor.u32 %v321, 2147483648
    %v423 = vmul.f32 %v422, 1.442695
    %v424 = vpow.pop %v423
    %v425 = vadd.f32 %v424, 1.0
    %v426 = vrcp.pop %v425
    %v427 = vmul.f32 %v425, %v426
    %v428 = vsub.f32 1.0, %v427
    %v429 = vmul.f32 %v426, %v428
    %v430 = vadd.f32 %v426, %v429
    %vm431 = vweird.f32 %v425
    %vm432 = vweird.f32 %v426
    %vm433 = vmor %vm431, %vm432
    %v434 = vsel %vm433, %v426, %v430
    %v435 = vand.u32 2147483647, %v425
    %vm436 = vcmp.eq.f32.partialorder %v435, 8.507059e+37
    %v437 = vand.u32 %v425, 2147483648
    %v438 = vor.u32 1.1754944e-38, %v437
    %v439 = vsel %vm436, %v438, %v434
    %v440 = vmul.f32 1.0, %v439
    %v441 = vtanh.pop %v361
    %v442 = vxor.u32 %v401, 2147483648
    %v443 = vmul.f32 %v442, 1.442695
    %v444 = vpow.pop %v443
    %v445 = vadd.f32 %v444, 1.0
    %v446 = vrcp.pop %v445
    %v447 = vmul.f32 %v445, %v446
    %v448 = vsub.f32 1.0, %v447
    %v449 = vmul.f32 %v446, %v448
    %v450 = vadd.f32 %v446, %v449
    %vm451 = vweird.f32 %v445
    %vm452 = vweird.f32 %v446
    %vm453 = vmor %vm451, %vm452
    %v454 = vsel %vm453, %v446, %v450
    %v455 = vand.u32 2147483647, %v445
    %vm456 = vcmp.eq.f32.partialorder %v455, 8.507059e+37
    %v457 = vand.u32 %v445, 2147483648
    %v458 = vor.u32 1.1754944e-38, %v457
    %v459 = vsel %vm456, %v458, %v454
    %v460 = vmul.f32 1.0, %v459
    %v461 = vmul.f32 %v440, %v232
    %v462 = vmul.f32 %v421, %v441
    %v463 = vadd.f32 %v461, %v462
    %v464 = vtanh.pop %v463
    %v465 = vmul.f32 %v460, %v464
    %v467 = vperm.slane %v230, 0
    %469 = vmatpush.msra.mxu0 %v229
    %470 = vmatpush.msra.mxu0 %v228
    %471 = vmatpush.msra.mxu0 %v227
    %472 = vmatpush.msra.mxu0 %v226
    %473 = vmatpush.msra.mxu0 %v225
    %474 = vmatpush.msra.mxu0 %v224
    %475 = vmatpush.msra.mxu0 %v223
    %476 = vmatpush.msra.mxu0 %v222
    %477 = vmatpush.msra.mxu0 %v221
    %478 = vmatpush.msra.mxu0 %v220
    %479 = vmatpush.msra.mxu0 %v219
    %480 = vmatpush.msra.mxu0 %v218
    %481 = vmatpush.msra.mxu0 %v217
    %482 = vmatpush.msra.mxu0 %v216
    %483 = vmatpush.msra.mxu0 %v215
    %484 = vmatpush.msra.mxu0 %v214
    %485 = vmatmul.f32.gmra.mxu0 %v465
    %v486 = vpop.f32.mrf.mxu0
    %v487 = vadd.f32 %v467, %v486
    %488 = vdwg.mxu0
    %489 = vst [vmem:[#allocation2] sm:$0xff] %v465
    %490 = vst [vmem:[#allocation3] sm:$0xff] %v463
    %491 = vst [vmem:[#allocation4] sm:$0xff] %v487
    %492 = vst [vmem:[#allocation13] sm:$0xff] %v487
    %v493 = vld [vmem:[#allocation2] sm:$0xff]
    %v494 = vld [vmem:[#allocation3] sm:$0xff]
    %s495 = scalar_lea.vmem [#allocation5], 8
    %v496 = vld [vmem:[%s495] sm:$0xff]
    %497 = vmatpush.msra.mxu0 %v145
    %498 = vmatpush.msra.mxu0 %v141
    %499 = vmatpush.msra.mxu0 %v137
    %500 = vmatpush.msra.mxu0 %v133
    %501 = vmatpush.msra.mxu0 %v129
    %502 = vmatpush.msra.mxu0 %v125
    %503 = vmatpush.msra.mxu0 %v121
    %504 = vmatpush.msra.mxu0 %v117
    %505 = vmatpush.msra.mxu0 %v113
    %506 = vmatpush.msra.mxu0 %v109
    %507 = vmatpush.msra.mxu0 %v105
    %508 = vmatpush.msra.mxu0 %v101
    %509 = vmatpush.msra.mxu0 %v97
    %510 = vmatpush.msra.mxu0 %v93
    %511 = vmatpush.msra.mxu0 %v89
    %512 = vmatpush.msra.mxu0 %v85
    %513 = vmatmul.f32.gmra.mxu0 %v496
    %v514 = vpop.f32.mrf.mxu0
    %v515 = vadd.f32 %v235, %v514
    %516 = vdwg.mxu0
    %517 = vmatpush.msra.mxu0 %v209
    %518 = vmatpush.msra.mxu0 %v205
    %519 = vmatpush.msra.mxu0 %v201
    %520 = vmatpush.msra.mxu0 %v197
    %521 = vmatpush.msra.mxu0 %v193
    %522 = vmatpush.msra.mxu0 %v189
    %523 = vmatpush.msra.mxu0 %v185
    %524 = vmatpush.msra.mxu0 %v181
    %525 = vmatpush.msra.mxu0 %v177
    %526 = vmatpush.msra.mxu0 %v173
    %527 = vmatpush.msra.mxu0 %v169
    %528 = vmatpush.msra.mxu0 %v165
    %529 = vmatpush.msra.mxu0 %v161
    %530 = vmatpush.msra.mxu0 %v157
    %531 = vmatpush.msra.mxu0 %v153
    %532 = vmatpush.msra.mxu0 %v149
    %533 = vmatmul.f32.gmra.mxu0 %v493
    %v534 = vpop.f32.mrf.mxu0
    %v535 = vadd.f32 %v515, %v534
    %536 = vdwg.mxu0
    %537 = vmatpush.msra.mxu0 %v146
    %538 = vmatpush.msra.mxu0 %v142
    %539 = vmatpush.msra.mxu0 %v138
    %540 = vmatpush.msra.mxu0 %v134
    %541 = vmatpush.msra.mxu0 %v130
    %542 = vmatpush.msra.mxu0 %v126
    %543 = vmatpush.msra.mxu0 %v122
    %544 = vmatpush.msra.mxu0 %v118
    %545 = vmatpush.msra.mxu0 %v114
    %546 = vmatpush.msra.mxu0 %v110
    %547 = vmatpush.msra.mxu0 %v106
    %548 = vmatpush.msra.mxu0 %v102
    %549 = vmatpush.msra.mxu0 %v98
    %550 = vmatpush.msra.mxu0 %v94
    %551 = vmatpush.msra.mxu0 %v90
    %552 = vmatpush.msra.mxu0 %v86
    %553 = vmatmul.f32.gmra.mxu0 %v496
    %v554 = vpop.f32.mrf.mxu0
    %v555 = vadd.f32 %v236, %v554
    %556 = vdwg.mxu0
    %557 = vmatpush.msra.mxu0 %v210
    %558 = vmatpush.msra.mxu0 %v206
    %559 = vmatpush.msra.mxu0 %v202
    %560 = vmatpush.msra.mxu0 %v198
    %561 = vmatpush.msra.mxu0 %v194
    %562 = vmatpush.msra.mxu0 %v190
    %563 = vmatpush.msra.mxu0 %v186
    %564 = vmatpush.msra.mxu0 %v182
    %565 = vmatpush.msra.mxu0 %v178
    %566 = vmatpush.msra.mxu0 %v174
    %567 = vmatpush.msra.mxu0 %v170
    %568 = vmatpush.msra.mxu0 %v166
    %569 = vmatpush.msra.mxu0 %v162
    %570 = vmatpush.msra.mxu0 %v158
    %571 = vmatpush.msra.mxu0 %v154
    %572 = vmatpush.msra.mxu0 %v150
    %573 = vmatmul.f32.gmra.mxu0 %v493
    %v574 = vpop.f32.mrf.mxu0
    %v575 = vadd.f32 %v555, %v574
    %576 = vdwg.mxu0
    %577 = vmatpush.msra.mxu0 %v147
    %578 = vmatpush.msra.mxu0 %v143
    %579 = vmatpush.msra.mxu0 %v139
    %580 = vmatpush.msra.mxu0 %v135
    %581 = vmatpush.msra.mxu0 %v131
    %582 = vmatpush.msra.mxu0 %v127
    %583 = vmatpush.msra.mxu0 %v123
    %584 = vmatpush.msra.mxu0 %v119
    %585 = vmatpush.msra.mxu0 %v115
    %586 = vmatpush.msra.mxu0 %v111
    %587 = vmatpush.msra.mxu0 %v107
    %588 = vmatpush.msra.mxu0 %v103
    %589 = vmatpush.msra.mxu0 %v99
    %590 = vmatpush.msra.mxu0 %v95
    %591 = vmatpush.msra.mxu0 %v91
    %592 = vmatpush.msra.mxu0 %v87
    %593 = vmatmul.f32.gmra.mxu0 %v496
    %v594 = vpop.f32.mrf.mxu0
    %v595 = vadd.f32 %v237, %v594
    %596 = vdwg.mxu0
    %597 = vmatpush.msra.mxu0 %v211
    %598 = vmatpush.msra.mxu0 %v207
    %599 = vmatpush.msra.mxu0 %v203
    %600 = vmatpush.msra.mxu0 %v199
    %601 = vmatpush.msra.mxu0 %v195
    %602 = vmatpush.msra.mxu0 %v191
    %603 = vmatpush.msra.mxu0 %v187
    %604 = vmatpush.msra.mxu0 %v183
    %605 = vmatpush.msra.mxu0 %v179
    %606 = vmatpush.msra.mxu0 %v175
    %607 = vmatpush.msra.mxu0 %v171
    %608 = vmatpush.msra.mxu0 %v167
    %609 = vmatpush.msra.mxu0 %v163
    %610 = vmatpush.msra.mxu0 %v159
    %611 = vmatpush.msra.mxu0 %v155
    %612 = vmatpush.msra.mxu0 %v151
    %613 = vmatmul.f32.gmra.mxu0 %v493
    %v614 = vpop.f32.mrf.mxu0
    %v615 = vadd.f32 %v595, %v614
    %616 = vdwg.mxu0
    %617 = vmatpush.msra.mxu0 %v148
    %618 = vmatpush.msra.mxu0 %v144
    %619 = vmatpush.msra.mxu0 %v140
    %620 = vmatpush.msra.mxu0 %v136
    %621 = vmatpush.msra.mxu0 %v132
    %622 = vmatpush.msra.mxu0 %v128
    %623 = vmatpush.msra.mxu0 %v124
    %624 = vmatpush.msra.mxu0 %v120
    %625 = vmatpush.msra.mxu0 %v116
    %626 = vmatpush.msra.mxu0 %v112
    %627 = vmatpush.msra.mxu0 %v108
    %628 = vmatpush.msra.mxu0 %v104
    %629 = vmatpush.msra.mxu0 %v100
    %630 = vmatpush.msra.mxu0 %v96
    %631 = vmatpush.msra.mxu0 %v92
    %632 = vmatpush.msra.mxu0 %v88
    %633 = vmatmul.f32.gmra.mxu0 %v496
    %v634 = vpop.f32.mrf.mxu0
    %v635 = vadd.f32 %v238, %v634
    %636 = vdwg.mxu0
    %637 = vmatpush.msra.mxu0 %v212
    %638 = vmatpush.msra.mxu0 %v208
    %639 = vmatpush.msra.mxu0 %v204
    %640 = vmatpush.msra.mxu0 %v200
    %641 = vmatpush.msra.mxu0 %v196
    %642 = vmatpush.msra.mxu0 %v192
    %643 = vmatpush.msra.mxu0 %v188
    %644 = vmatpush.msra.mxu0 %v184
    %645 = vmatpush.msra.mxu0 %v180
    %646 = vmatpush.msra.mxu0 %v176
    %647 = vmatpush.msra.mxu0 %v172
    %648 = vmatpush.msra.mxu0 %v168
    %649 = vmatpush.msra.mxu0 %v164
    %650 = vmatpush.msra.mxu0 %v160
    %651 = vmatpush.msra.mxu0 %v156
    %652 = vmatpush.msra.mxu0 %v152
    %653 = vmatmul.f32.gmra.mxu0 %v493
    %v654 = vpop.f32.mrf.mxu0
    %v655 = vadd.f32 %v635, %v654
    %656 = vdwg.mxu0
    %v657 = vxor.u32 %v535, 2147483648
    %v658 = vmul.f32 %v657, 1.442695
    %v659 = vpow.pop %v658
    %v660 = vadd.f32 %v659, 1.0
    %v661 = vrcp.pop %v660
    %v662 = vmul.f32 %v660, %v661
    %v663 = vsub.f32 1.0, %v662
    %v664 = vmul.f32 %v661, %v663
    %v665 = vadd.f32 %v661, %v664
    %vm666 = vweird.f32 %v660
    %vm667 = vweird.f32 %v661
    %vm668 = vmor %vm666, %vm667
    %v669 = vsel %vm668, %v661, %v665
    %v670 = vand.u32 2147483647, %v660
    %vm671 = vcmp.eq.f32.partialorder %v670, 8.507059e+37
    %v672 = vand.u32 %v660, 2147483648
    %v673 = vor.u32 1.1754944e-38, %v672
    %v674 = vsel %vm671, %v673, %v669
    %v675 = vmul.f32 1.0, %v674
    %v676 = vxor.u32 %v575, 2147483648
    %v677 = vmul.f32 %v676, 1.442695
    %v678 = vpow.pop %v677
    %v679 = vadd.f32 %v678, 1.0
    %v680 = vrcp.pop %v679
    %v681 = vmul.f32 %v679, %v680
    %v682 = vsub.f32 1.0, %v681
    %v683 = vmul.f32 %v680, %v682
    %v684 = vadd.f32 %v680, %v683
    %vm685 = vweird.f32 %v679
    %vm686 = vweird.f32 %v680
    %vm687 = vmor %vm685, %vm686
    %v688 = vsel %vm687, %v680, %v684
    %v689 = vand.u32 2147483647, %v679
    %vm690 = vcmp.eq.f32.partialorder %v689, 8.507059e+37
    %v691 = vand.u32 %v679, 2147483648
    %v692 = vor.u32 1.1754944e-38, %v691
    %v693 = vsel %vm690, %v692, %v688
    %v694 = vmul.f32 1.0, %v693
    %v695 = vtanh.pop %v615
    %v696 = vxor.u32 %v655, 2147483648
    %v697 = vmul.f32 %v696, 1.442695
    %v698 = vpow.pop %v697
    %v699 = vadd.f32 %v698, 1.0
    %v700 = vrcp.pop %v699
    %v701 = vmul.f32 %v699, %v700
    %v702 = vsub.f32 1.0, %v701
    %v703 = vmul.f32 %v700, %v702
    %v704 = vadd.f32 %v700, %v703
    %vm705 = vweird.f32 %v699
    %vm706 = vweird.f32 %v700
    %vm707 = vmor %vm705, %vm706
    %v708 = vsel %vm707, %v700, %v704
    %v709 = vand.u32 2147483647, %v699
    %vm710 = vcmp.eq.f32.partialorder %v709, 8.507059e+37
    %v711 = vand.u32 %v699, 2147483648
    %v712 = vor.u32 1.1754944e-38, %v711
    %v713 = vsel %vm710, %v712, %v708
    %v714 = vmul.f32 1.0, %v713
    %v715 = vmul.f32 %v694, %v494
    %v716 = vmul.f32 %v675, %v695
    %v717 = vadd.f32 %v715, %v716
    %v718 = vtanh.pop %v717
    %v719 = vmul.f32 %v714, %v718
    %720 = vmatpush.msra.mxu0 %v229
    %721 = vmatpush.msra.mxu0 %v228
    %722 = vmatpush.msra.mxu0 %v227
    %723 = vmatpush.msra.mxu0 %v226
    %724 = vmatpush.msra.mxu0 %v225
    %725 = vmatpush.msra.mxu0 %v224
    %726 = vmatpush.msra.mxu0 %v223
    %727 = vmatpush.msra.mxu0 %v222
    %728 = vmatpush.msra.mxu0 %v221
    %729 = vmatpush.msra.mxu0 %v220
    %730 = vmatpush.msra.mxu0 %v219
    %731 = vmatpush.msra.mxu0 %v218
    %732 = vmatpush.msra.mxu0 %v217
    %733 = vmatpush.msra.mxu0 %v216
    %734 = vmatpush.msra.mxu0 %v215
    %735 = vmatpush.msra.mxu0 %v214
    %736 = vmatmul.f32.gmra.mxu0 %v719
    %v737 = vpop.f32.mrf.mxu0
    %v738 = vadd.f32 %v467, %v737
    %739 = vdwg.mxu0
    %740 = vst [vmem:[#allocation2] sm:$0xff] %v719
    %741 = vst [vmem:[#allocation3] sm:$0xff] %v717
    %742 = vst [vmem:[#allocation4] sm:$0xff] %v738
    %s743 = scalar_lea.vmem [#allocation13], 8
    %744 = vst [vmem:[%s743] sm:$0xff] %v738
    %v745 = vld [vmem:[#allocation2] sm:$0xff]
    %v746 = vld [vmem:[#allocation3] sm:$0xff]
    %s747 = scalar_lea.vmem [#allocation5], 16
    %v748 = vld [vmem:[%s747] sm:$0xff]
    %749 = vmatpush.msra.mxu0 %v145
    %750 = vmatpush.msra.mxu0 %v141
    %751 = vmatpush.msra.mxu0 %v137
    %752 = vmatpush.msra.mxu0 %v133
    %753 = vmatpush.msra.mxu0 %v129
    %754 = vmatpush.msra.mxu0 %v125
    %755 = vmatpush.msra.mxu0 %v121
    %756 = vmatpush.msra.mxu0 %v117
    %757 = vmatpush.msra.mxu0 %v113
    %758 = vmatpush.msra.mxu0 %v109
    %759 = vmatpush.msra.mxu0 %v105
    %760 = vmatpush.msra.mxu0 %v101
    %761 = vmatpush.msra.mxu0 %v97
    %762 = vmatpush.msra.mxu0 %v93
    %763 = vmatpush.msra.mxu0 %v89
    %764 = vmatpush.msra.mxu0 %v85
    %765 = vmatmul.f32.gmra.mxu0 %v748
    %v766 = vpop.f32.mrf.mxu0
    %v767 = vadd.f32 %v235, %v766
    %768 = vdwg.mxu0
    %769 = vmatpush.msra.mxu0 %v209
    %770 = vmatpush.msra.mxu0 %v205
    %771 = vmatpush.msra.mxu0 %v201
    %772 = vmatpush.msra.mxu0 %v197
    %773 = vmatpush.msra.mxu0 %v193
    %774 = vmatpush.msra.mxu0 %v189
    %775 = vmatpush.msra.mxu0 %v185
    %776 = vmatpush.msra.mxu0 %v181
    %777 = vmatpush.msra.mxu0 %v177
    %778 = vmatpush.msra.mxu0 %v173
    %779 = vmatpush.msra.mxu0 %v169
    %780 = vmatpush.msra.mxu0 %v165
    %781 = vmatpush.msra.mxu0 %v161
    %782 = vmatpush.msra.mxu0 %v157
    %783 = vmatpush.msra.mxu0 %v153
    %784 = vmatpush.msra.mxu0 %v149
    %785 = vmatmul.f32.gmra.mxu0 %v745
    %v786 = vpop.f32.mrf.mxu0
    %v787 = vadd.f32 %v767, %v786
    %788 = vdwg.mxu0
    %789 = vmatpush.msra.mxu0 %v146
    %790 = vmatpush.msra.mxu0 %v142
    %791 = vmatpush.msra.mxu0 %v138
    %792 = vmatpush.msra.mxu0 %v134
    %793 = vmatpush.msra.mxu0 %v130
    %794 = vmatpush.msra.mxu0 %v126
    %795 = vmatpush.msra.mxu0 %v122
    %796 = vmatpush.msra.mxu0 %v118
    %797 = vmatpush.msra.mxu0 %v114
    %798 = vmatpush.msra.mxu0 %v110
    %799 = vmatpush.msra.mxu0 %v106
    %800 = vmatpush.msra.mxu0 %v102
    %801 = vmatpush.msra.mxu0 %v98
    %802 = vmatpush.msra.mxu0 %v94
    %803 = vmatpush.msra.mxu0 %v90
    %804 = vmatpush.msra.mxu0 %v86
    %805 = vmatmul.f32.gmra.mxu0 %v748
    %v806 = vpop.f32.mrf.mxu0
    %v807 = vadd.f32 %v236, %v806
    %808 = vdwg.mxu0
    %809 = vmatpush.msra.mxu0 %v210
    %810 = vmatpush.msra.mxu0 %v206
    %811 = vmatpush.msra.mxu0 %v202
    %812 = vmatpush.msra.mxu0 %v198
    %813 = vmatpush.msra.mxu0 %v194
    %814 = vmatpush.msra.mxu0 %v190
    %815 = vmatpush.msra.mxu0 %v186
    %816 = vmatpush.msra.mxu0 %v182
    %817 = vmatpush.msra.mxu0 %v178
    %818 = vmatpush.msra.mxu0 %v174
    %819 = vmatpush.msra.mxu0 %v170
    %820 = vmatpush.msra.mxu0 %v166
    %821 = vmatpush.msra.mxu0 %v162
    %822 = vmatpush.msra.mxu0 %v158
    %823 = vmatpush.msra.mxu0 %v154
    %824 = vmatpush.msra.mxu0 %v150
    %825 = vmatmul.f32.gmra.mxu0 %v745
    %v826 = vpop.f32.mrf.mxu0
    %v827 = vadd.f32 %v807, %v826
    %828 = vdwg.mxu0
    %829 = vmatpush.msra.mxu0 %v147
    %830 = vmatpush.msra.mxu0 %v143
    %831 = vmatpush.msra.mxu0 %v139
    %832 = vmatpush.msra.mxu0 %v135
    %833 = vmatpush.msra.mxu0 %v131
    %834 = vmatpush.msra.mxu0 %v127
    %835 = vmatpush.msra.mxu0 %v123
    %836 = vmatpush.msra.mxu0 %v119
    %837 = vmatpush.msra.mxu0 %v115
    %838 = vmatpush.msra.mxu0 %v111
    %839 = vmatpush.msra.mxu0 %v107
    %840 = vmatpush.msra.mxu0 %v103
    %841 = vmatpush.msra.mxu0 %v99
    %842 = vmatpush.msra.mxu0 %v95
    %843 = vmatpush.msra.mxu0 %v91
    %844 = vmatpush.msra.mxu0 %v87
    %845 = vmatmul.f32.gmra.mxu0 %v748
    %v846 = vpop.f32.mrf.mxu0
    %v847 = vadd.f32 %v237, %v846
    %848 = vdwg.mxu0
    %849 = vmatpush.msra.mxu0 %v211
    %850 = vmatpush.msra.mxu0 %v207
    %851 = vmatpush.msra.mxu0 %v203
    %852 = vmatpush.msra.mxu0 %v199
    %853 = vmatpush.msra.mxu0 %v195
    %854 = vmatpush.msra.mxu0 %v191
    %855 = vmatpush.msra.mxu0 %v187
    %856 = vmatpush.msra.mxu0 %v183
    %857 = vmatpush.msra.mxu0 %v179
    %858 = vmatpush.msra.mxu0 %v175
    %859 = vmatpush.msra.mxu0 %v171
    %860 = vmatpush.msra.mxu0 %v167
    %861 = vmatpush.msra.mxu0 %v163
    %862 = vmatpush.msra.mxu0 %v159
    %863 = vmatpush.msra.mxu0 %v155
    %864 = vmatpush.msra.mxu0 %v151
    %865 = vmatmul.f32.gmra.mxu0 %v745
    %v866 = vpop.f32.mrf.mxu0
    %v867 = vadd.f32 %v847, %v866
    %868 = vdwg.mxu0
    %869 = vmatpush.msra.mxu0 %v148
    %870 = vmatpush.msra.mxu0 %v144
    %871 = vmatpush.msra.mxu0 %v140
    %872 = vmatpush.msra.mxu0 %v136
    %873 = vmatpush.msra.mxu0 %v132
    %874 = vmatpush.msra.mxu0 %v128
    %875 = vmatpush.msra.mxu0 %v124
    %876 = vmatpush.msra.mxu0 %v120
    %877 = vmatpush.msra.mxu0 %v116
    %878 = vmatpush.msra.mxu0 %v112
    %879 = vmatpush.msra.mxu0 %v108
    %880 = vmatpush.msra.mxu0 %v104
    %881 = vmatpush.msra.mxu0 %v100
    %882 = vmatpush.msra.mxu0 %v96
    %883 = vmatpush.msra.mxu0 %v92
    %884 = vmatpush.msra.mxu0 %v88
    %885 = vmatmul.f32.gmra.mxu0 %v748
    %v886 = vpop.f32.mrf.mxu0
    %v887 = vadd.f32 %v238, %v886
    %888 = vdwg.mxu0
    %889 = vmatpush.msra.mxu0 %v212
    %890 = vmatpush.msra.mxu0 %v208
    %891 = vmatpush.msra.mxu0 %v204
    %892 = vmatpush.msra.mxu0 %v200
    %893 = vmatpush.msra.mxu0 %v196
    %894 = vmatpush.msra.mxu0 %v192
    %895 = vmatpush.msra.mxu0 %v188
    %896 = vmatpush.msra.mxu0 %v184
    %897 = vmatpush.msra.mxu0 %v180
    %898 = vmatpush.msra.mxu0 %v176
    %899 = vmatpush.msra.mxu0 %v172
    %900 = vmatpush.msra.mxu0 %v168
    %901 = vmatpush.msra.mxu0 %v164
    %902 = vmatpush.msra.mxu0 %v160
    %903 = vmatpush.msra.mxu0 %v156
    %904 = vmatpush.msra.mxu0 %v152
    %905 = vmatmul.f32.gmra.mxu0 %v745
    %v906 = vpop.f32.mrf.mxu0
    %v907 = vadd.f32 %v887, %v906
    %908 = vdwg.mxu0
    %v909 = vxor.u32 %v787, 2147483648
    %v910 = vmul.f32 %v909, 1.442695
    %v911 = vpow.pop %v910
    %v912 = vadd.f32 %v911, 1.0
    %v913 = vrcp.pop %v912
    %v914 = vmul.f32 %v912, %v913
    %v915 = vsub.f32 1.0, %v914
    %v916 = vmul.f32 %v913, %v915
    %v917 = vadd.f32 %v913, %v916
    %vm918 = vweird.f32 %v912
    %vm919 = vweird.f32 %v913
    %vm920 = vmor %vm918, %vm919
    %v921 = vsel %vm920, %v913, %v917
    %v922 = vand.u32 2147483647, %v912
    %vm923 = vcmp.eq.f32.partialorder %v922, 8.507059e+37
    %v924 = vand.u32 %v912, 2147483648
    %v925 = vor.u32 1.1754944e-38, %v924
    %v926 = vsel %vm923, %v925, %v921
    %v927 = vmul.f32 1.0, %v926
    %v928 = vxor.u32 %v827, 2147483648
    %v929 = vmul.f32 %v928, 1.442695
    %v930 = vpow.pop %v929
    %v931 = vadd.f32 %v930, 1.0
    %v932 = vrcp.pop %v931
    %v933 = vmul.f32 %v931, %v932
    %v934 = vsub.f32 1.0, %v933
    %v935 = vmul.f32 %v932, %v934
    %v936 = vadd.f32 %v932, %v935
    %vm937 = vweird.f32 %v931
    %vm938 = vweird.f32 %v932
    %vm939 = vmor %vm937, %vm938
    %v940 = vsel %vm939, %v932, %v936
    %v941 = vand.u32 2147483647, %v931
    %vm942 = vcmp.eq.f32.partialorder %v941, 8.507059e+37
    %v943 = vand.u32 %v931, 2147483648
    %v944 = vor.u32 1.1754944e-38, %v943
    %v945 = vsel %vm942, %v944, %v940
    %v946 = vmul.f32 1.0, %v945
    %v947 = vtanh.pop %v867
    %v948 = vxor.u32 %v907, 2147483648
    %v949 = vmul.f32 %v948, 1.442695
    %v950 = vpow.pop %v949
    %v951 = vadd.f32 %v950, 1.0
    %v952 = vrcp.pop %v951
    %v953 = vmul.f32 %v951, %v952
    %v954 = vsub.f32 1.0, %v953
    %v955 = vmul.f32 %v952, %v954
    %v956 = vadd.f32 %v952, %v955
    %vm957 = vweird.f32 %v951
    %vm958 = vweird.f32 %v952
    %vm959 = vmor %vm957, %vm958
    %v960 = vsel %vm959, %v952, %v956
    %v961 = vand.u32 2147483647, %v951
    %vm962 = vcmp.eq.f32.partialorder %v961, 8.507059e+37
    %v963 = vand.u32 %v951, 2147483648
    %v964 = vor.u32 1.1754944e-38, %v963
    %v965 = vsel %vm962, %v964, %v960
    %v966 = vmul.f32 1.0, %v965
    %v967 = vmul.f32 %v946, %v746
    %v968 = vmul.f32 %v927, %v947
    %v969 = vadd.f32 %v967, %v968
    %v970 = vtanh.pop %v969
    %v971 = vmul.f32 %v966, %v970
    %972 = vmatpush.msra.mxu0 %v229
    %973 = vmatpush.msra.mxu0 %v228
    %974 = vmatpush.msra.mxu0 %v227
    %975 = vmatpush.msra.mxu0 %v226
    %976 = vmatpush.msra.mxu0 %v225
    %977 = vmatpush.msra.mxu0 %v224
    %978 = vmatpush.msra.mxu0 %v223
    %979 = vmatpush.msra.mxu0 %v222
    %980 = vmatpush.msra.mxu0 %v221
    %981 = vmatpush.msra.mxu0 %v220
    %982 = vmatpush.msra.mxu0 %v219
    %983 = vmatpush.msra.mxu0 %v218
    %984 = vmatpush.msra.mxu0 %v217
    %985 = vmatpush.msra.mxu0 %v216
    %986 = vmatpush.msra.mxu0 %v215
    %987 = vmatpush.msra.mxu0 %v214
    %988 = vmatmul.f32.gmra.mxu0 %v971
    %v989 = vpop.f32.mrf.mxu0
    %v990 = vadd.f32 %v467, %v989
    %991 = vdwg.mxu0
    %992 = vst [vmem:[#allocation2] sm:$0xff] %v971
    %993 = vst [vmem:[#allocation3] sm:$0xff] %v969
    %994 = vst [vmem:[#allocation4] sm:$0xff] %v990
    %s995 = scalar_lea.vmem [#allocation13], 16
    %996 = vst [vmem:[%s995] sm:$0xff] %v990
    %v997 = vld [vmem:[#allocation2] sm:$0xff]
    %v998 = vld [vmem:[#allocation3] sm:$0xff]
    %s999 = scalar_lea.vmem [#allocation5], 24
    %v1000 = vld [vmem:[%s999] sm:$0xff]
    %1001 = vmatpush.msra.mxu0 %v145
    %1002 = vmatpush.msra.mxu0 %v141
    %1003 = vmatpush.msra.mxu0 %v137
    %1004 = vmatpush.msra.mxu0 %v133
    %1005 = vmatpush.msra.mxu0 %v129
    %1006 = vmatpush.msra.mxu0 %v125
    %1007 = vmatpush.msra.mxu0 %v121
    %1008 = vmatpush.msra.mxu0 %v117
    %1009 = vmatpush.msra.mxu0 %v113
    %1010 = vmatpush.msra.mxu0 %v109
    %1011 = vmatpush.msra.mxu0 %v105
    %1012 = vmatpush.msra.mxu0 %v101
    %1013 = vmatpush.msra.mxu0 %v97
    %1014 = vmatpush.msra.mxu0 %v93
    %1015 = vmatpush.msra.mxu0 %v89
    %1016 = vmatpush.msra.mxu0 %v85
    %1017 = vmatmul.f32.gmra.mxu0 %v1000
    %v1018 = vpop.f32.mrf.mxu0
    %v1019 = vadd.f32 %v235, %v1018
    %1020 = vdwg.mxu0
    %1021 = vmatpush.msra.mxu0 %v209
    %1022 = vmatpush.msra.mxu0 %v205
    %1023 = vmatpush.msra.mxu0 %v201
    %1024 = vmatpush.msra.mxu0 %v197
    %1025 = vmatpush.msra.mxu0 %v193
    %1026 = vmatpush.msra.mxu0 %v189
    %1027 = vmatpush.msra.mxu0 %v185
    %1028 = vmatpush.msra.mxu0 %v181
    %1029 = vmatpush.msra.mxu0 %v177
    %1030 = vmatpush.msra.mxu0 %v173
    %1031 = vmatpush.msra.mxu0 %v169
    %1032 = vmatpush.msra.mxu0 %v165
    %1033 = vmatpush.msra.mxu0 %v161
    %1034 = vmatpush.msra.mxu0 %v157
    %1035 = vmatpush.msra.mxu0 %v153
    %1036 = vmatpush.msra.mxu0 %v149
    %1037 = vmatmul.f32.gmra.mxu0 %v997
    %v1038 = vpop.f32.mrf.mxu0
    %v1039 = vadd.f32 %v1019, %v1038
    %1040 = vdwg.mxu0
    %1041 = vmatpush.msra.mxu0 %v146
    %1042 = vmatpush.msra.mxu0 %v142
    %1043 = vmatpush.msra.mxu0 %v138
    %1044 = vmatpush.msra.mxu0 %v134
    %1045 = vmatpush.msra.mxu0 %v130
    %1046 = vmatpush.msra.mxu0 %v126
    %1047 = vmatpush.msra.mxu0 %v122
    %1048 = vmatpush.msra.mxu0 %v118
    %1049 = vmatpush.msra.mxu0 %v114
    %1050 = vmatpush.msra.mxu0 %v110
    %1051 = vmatpush.msra.mxu0 %v106
    %1052 = vmatpush.msra.mxu0 %v102
    %1053 = vmatpush.msra.mxu0 %v98
    %1054 = vmatpush.msra.mxu0 %v94
    %1055 = vmatpush.msra.mxu0 %v90
    %1056 = vmatpush.msra.mxu0 %v86
    %1057 = vmatmul.f32.gmra.mxu0 %v1000
    %v1058 = vpop.f32.mrf.mxu0
    %v1059 = vadd.f32 %v236, %v1058
    %1060 = vdwg.mxu0
    %1061 = vmatpush.msra.mxu0 %v210
    %1062 = vmatpush.msra.mxu0 %v206
    %1063 = vmatpush.msra.mxu0 %v202
    %1064 = vmatpush.msra.mxu0 %v198
    %1065 = vmatpush.msra.mxu0 %v194
    %1066 = vmatpush.msra.mxu0 %v190
    %1067 = vmatpush.msra.mxu0 %v186
    %1068 = vmatpush.msra.mxu0 %v182
    %1069 = vmatpush.msra.mxu0 %v178
    %1070 = vmatpush.msra.mxu0 %v174
    %1071 = vmatpush.msra.mxu0 %v170
    %1072 = vmatpush.msra.mxu0 %v166
    %1073 = vmatpush.msra.mxu0 %v162
    %1074 = vmatpush.msra.mxu0 %v158
    %1075 = vmatpush.msra.mxu0 %v154
    %1076 = vmatpush.msra.mxu0 %v150
    %1077 = vmatmul.f32.gmra.mxu0 %v997
    %v1078 = vpop.f32.mrf.mxu0
    %v1079 = vadd.f32 %v1059, %v1078
    %1080 = vdwg.mxu0
    %1081 = vmatpush.msra.mxu0 %v147
    %1082 = vmatpush.msra.mxu0 %v143
    %1083 = vmatpush.msra.mxu0 %v139
    %1084 = vmatpush.msra.mxu0 %v135
    %1085 = vmatpush.msra.mxu0 %v131
    %1086 = vmatpush.msra.mxu0 %v127
    %1087 = vmatpush.msra.mxu0 %v123
    %1088 = vmatpush.msra.mxu0 %v119
    %1089 = vmatpush.msra.mxu0 %v115
    %1090 = vmatpush.msra.mxu0 %v111
    %1091 = vmatpush.msra.mxu0 %v107
    %1092 = vmatpush.msra.mxu0 %v103
    %1093 = vmatpush.msra.mxu0 %v99
    %1094 = vmatpush.msra.mxu0 %v95
    %1095 = vmatpush.msra.mxu0 %v91
    %1096 = vmatpush.msra.mxu0 %v87
    %1097 = vmatmul.f32.gmra.mxu0 %v1000
    %v1098 = vpop.f32.mrf.mxu0
    %v1099 = vadd.f32 %v237, %v1098
    %1100 = vdwg.mxu0
    %1101 = vmatpush.msra.mxu0 %v211
    %1102 = vmatpush.msra.mxu0 %v207
    %1103 = vmatpush.msra.mxu0 %v203
    %1104 = vmatpush.msra.mxu0 %v199
    %1105 = vmatpush.msra.mxu0 %v195
    %1106 = vmatpush.msra.mxu0 %v191
    %1107 = vmatpush.msra.mxu0 %v187
    %1108 = vmatpush.msra.mxu0 %v183
    %1109 = vmatpush.msra.mxu0 %v179
    %1110 = vmatpush.msra.mxu0 %v175
    %1111 = vmatpush.msra.mxu0 %v171
    %1112 = vmatpush.msra.mxu0 %v167
    %1113 = vmatpush.msra.mxu0 %v163
    %1114 = vmatpush.msra.mxu0 %v159
    %1115 = vmatpush.msra.mxu0 %v155
    %1116 = vmatpush.msra.mxu0 %v151
    %1117 = vmatmul.f32.gmra.mxu0 %v997
    %v1118 = vpop.f32.mrf.mxu0
    %v1119 = vadd.f32 %v1099, %v1118
    %1120 = vdwg.mxu0
    %1121 = vmatpush.msra.mxu0 %v148
    %1122 = vmatpush.msra.mxu0 %v144
    %1123 = vmatpush.msra.mxu0 %v140
    %1124 = vmatpush.msra.mxu0 %v136
    %1125 = vmatpush.msra.mxu0 %v132
    %1126 = vmatpush.msra.mxu0 %v128
    %1127 = vmatpush.msra.mxu0 %v124
    %1128 = vmatpush.msra.mxu0 %v120
    %1129 = vmatpush.msra.mxu0 %v116
    %1130 = vmatpush.msra.mxu0 %v112
    %1131 = vmatpush.msra.mxu0 %v108
    %1132 = vmatpush.msra.mxu0 %v104
    %1133 = vmatpush.msra.mxu0 %v100
    %1134 = vmatpush.msra.mxu0 %v96
    %1135 = vmatpush.msra.mxu0 %v92
    %1136 = vmatpush.msra.mxu0 %v88
    %1137 = vmatmul.f32.gmra.mxu0 %v1000
    %v1138 = vpop.f32.mrf.mxu0
    %v1139 = vadd.f32 %v238, %v1138
    %1140 = vdwg.mxu0
    %1141 = vmatpush.msra.mxu0 %v212
    %1142 = vmatpush.msra.mxu0 %v208
    %1143 = vmatpush.msra.mxu0 %v204
    %1144 = vmatpush.msra.mxu0 %v200
    %1145 = vmatpush.msra.mxu0 %v196
    %1146 = vmatpush.msra.mxu0 %v192
    %1147 = vmatpush.msra.mxu0 %v188
    %1148 = vmatpush.msra.mxu0 %v184
    %1149 = vmatpush.msra.mxu0 %v180
    %1150 = vmatpush.msra.mxu0 %v176
    %1151 = vmatpush.msra.mxu0 %v172
    %1152 = vmatpush.msra.mxu0 %v168
    %1153 = vmatpush.msra.mxu0 %v164
    %1154 = vmatpush.msra.mxu0 %v160
    %1155 = vmatpush.msra.mxu0 %v156
    %1156 = vmatpush.msra.mxu0 %v152
    %1157 = vmatmul.f32.gmra.mxu0 %v997
    %v1158 = vpop.f32.mrf.mxu0
    %v1159 = vadd.f32 %v1139, %v1158
    %1160 = vdwg.mxu0
    %v1161 = vxor.u32 %v1039, 2147483648
    %v1162 = vmul.f32 %v1161, 1.442695
    %v1163 = vpow.pop %v1162
    %v1164 = vadd.f32 %v1163, 1.0
    %v1165 = vrcp.pop %v1164
    %v1166 = vmul.f32 %v1164, %v1165
    %v1167 = vsub.f32 1.0, %v1166
    %v1168 = vmul.f32 %v1165, %v1167
    %v1169 = vadd.f32 %v1165, %v1168
    %vm1170 = vweird.f32 %v1164
    %vm1171 = vweird.f32 %v1165
    %vm1172 = vmor %vm1170, %vm1171
    %v1173 = vsel %vm1172, %v1165, %v1169
    %v1174 = vand.u32 2147483647, %v1164
    %vm1175 = vcmp.eq.f32.partialorder %v1174, 8.507059e+37
    %v1176 = vand.u32 %v1164, 2147483648
    %v1177 = vor.u32 1.1754944e-38, %v1176
    %v1178 = vsel %vm1175, %v1177, %v1173
    %v1179 = vmul.f32 1.0, %v1178
    %v1180 = vxor.u32 %v1079, 2147483648
    %v1181 = vmul.f32 %v1180, 1.442695
    %v1182 = vpow.pop %v1181
    %v1183 = vadd.f32 %v1182, 1.0
    %v1184 = vrcp.pop %v1183
    %v1185 = vmul.f32 %v1183, %v1184
    %v1186 = vsub.f32 1.0, %v1185
    %v1187 = vmul.f32 %v1184, %v1186
    %v1188 = vadd.f32 %v1184, %v1187
    %vm1189 = vweird.f32 %v1183
    %vm1190 = vweird.f32 %v1184
    %vm1191 = vmor %vm1189, %vm1190
    %v1192 = vsel %vm1191, %v1184, %v1188
    %v1193 = vand.u32 2147483647, %v1183
    %vm1194 = vcmp.eq.f32.partialorder %v1193, 8.507059e+37
    %v1195 = vand.u32 %v1183, 2147483648
    %v1196 = vor.u32 1.1754944e-38, %v1195
    %v1197 = vsel %vm1194, %v1196, %v1192
    %v1198 = vmul.f32 1.0, %v1197
    %v1199 = vtanh.pop %v1119
    %v1200 = vxor.u32 %v1159, 2147483648
    %v1201 = vmul.f32 %v1200, 1.442695
    %v1202 = vpow.pop %v1201
    %v1203 = vadd.f32 %v1202, 1.0
    %v1204 = vrcp.pop %v1203
    %v1205 = vmul.f32 %v1203, %v1204
    %v1206 = vsub.f32 1.0, %v1205
    %v1207 = vmul.f32 %v1204, %v1206
    %v1208 = vadd.f32 %v1204, %v1207
    %vm1209 = vweird.f32 %v1203
    %vm1210 = vweird.f32 %v1204
    %vm1211 = vmor %vm1209, %vm1210
    %v1212 = vsel %vm1211, %v1204, %v1208
    %v1213 = vand.u32 2147483647, %v1203
    %vm1214 = vcmp.eq.f32.partialorder %v1213, 8.507059e+37
    %v1215 = vand.u32 %v1203, 2147483648
    %v1216 = vor.u32 1.1754944e-38, %v1215
    %v1217 = vsel %vm1214, %v1216, %v1212
    %v1218 = vmul.f32 1.0, %v1217
    %v1219 = vmul.f32 %v1198, %v998
    %v1220 = vmul.f32 %v1179, %v1199
    %v1221 = vadd.f32 %v1219, %v1220
    %v1222 = vtanh.pop %v1221
    %v1223 = vmul.f32 %v1218, %v1222
    %1224 = vmatpush.msra.mxu0 %v229
    %1225 = vmatpush.msra.mxu0 %v228
    %1226 = vmatpush.msra.mxu0 %v227
    %1227 = vmatpush.msra.mxu0 %v226
    %1228 = vmatpush.msra.mxu0 %v225
    %1229 = vmatpush.msra.mxu0 %v224
    %1230 = vmatpush.msra.mxu0 %v223
    %1231 = vmatpush.msra.mxu0 %v222
    %1232 = vmatpush.msra.mxu0 %v221
    %1233 = vmatpush.msra.mxu0 %v220
    %1234 = vmatpush.msra.mxu0 %v219
    %1235 = vmatpush.msra.mxu0 %v218
    %1236 = vmatpush.msra.mxu0 %v217
    %1237 = vmatpush.msra.mxu0 %v216
    %1238 = vmatpush.msra.mxu0 %v215
    %1239 = vmatpush.msra.mxu0 %v214
    %1240 = vmatmul.f32.gmra.mxu0 %v1223
    %v1241 = vpop.f32.mrf.mxu0
    %v1242 = vadd.f32 %v467, %v1241
    %1243 = vdwg.mxu0
    %1244 = vst [vmem:[#allocation2] sm:$0xff] %v1223
    %1245 = vst [vmem:[#allocation3] sm:$0xff] %v1221
    %1246 = vst [vmem:[#allocation4] sm:$0xff] %v1242
    %s1247 = scalar_lea.vmem [#allocation13], 24
    %1248 = vst [vmem:[%s1247] sm:$0xff] %v1242
    %v1249 = vld [vmem:[#allocation2] sm:$0xff]
    %v1250 = vld [vmem:[#allocation3] sm:$0xff]
    %s1251 = scalar_lea.vmem [#allocation5], 32
    %v1252 = vld [vmem:[%s1251] sm:$0xff]
    %1253 = vmatpush.msra.mxu0 %v145
    %1254 = vmatpush.msra.mxu0 %v141
    %1255 = vmatpush.msra.mxu0 %v137
    %1256 = vmatpush.msra.mxu0 %v133
    %1257 = vmatpush.msra.mxu0 %v129
    %1258 = vmatpush.msra.mxu0 %v125
    %1259 = vmatpush.msra.mxu0 %v121
    %1260 = vmatpush.msra.mxu0 %v117
    %1261 = vmatpush.msra.mxu0 %v113
    %1262 = vmatpush.msra.mxu0 %v109
    %1263 = vmatpush.msra.mxu0 %v105
    %1264 = vmatpush.msra.mxu0 %v101
    %1265 = vmatpush.msra.mxu0 %v97
    %1266 = vmatpush.msra.mxu0 %v93
    %1267 = vmatpush.msra.mxu0 %v89
    %1268 = vmatpush.msra.mxu0 %v85
    %1269 = vmatmul.f32.gmra.mxu0 %v1252
    %v1270 = vpop.f32.mrf.mxu0
    %v1271 = vadd.f32 %v235, %v1270
    %1272 = vdwg.mxu0
    %1273 = vmatpush.msra.mxu0 %v209
    %1274 = vmatpush.msra.mxu0 %v205
    %1275 = vmatpush.msra.mxu0 %v201
    %1276 = vmatpush.msra.mxu0 %v197
    %1277 = vmatpush.msra.mxu0 %v193
    %1278 = vmatpush.msra.mxu0 %v189
    %1279 = vmatpush.msra.mxu0 %v185
    %1280 = vmatpush.msra.mxu0 %v181
    %1281 = vmatpush.msra.mxu0 %v177
    %1282 = vmatpush.msra.mxu0 %v173
    %1283 = vmatpush.msra.mxu0 %v169
    %1284 = vmatpush.msra.mxu0 %v165
    %1285 = vmatpush.msra.mxu0 %v161
    %1286 = vmatpush.msra.mxu0 %v157
    %1287 = vmatpush.msra.mxu0 %v153
    %1288 = vmatpush.msra.mxu0 %v149
    %1289 = vmatmul.f32.gmra.mxu0 %v1249
    %v1290 = vpop.f32.mrf.mxu0
    %v1291 = vadd.f32 %v1271, %v1290
    %1292 = vdwg.mxu0
    %1293 = vmatpush.msra.mxu0 %v146
    %1294 = vmatpush.msra.mxu0 %v142
    %1295 = vmatpush.msra.mxu0 %v138
    %1296 = vmatpush.msra.mxu0 %v134
    %1297 = vmatpush.msra.mxu0 %v130
    %1298 = vmatpush.msra.mxu0 %v126
    %1299 = vmatpush.msra.mxu0 %v122
    %1300 = vmatpush.msra.mxu0 %v118
    %1301 = vmatpush.msra.mxu0 %v114
    %1302 = vmatpush.msra.mxu0 %v110
    %1303 = vmatpush.msra.mxu0 %v106
    %1304 = vmatpush.msra.mxu0 %v102
    %1305 = vmatpush.msra.mxu0 %v98
    %1306 = vmatpush.msra.mxu0 %v94
    %1307 = vmatpush.msra.mxu0 %v90
    %1308 = vmatpush.msra.mxu0 %v86
    %1309 = vmatmul.f32.gmra.mxu0 %v1252
    %v1310 = vpop.f32.mrf.mxu0
    %v1311 = vadd.f32 %v236, %v1310
    %1312 = vdwg.mxu0
    %1313 = vmatpush.msra.mxu0 %v210
    %1314 = vmatpush.msra.mxu0 %v206
    %1315 = vmatpush.msra.mxu0 %v202
    %1316 = vmatpush.msra.mxu0 %v198
    %1317 = vmatpush.msra.mxu0 %v194
    %1318 = vmatpush.msra.mxu0 %v190
    %1319 = vmatpush.msra.mxu0 %v186
    %1320 = vmatpush.msra.mxu0 %v182
    %1321 = vmatpush.msra.mxu0 %v178
    %1322 = vmatpush.msra.mxu0 %v174
    %1323 = vmatpush.msra.mxu0 %v170
    %1324 = vmatpush.msra.mxu0 %v166
    %1325 = vmatpush.msra.mxu0 %v162
    %1326 = vmatpush.msra.mxu0 %v158
    %1327 = vmatpush.msra.mxu0 %v154
    %1328 = vmatpush.msra.mxu0 %v150
    %1329 = vmatmul.f32.gmra.mxu0 %v1249
    %v1330 = vpop.f32.mrf.mxu0
    %v1331 = vadd.f32 %v1311, %v1330
    %1332 = vdwg.mxu0
    %1333 = vmatpush.msra.mxu0 %v147
    %1334 = vmatpush.msra.mxu0 %v143
    %1335 = vmatpush.msra.mxu0 %v139
    %1336 = vmatpush.msra.mxu0 %v135
    %1337 = vmatpush.msra.mxu0 %v131
    %1338 = vmatpush.msra.mxu0 %v127
    %1339 = vmatpush.msra.mxu0 %v123
    %1340 = vmatpush.msra.mxu0 %v119
    %1341 = vmatpush.msra.mxu0 %v115
    %1342 = vmatpush.msra.mxu0 %v111
    %1343 = vmatpush.msra.mxu0 %v107
    %1344 = vmatpush.msra.mxu0 %v103
    %1345 = vmatpush.msra.mxu0 %v99
    %1346 = vmatpush.msra.mxu0 %v95
    %1347 = vmatpush.msra.mxu0 %v91
    %1348 = vmatpush.msra.mxu0 %v87
    %1349 = vmatmul.f32.gmra.mxu0 %v1252
    %v1350 = vpop.f32.mrf.mxu0
    %v1351 = vadd.f32 %v237, %v1350
    %1352 = vdwg.mxu0
    %1353 = vmatpush.msra.mxu0 %v211
    %1354 = vmatpush.msra.mxu0 %v207
    %1355 = vmatpush.msra.mxu0 %v203
    %1356 = vmatpush.msra.mxu0 %v199
    %1357 = vmatpush.msra.mxu0 %v195
    %1358 = vmatpush.msra.mxu0 %v191
    %1359 = vmatpush.msra.mxu0 %v187
    %1360 = vmatpush.msra.mxu0 %v183
    %1361 = vmatpush.msra.mxu0 %v179
    %1362 = vmatpush.msra.mxu0 %v175
    %1363 = vmatpush.msra.mxu0 %v171
    %1364 = vmatpush.msra.mxu0 %v167
    %1365 = vmatpush.msra.mxu0 %v163
    %1366 = vmatpush.msra.mxu0 %v159
    %1367 = vmatpush.msra.mxu0 %v155
    %1368 = vmatpush.msra.mxu0 %v151
    %1369 = vmatmul.f32.gmra.mxu0 %v1249
    %v1370 = vpop.f32.mrf.mxu0
    %v1371 = vadd.f32 %v1351, %v1370
    %1372 = vdwg.mxu0
    %1373 = vmatpush.msra.mxu0 %v148
    %1374 = vmatpush.msra.mxu0 %v144
    %1375 = vmatpush.msra.mxu0 %v140
    %1376 = vmatpush.msra.mxu0 %v136
    %1377 = vmatpush.msra.mxu0 %v132
    %1378 = vmatpush.msra.mxu0 %v128
    %1379 = vmatpush.msra.mxu0 %v124
    %1380 = vmatpush.msra.mxu0 %v120
    %1381 = vmatpush.msra.mxu0 %v116
    %1382 = vmatpush.msra.mxu0 %v112
    %1383 = vmatpush.msra.mxu0 %v108
    %1384 = vmatpush.msra.mxu0 %v104
    %1385 = vmatpush.msra.mxu0 %v100
    %1386 = vmatpush.msra.mxu0 %v96
    %1387 = vmatpush.msra.mxu0 %v92
    %1388 = vmatpush.msra.mxu0 %v88
    %1389 = vmatmul.f32.gmra.mxu0 %v1252
    %v1390 = vpop.f32.mrf.mxu0
    %v1391 = vadd.f32 %v238, %v1390
    %1392 = vdwg.mxu0
    %1393 = vmatpush.msra.mxu0 %v212
    %1394 = vmatpush.msra.mxu0 %v208
    %1395 = vmatpush.msra.mxu0 %v204
    %1396 = vmatpush.msra.mxu0 %v200
    %1397 = vmatpush.msra.mxu0 %v196
    %1398 = vmatpush.msra.mxu0 %v192
    %1399 = vmatpush.msra.mxu0 %v188
    %1400 = vmatpush.msra.mxu0 %v184
    %1401 = vmatpush.msra.mxu0 %v180
    %1402 = vmatpush.msra.mxu0 %v176
    %1403 = vmatpush.msra.mxu0 %v172
    %1404 = vmatpush.msra.mxu0 %v168
    %1405 = vmatpush.msra.mxu0 %v164
    %1406 = vmatpush.msra.mxu0 %v160
    %1407 = vmatpush.msra.mxu0 %v156
    %1408 = vmatpush.msra.mxu0 %v152
    %1409 = vmatmul.f32.gmra.mxu0 %v1249
    %v1410 = vpop.f32.mrf.mxu0
    %v1411 = vadd.f32 %v1391, %v1410
    %1412 = vdwg.mxu0
    %v1413 = vxor.u32 %v1291, 2147483648
    %v1414 = vmul.f32 %v1413, 1.442695
    %v1415 = vpow.pop %v1414
    %v1416 = vadd.f32 %v1415, 1.0
    %v1417 = vrcp.pop %v1416
    %v1418 = vmul.f32 %v1416, %v1417
    %v1419 = vsub.f32 1.0, %v1418
    %v1420 = vmul.f32 %v1417, %v1419
    %v1421 = vadd.f32 %v1417, %v1420
    %vm1422 = vweird.f32 %v1416
    %vm1423 = vweird.f32 %v1417
    %vm1424 = vmor %vm1422, %vm1423
    %v1425 = vsel %vm1424, %v1417, %v1421
    %v1426 = vand.u32 2147483647, %v1416
    %vm1427 = vcmp.eq.f32.partialorder %v1426, 8.507059e+37
    %v1428 = vand.u32 %v1416, 2147483648
    %v1429 = vor.u32 1.1754944e-38, %v1428
    %v1430 = vsel %vm1427, %v1429, %v1425
    %v1431 = vmul.f32 1.0, %v1430
    %v1432 = vxor.u32 %v1331, 2147483648
    %v1433 = vmul.f32 %v1432, 1.442695
    %v1434 = vpow.pop %v1433
    %v1435 = vadd.f32 %v1434, 1.0
    %v1436 = vrcp.pop %v1435
    %v1437 = vmul.f32 %v1435, %v1436
    %v1438 = vsub.f32 1.0, %v1437
    %v1439 = vmul.f32 %v1436, %v1438
    %v1440 = vadd.f32 %v1436, %v1439
    %vm1441 = vweird.f32 %v1435
    %vm1442 = vweird.f32 %v1436
    %vm1443 = vmor %vm1441, %vm1442
    %v1444 = vsel %vm1443, %v1436, %v1440
    %v1445 = vand.u32 2147483647, %v1435
    %vm1446 = vcmp.eq.f32.partialorder %v1445, 8.507059e+37
    %v1447 = vand.u32 %v1435, 2147483648
    %v1448 = vor.u32 1.1754944e-38, %v1447
    %v1449 = vsel %vm1446, %v1448, %v1444
    %v1450 = vmul.f32 1.0, %v1449
    %v1451 = vtanh.pop %v1371
    %v1452 = vxor.u32 %v1411, 2147483648
    %v1453 = vmul.f32 %v1452, 1.442695
    %v1454 = vpow.pop %v1453
    %v1455 = vadd.f32 %v1454, 1.0
    %v1456 = vrcp.pop %v1455
    %v1457 = vmul.f32 %v1455, %v1456
    %v1458 = vsub.f32 1.0, %v1457
    %v1459 = vmul.f32 %v1456, %v1458
    %v1460 = vadd.f32 %v1456, %v1459
    %vm1461 = vweird.f32 %v1455
    %vm1462 = vweird.f32 %v1456
    %vm1463 = vmor %vm1461, %vm1462
    %v1464 = vsel %vm1463, %v1456, %v1460
    %v1465 = vand.u32 2147483647, %v1455
    %vm1466 = vcmp.eq.f32.partialorder %v1465, 8.507059e+37
    %v1467 = vand.u32 %v1455, 2147483648
    %v1468 = vor.u32 1.1754944e-38, %v1467
    %v1469 = vsel %vm1466, %v1468, %v1464
    %v1470 = vmul.f32 1.0, %v1469
    %v1471 = vmul.f32 %v1450, %v1250
    %v1472 = vmul.f32 %v1431, %v1451
    %v1473 = vadd.f32 %v1471, %v1472
    %v1474 = vtanh.pop %v1473
    %v1475 = vmul.f32 %v1470, %v1474
    %1476 = vmatpush.msra.mxu0 %v229
    %1477 = vmatpush.msra.mxu0 %v228
    %1478 = vmatpush.msra.mxu0 %v227
    %1479 = vmatpush.msra.mxu0 %v226
    %1480 = vmatpush.msra.mxu0 %v225
    %1481 = vmatpush.msra.mxu0 %v224
    %1482 = vmatpush.msra.mxu0 %v223
    %1483 = vmatpush.msra.mxu0 %v222
    %1484 = vmatpush.msra.mxu0 %v221
    %1485 = vmatpush.msra.mxu0 %v220
    %1486 = vmatpush.msra.mxu0 %v219
    %1487 = vmatpush.msra.mxu0 %v218
    %1488 = vmatpush.msra.mxu0 %v217
    %1489 = vmatpush.msra.mxu0 %v216
    %1490 = vmatpush.msra.mxu0 %v215
    %1491 = vmatpush.msra.mxu0 %v214
    %1492 = vmatmul.f32.gmra.mxu0 %v1475
    %v1493 = vpop.f32.mrf.mxu0
    %v1494 = vadd.f32 %v467, %v1493
    %1495 = vdwg.mxu0
    %1496 = vst [vmem:[#allocation2] sm:$0xff] %v1475
    %1497 = vst [vmem:[#allocation3] sm:$0xff] %v1473
    %1498 = vst [vmem:[#allocation4] sm:$0xff] %v1494
    %s1499 = scalar_lea.vmem [#allocation13], 32
    %1500 = vst [vmem:[%s1499] sm:$0xff] %v1494
    %v1501 = vld [vmem:[#allocation2] sm:$0xff]
    %v1502 = vld [vmem:[#allocation3] sm:$0xff]
    %s1503 = scalar_lea.vmem [#allocation5], 40
    %v1504 = vld [vmem:[%s1503] sm:$0xff]
    %1505 = vmatpush.msra.mxu0 %v145
    %1506 = vmatpush.msra.mxu0 %v141
    %1507 = vmatpush.msra.mxu0 %v137
    %1508 = vmatpush.msra.mxu0 %v133
    %1509 = vmatpush.msra.mxu0 %v129
    %1510 = vmatpush.msra.mxu0 %v125
    %1511 = vmatpush.msra.mxu0 %v121
    %1512 = vmatpush.msra.mxu0 %v117
    %1513 = vmatpush.msra.mxu0 %v113
    %1514 = vmatpush.msra.mxu0 %v109
    %1515 = vmatpush.msra.mxu0 %v105
    %1516 = vmatpush.msra.mxu0 %v101
    %1517 = vmatpush.msra.mxu0 %v97
    %1518 = vmatpush.msra.mxu0 %v93
    %1519 = vmatpush.msra.mxu0 %v89
    %1520 = vmatpush.msra.mxu0 %v85
    %1521 = vmatmul.f32.gmra.mxu0 %v1504
    %v1522 = vpop.f32.mrf.mxu0
    %v1523 = vadd.f32 %v235, %v1522
    %1524 = vdwg.mxu0
    %1525 = vmatpush.msra.mxu0 %v209
    %1526 = vmatpush.msra.mxu0 %v205
    %1527 = vmatpush.msra.mxu0 %v201
    %1528 = vmatpush.msra.mxu0 %v197
    %1529 = vmatpush.msra.mxu0 %v193
    %1530 = vmatpush.msra.mxu0 %v189
    %1531 = vmatpush.msra.mxu0 %v185
    %1532 = vmatpush.msra.mxu0 %v181
    %1533 = vmatpush.msra.mxu0 %v177
    %1534 = vmatpush.msra.mxu0 %v173
    %1535 = vmatpush.msra.mxu0 %v169
    %1536 = vmatpush.msra.mxu0 %v165
    %1537 = vmatpush.msra.mxu0 %v161
    %1538 = vmatpush.msra.mxu0 %v157
    %1539 = vmatpush.msra.mxu0 %v153
    %1540 = vmatpush.msra.mxu0 %v149
    %1541 = vmatmul.f32.gmra.mxu0 %v1501
    %v1542 = vpop.f32.mrf.mxu0
    %v1543 = vadd.f32 %v1523, %v1542
    %1544 = vdwg.mxu0
    %1545 = vmatpush.msra.mxu0 %v146
    %1546 = vmatpush.msra.mxu0 %v142
    %1547 = vmatpush.msra.mxu0 %v138
    %1548 = vmatpush.msra.mxu0 %v134
    %1549 = vmatpush.msra.mxu0 %v130
    %1550 = vmatpush.msra.mxu0 %v126
    %1551 = vmatpush.msra.mxu0 %v122
    %1552 = vmatpush.msra.mxu0 %v118
    %1553 = vmatpush.msra.mxu0 %v114
    %1554 = vmatpush.msra.mxu0 %v110
    %1555 = vmatpush.msra.mxu0 %v106
    %1556 = vmatpush.msra.mxu0 %v102
    %1557 = vmatpush.msra.mxu0 %v98
    %1558 = vmatpush.msra.mxu0 %v94
    %1559 = vmatpush.msra.mxu0 %v90
    %1560 = vmatpush.msra.mxu0 %v86
    %1561 = vmatmul.f32.gmra.mxu0 %v1504
    %v1562 = vpop.f32.mrf.mxu0
    %v1563 = vadd.f32 %v236, %v1562
    %1564 = vdwg.mxu0
    %1565 = vmatpush.msra.mxu0 %v210
    %1566 = vmatpush.msra.mxu0 %v206
    %1567 = vmatpush.msra.mxu0 %v202
    %1568 = vmatpush.msra.mxu0 %v198
    %1569 = vmatpush.msra.mxu0 %v194
    %1570 = vmatpush.msra.mxu0 %v190
    %1571 = vmatpush.msra.mxu0 %v186
    %1572 = vmatpush.msra.mxu0 %v182
    %1573 = vmatpush.msra.mxu0 %v178
    %1574 = vmatpush.msra.mxu0 %v174
    %1575 = vmatpush.msra.mxu0 %v170
    %1576 = vmatpush.msra.mxu0 %v166
    %1577 = vmatpush.msra.mxu0 %v162
    %1578 = vmatpush.msra.mxu0 %v158
    %1579 = vmatpush.msra.mxu0 %v154
    %1580 = vmatpush.msra.mxu0 %v150
    %1581 = vmatmul.f32.gmra.mxu0 %v1501
    %v1582 = vpop.f32.mrf.mxu0
    %v1583 = vadd.f32 %v1563, %v1582
    %1584 = vdwg.mxu0
    %1585 = vmatpush.msra.mxu0 %v147
    %1586 = vmatpush.msra.mxu0 %v143
    %1587 = vmatpush.msra.mxu0 %v139
    %1588 = vmatpush.msra.mxu0 %v135
    %1589 = vmatpush.msra.mxu0 %v131
    %1590 = vmatpush.msra.mxu0 %v127
    %1591 = vmatpush.msra.mxu0 %v123
    %1592 = vmatpush.msra.mxu0 %v119
    %1593 = vmatpush.msra.mxu0 %v115
    %1594 = vmatpush.msra.mxu0 %v111
    %1595 = vmatpush.msra.mxu0 %v107
    %1596 = vmatpush.msra.mxu0 %v103
    %1597 = vmatpush.msra.mxu0 %v99
    %1598 = vmatpush.msra.mxu0 %v95
    %1599 = vmatpush.msra.mxu0 %v91
    %1600 = vmatpush.msra.mxu0 %v87
    %1601 = vmatmul.f32.gmra.mxu0 %v1504
    %v1602 = vpop.f32.mrf.mxu0
    %v1603 = vadd.f32 %v237, %v1602
    %1604 = vdwg.mxu0
    %1605 = vmatpush.msra.mxu0 %v211
    %1606 = vmatpush.msra.mxu0 %v207
    %1607 = vmatpush.msra.mxu0 %v203
    %1608 = vmatpush.msra.mxu0 %v199
    %1609 = vmatpush.msra.mxu0 %v195
    %1610 = vmatpush.msra.mxu0 %v191
    %1611 = vmatpush.msra.mxu0 %v187
    %1612 = vmatpush.msra.mxu0 %v183
    %1613 = vmatpush.msra.mxu0 %v179
    %1614 = vmatpush.msra.mxu0 %v175
    %1615 = vmatpush.msra.mxu0 %v171
    %1616 = vmatpush.msra.mxu0 %v167
    %1617 = vmatpush.msra.mxu0 %v163
    %1618 = vmatpush.msra.mxu0 %v159
    %1619 = vmatpush.msra.mxu0 %v155
    %1620 = vmatpush.msra.mxu0 %v151
    %1621 = vmatmul.f32.gmra.mxu0 %v1501
    %v1622 = vpop.f32.mrf.mxu0
    %v1623 = vadd.f32 %v1603, %v1622
    %1624 = vdwg.mxu0
    %1625 = vmatpush.msra.mxu0 %v148
    %1626 = vmatpush.msra.mxu0 %v144
    %1627 = vmatpush.msra.mxu0 %v140
    %1628 = vmatpush.msra.mxu0 %v136
    %1629 = vmatpush.msra.mxu0 %v132
    %1630 = vmatpush.msra.mxu0 %v128
    %1631 = vmatpush.msra.mxu0 %v124
    %1632 = vmatpush.msra.mxu0 %v120
    %1633 = vmatpush.msra.mxu0 %v116
    %1634 = vmatpush.msra.mxu0 %v112
    %1635 = vmatpush.msra.mxu0 %v108
    %1636 = vmatpush.msra.mxu0 %v104
    %1637 = vmatpush.msra.mxu0 %v100
    %1638 = vmatpush.msra.mxu0 %v96
    %1639 = vmatpush.msra.mxu0 %v92
    %1640 = vmatpush.msra.mxu0 %v88
    %1641 = vmatmul.f32.gmra.mxu0 %v1504
    %v1642 = vpop.f32.mrf.mxu0
    %v1643 = vadd.f32 %v238, %v1642
    %1644 = vdwg.mxu0
    %1645 = vmatpush.msra.mxu0 %v212
    %1646 = vmatpush.msra.mxu0 %v208
    %1647 = vmatpush.msra.mxu0 %v204
    %1648 = vmatpush.msra.mxu0 %v200
    %1649 = vmatpush.msra.mxu0 %v196
    %1650 = vmatpush.msra.mxu0 %v192
    %1651 = vmatpush.msra.mxu0 %v188
    %1652 = vmatpush.msra.mxu0 %v184
    %1653 = vmatpush.msra.mxu0 %v180
    %1654 = vmatpush.msra.mxu0 %v176
    %1655 = vmatpush.msra.mxu0 %v172
    %1656 = vmatpush.msra.mxu0 %v168
    %1657 = vmatpush.msra.mxu0 %v164
    %1658 = vmatpush.msra.mxu0 %v160
    %1659 = vmatpush.msra.mxu0 %v156
    %1660 = vmatpush.msra.mxu0 %v152
    %1661 = vmatmul.f32.gmra.mxu0 %v1501
    %v1662 = vpop.f32.mrf.mxu0
    %v1663 = vadd.f32 %v1643, %v1662
    %1664 = vdwg.mxu0
    %v1665 = vxor.u32 %v1543, 2147483648
    %v1666 = vmul.f32 %v1665, 1.442695
    %v1667 = vpow.pop %v1666
    %v1668 = vadd.f32 %v1667, 1.0
    %v1669 = vrcp.pop %v1668
    %v1670 = vmul.f32 %v1668, %v1669
    %v1671 = vsub.f32 1.0, %v1670
    %v1672 = vmul.f32 %v1669, %v1671
    %v1673 = vadd.f32 %v1669, %v1672
    %vm1674 = vweird.f32 %v1668
    %vm1675 = vweird.f32 %v1669
    %vm1676 = vmor %vm1674, %vm1675
    %v1677 = vsel %vm1676, %v1669, %v1673
    %v1678 = vand.u32 2147483647, %v1668
    %vm1679 = vcmp.eq.f32.partialorder %v1678, 8.507059e+37
    %v1680 = vand.u32 %v1668, 2147483648
    %v1681 = vor.u32 1.1754944e-38, %v1680
    %v1682 = vsel %vm1679, %v1681, %v1677
    %v1683 = vmul.f32 1.0, %v1682
    %v1684 = vxor.u32 %v1583, 2147483648
    %v1685 = vmul.f32 %v1684, 1.442695
    %v1686 = vpow.pop %v1685
    %v1687 = vadd.f32 %v1686, 1.0
    %v1688 = vrcp.pop %v1687
    %v1689 = vmul.f32 %v1687, %v1688
    %v1690 = vsub.f32 1.0, %v1689
    %v1691 = vmul.f32 %v1688, %v1690
    %v1692 = vadd.f32 %v1688, %v1691
    %vm1693 = vweird.f32 %v1687
    %vm1694 = vweird.f32 %v1688
    %vm1695 = vmor %vm1693, %vm1694
    %v1696 = vsel %vm1695, %v1688, %v1692
    %v1697 = vand.u32 2147483647, %v1687
    %vm1698 = vcmp.eq.f32.partialorder %v1697, 8.507059e+37
    %v1699 = vand.u32 %v1687, 2147483648
    %v1700 = vor.u32 1.1754944e-38, %v1699
    %v1701 = vsel %vm1698, %v1700, %v1696
    %v1702 = vmul.f32 1.0, %v1701
    %v1703 = vtanh.pop %v1623
    %v1704 = vxor.u32 %v1663, 2147483648
    %v1705 = vmul.f32 %v1704, 1.442695
    %v1706 = vpow.pop %v1705
    %v1707 = vadd.f32 %v1706, 1.0
    %v1708 = vrcp.pop %v1707
    %v1709 = vmul.f32 %v1707, %v1708
    %v1710 = vsub.f32 1.0, %v1709
    %v1711 = vmul.f32 %v1708, %v1710
    %v1712 = vadd.f32 %v1708, %v1711
    %vm1713 = vweird.f32 %v1707
    %vm1714 = vweird.f32 %v1708
    %vm1715 = vmor %vm1713, %vm1714
    %v1716 = vsel %vm1715, %v1708, %v1712
    %v1717 = vand.u32 2147483647, %v1707
    %vm1718 = vcmp.eq.f32.partialorder %v1717, 8.507059e+37
    %v1719 = vand.u32 %v1707, 2147483648
    %v1720 = vor.u32 1.1754944e-38, %v1719
    %v1721 = vsel %vm1718, %v1720, %v1716
    %v1722 = vmul.f32 1.0, %v1721
    %v1723 = vmul.f32 %v1702, %v1502
    %v1724 = vmul.f32 %v1683, %v1703
    %v1725 = vadd.f32 %v1723, %v1724
    %v1726 = vtanh.pop %v1725
    %v1727 = vmul.f32 %v1722, %v1726
    %1728 = vmatpush.msra.mxu0 %v229
    %1729 = vmatpush.msra.mxu0 %v228
    %1730 = vmatpush.msra.mxu0 %v227
    %1731 = vmatpush.msra.mxu0 %v226
    %1732 = vmatpush.msra.mxu0 %v225
    %1733 = vmatpush.msra.mxu0 %v224
    %1734 = vmatpush.msra.mxu0 %v223
    %1735 = vmatpush.msra.mxu0 %v222
    %1736 = vmatpush.msra.mxu0 %v221
    %1737 = vmatpush.msra.mxu0 %v220
    %1738 = vmatpush.msra.mxu0 %v219
    %1739 = vmatpush.msra.mxu0 %v218
    %1740 = vmatpush.msra.mxu0 %v217
    %1741 = vmatpush.msra.mxu0 %v216
    %1742 = vmatpush.msra.mxu0 %v215
    %1743 = vmatpush.msra.mxu0 %v214
    %1744 = vmatmul.f32.gmra.mxu0 %v1727
    %v1745 = vpop.f32.mrf.mxu0
    %v1746 = vadd.f32 %v467, %v1745
    %1747 = vdwg.mxu0
    %1748 = vst [vmem:[#allocation2] sm:$0xff] %v1727
    %1749 = vst [vmem:[#allocation3] sm:$0xff] %v1725
    %1750 = vst [vmem:[#allocation4] sm:$0xff] %v1746
    %s1751 = scalar_lea.vmem [#allocation13], 40
    %1752 = vst [vmem:[%s1751] sm:$0xff] %v1746
    %v1753 = vld [vmem:[#allocation2] sm:$0xff]
    %v1754 = vld [vmem:[#allocation3] sm:$0xff]
    %s1755 = scalar_lea.vmem [#allocation5], 48
    %v1756 = vld [vmem:[%s1755] sm:$0xff]
    %1757 = vmatpush.msra.mxu0 %v145
    %1758 = vmatpush.msra.mxu0 %v141
    %1759 = vmatpush.msra.mxu0 %v137
    %1760 = vmatpush.msra.mxu0 %v133
    %1761 = vmatpush.msra.mxu0 %v129
    %1762 = vmatpush.msra.mxu0 %v125
    %1763 = vmatpush.msra.mxu0 %v121
    %1764 = vmatpush.msra.mxu0 %v117
    %1765 = vmatpush.msra.mxu0 %v113
    %1766 = vmatpush.msra.mxu0 %v109
    %1767 = vmatpush.msra.mxu0 %v105
    %1768 = vmatpush.msra.mxu0 %v101
    %1769 = vmatpush.msra.mxu0 %v97
    %1770 = vmatpush.msra.mxu0 %v93
    %1771 = vmatpush.msra.mxu0 %v89
    %1772 = vmatpush.msra.mxu0 %v85
    %1773 = vmatmul.f32.gmra.mxu0 %v1756
    %v1774 = vpop.f32.mrf.mxu0
    %v1775 = vadd.f32 %v235, %v1774
    %1776 = vdwg.mxu0
    %1777 = vmatpush.msra.mxu0 %v209
    %1778 = vmatpush.msra.mxu0 %v205
    %1779 = vmatpush.msra.mxu0 %v201
    %1780 = vmatpush.msra.mxu0 %v197
    %1781 = vmatpush.msra.mxu0 %v193
    %1782 = vmatpush.msra.mxu0 %v189
    %1783 = vmatpush.msra.mxu0 %v185
    %1784 = vmatpush.msra.mxu0 %v181
    %1785 = vmatpush.msra.mxu0 %v177
    %1786 = vmatpush.msra.mxu0 %v173
    %1787 = vmatpush.msra.mxu0 %v169
    %1788 = vmatpush.msra.mxu0 %v165
    %1789 = vmatpush.msra.mxu0 %v161
    %1790 = vmatpush.msra.mxu0 %v157
    %1791 = vmatpush.msra.mxu0 %v153
    %1792 = vmatpush.msra.mxu0 %v149
    %1793 = vmatmul.f32.gmra.mxu0 %v1753
    %v1794 = vpop.f32.mrf.mxu0
    %v1795 = vadd.f32 %v1775, %v1794
    %1796 = vdwg.mxu0
    %1797 = vmatpush.msra.mxu0 %v146
    %1798 = vmatpush.msra.mxu0 %v142
    %1799 = vmatpush.msra.mxu0 %v138
    %1800 = vmatpush.msra.mxu0 %v134
    %1801 = vmatpush.msra.mxu0 %v130
    %1802 = vmatpush.msra.mxu0 %v126
    %1803 = vmatpush.msra.mxu0 %v122
    %1804 = vmatpush.msra.mxu0 %v118
    %1805 = vmatpush.msra.mxu0 %v114
    %1806 = vmatpush.msra.mxu0 %v110
    %1807 = vmatpush.msra.mxu0 %v106
    %1808 = vmatpush.msra.mxu0 %v102
    %1809 = vmatpush.msra.mxu0 %v98
    %1810 = vmatpush.msra.mxu0 %v94
    %1811 = vmatpush.msra.mxu0 %v90
    %1812 = vmatpush.msra.mxu0 %v86
    %1813 = vmatmul.f32.gmra.mxu0 %v1756
    %v1814 = vpop.f32.mrf.mxu0
    %v1815 = vadd.f32 %v236, %v1814
    %1816 = vdwg.mxu0
    %1817 = vmatpush.msra.mxu0 %v210
    %1818 = vmatpush.msra.mxu0 %v206
    %1819 = vmatpush.msra.mxu0 %v202
    %1820 = vmatpush.msra.mxu0 %v198
    %1821 = vmatpush.msra.mxu0 %v194
    %1822 = vmatpush.msra.mxu0 %v190
    %1823 = vmatpush.msra.mxu0 %v186
    %1824 = vmatpush.msra.mxu0 %v182
    %1825 = vmatpush.msra.mxu0 %v178
    %1826 = vmatpush.msra.mxu0 %v174
    %1827 = vmatpush.msra.mxu0 %v170
    %1828 = vmatpush.msra.mxu0 %v166
    %1829 = vmatpush.msra.mxu0 %v162
    %1830 = vmatpush.msra.mxu0 %v158
    %1831 = vmatpush.msra.mxu0 %v154
    %1832 = vmatpush.msra.mxu0 %v150
    %1833 = vmatmul.f32.gmra.mxu0 %v1753
    %v1834 = vpop.f32.mrf.mxu0
    %v1835 = vadd.f32 %v1815, %v1834
    %1836 = vdwg.mxu0
    %1837 = vmatpush.msra.mxu0 %v147
    %1838 = vmatpush.msra.mxu0 %v143
    %1839 = vmatpush.msra.mxu0 %v139
    %1840 = vmatpush.msra.mxu0 %v135
    %1841 = vmatpush.msra.mxu0 %v131
    %1842 = vmatpush.msra.mxu0 %v127
    %1843 = vmatpush.msra.mxu0 %v123
    %1844 = vmatpush.msra.mxu0 %v119
    %1845 = vmatpush.msra.mxu0 %v115
    %1846 = vmatpush.msra.mxu0 %v111
    %1847 = vmatpush.msra.mxu0 %v107
    %1848 = vmatpush.msra.mxu0 %v103
    %1849 = vmatpush.msra.mxu0 %v99
    %1850 = vmatpush.msra.mxu0 %v95
    %1851 = vmatpush.msra.mxu0 %v91
    %1852 = vmatpush.msra.mxu0 %v87
    %1853 = vmatmul.f32.gmra.mxu0 %v1756
    %v1854 = vpop.f32.mrf.mxu0
    %v1855 = vadd.f32 %v237, %v1854
    %1856 = vdwg.mxu0
    %1857 = vmatpush.msra.mxu0 %v211
    %1858 = vmatpush.msra.mxu0 %v207
    %1859 = vmatpush.msra.mxu0 %v203
    %1860 = vmatpush.msra.mxu0 %v199
    %1861 = vmatpush.msra.mxu0 %v195
    %1862 = vmatpush.msra.mxu0 %v191
    %1863 = vmatpush.msra.mxu0 %v187
    %1864 = vmatpush.msra.mxu0 %v183
    %1865 = vmatpush.msra.mxu0 %v179
    %1866 = vmatpush.msra.mxu0 %v175
    %1867 = vmatpush.msra.mxu0 %v171
    %1868 = vmatpush.msra.mxu0 %v167
    %1869 = vmatpush.msra.mxu0 %v163
    %1870 = vmatpush.msra.mxu0 %v159
    %1871 = vmatpush.msra.mxu0 %v155
    %1872 = vmatpush.msra.mxu0 %v151
    %1873 = vmatmul.f32.gmra.mxu0 %v1753
    %v1874 = vpop.f32.mrf.mxu0
    %v1875 = vadd.f32 %v1855, %v1874
    %1876 = vdwg.mxu0
    %1877 = vmatpush.msra.mxu0 %v148
    %1878 = vmatpush.msra.mxu0 %v144
    %1879 = vmatpush.msra.mxu0 %v140
    %1880 = vmatpush.msra.mxu0 %v136
    %1881 = vmatpush.msra.mxu0 %v132
    %1882 = vmatpush.msra.mxu0 %v128
    %1883 = vmatpush.msra.mxu0 %v124
    %1884 = vmatpush.msra.mxu0 %v120
    %1885 = vmatpush.msra.mxu0 %v116
    %1886 = vmatpush.msra.mxu0 %v112
    %1887 = vmatpush.msra.mxu0 %v108
    %1888 = vmatpush.msra.mxu0 %v104
    %1889 = vmatpush.msra.mxu0 %v100
    %1890 = vmatpush.msra.mxu0 %v96
    %1891 = vmatpush.msra.mxu0 %v92
    %1892 = vmatpush.msra.mxu0 %v88
    %1893 = vmatmul.f32.gmra.mxu0 %v1756
    %v1894 = vpop.f32.mrf.mxu0
    %v1895 = vadd.f32 %v238, %v1894
    %1896 = vdwg.mxu0
    %1897 = vmatpush.msra.mxu0 %v212
    %1898 = vmatpush.msra.mxu0 %v208
    %1899 = vmatpush.msra.mxu0 %v204
    %1900 = vmatpush.msra.mxu0 %v200
    %1901 = vmatpush.msra.mxu0 %v196
    %1902 = vmatpush.msra.mxu0 %v192
    %1903 = vmatpush.msra.mxu0 %v188
    %1904 = vmatpush.msra.mxu0 %v184
    %1905 = vmatpush.msra.mxu0 %v180
    %1906 = vmatpush.msra.mxu0 %v176
    %1907 = vmatpush.msra.mxu0 %v172
    %1908 = vmatpush.msra.mxu0 %v168
    %1909 = vmatpush.msra.mxu0 %v164
    %1910 = vmatpush.msra.mxu0 %v160
    %1911 = vmatpush.msra.mxu0 %v156
    %1912 = vmatpush.msra.mxu0 %v152
    %1913 = vmatmul.f32.gmra.mxu0 %v1753
    %v1914 = vpop.f32.mrf.mxu0
    %v1915 = vadd.f32 %v1895, %v1914
    %1916 = vdwg.mxu0
    %v1917 = vxor.u32 %v1795, 2147483648
    %v1918 = vmul.f32 %v1917, 1.442695
    %v1919 = vpow.pop %v1918
    %v1920 = vadd.f32 %v1919, 1.0
    %v1921 = vrcp.pop %v1920
    %v1922 = vmul.f32 %v1920, %v1921
    %v1923 = vsub.f32 1.0, %v1922
    %v1924 = vmul.f32 %v1921, %v1923
    %v1925 = vadd.f32 %v1921, %v1924
    %vm1926 = vweird.f32 %v1920
    %vm1927 = vweird.f32 %v1921
    %vm1928 = vmor %vm1926, %vm1927
    %v1929 = vsel %vm1928, %v1921, %v1925
    %v1930 = vand.u32 2147483647, %v1920
    %vm1931 = vcmp.eq.f32.partialorder %v1930, 8.507059e+37
    %v1932 = vand.u32 %v1920, 2147483648
    %v1933 = vor.u32 1.1754944e-38, %v1932
    %v1934 = vsel %vm1931, %v1933, %v1929
    %v1935 = vmul.f32 1.0, %v1934
    %v1936 = vxor.u32 %v1835, 2147483648
    %v1937 = vmul.f32 %v1936, 1.442695
    %v1938 = vpow.pop %v1937
    %v1939 = vadd.f32 %v1938, 1.0
    %v1940 = vrcp.pop %v1939
    %v1941 = vmul.f32 %v1939, %v1940
    %v1942 = vsub.f32 1.0, %v1941
    %v1943 = vmul.f32 %v1940, %v1942
    %v1944 = vadd.f32 %v1940, %v1943
    %vm1945 = vweird.f32 %v1939
    %vm1946 = vweird.f32 %v1940
    %vm1947 = vmor %vm1945, %vm1946
    %v1948 = vsel %vm1947, %v1940, %v1944
    %v1949 = vand.u32 2147483647, %v1939
    %vm1950 = vcmp.eq.f32.partialorder %v1949, 8.507059e+37
    %v1951 = vand.u32 %v1939, 2147483648
    %v1952 = vor.u32 1.1754944e-38, %v1951
    %v1953 = vsel %vm1950, %v1952, %v1948
    %v1954 = vmul.f32 1.0, %v1953
    %v1955 = vtanh.pop %v1875
    %v1956 = vxor.u32 %v1915, 2147483648
    %v1957 = vmul.f32 %v1956, 1.442695
    %v1958 = vpow.pop %v1957
    %v1959 = vadd.f32 %v1958, 1.0
    %v1960 = vrcp.pop %v1959
    %v1961 = vmul.f32 %v1959, %v1960
    %v1962 = vsub.f32 1.0, %v1961
    %v1963 = vmul.f32 %v1960, %v1962
    %v1964 = vadd.f32 %v1960, %v1963
    %vm1965 = vweird.f32 %v1959
    %vm1966 = vweird.f32 %v1960
    %vm1967 = vmor %vm1965, %vm1966
    %v1968 = vsel %vm1967, %v1960, %v1964
    %v1969 = vand.u32 2147483647, %v1959
    %vm1970 = vcmp.eq.f32.partialorder %v1969, 8.507059e+37
    %v1971 = vand.u32 %v1959, 2147483648
    %v1972 = vor.u32 1.1754944e-38, %v1971
    %v1973 = vsel %vm1970, %v1972, %v1968
    %v1974 = vmul.f32 1.0, %v1973
    %v1975 = vmul.f32 %v1954, %v1754
    %v1976 = vmul.f32 %v1935, %v1955
    %v1977 = vadd.f32 %v1975, %v1976
    %v1978 = vtanh.pop %v1977
    %v1979 = vmul.f32 %v1974, %v1978
    %1980 = vmatpush.msra.mxu0 %v229
    %1981 = vmatpush.msra.mxu0 %v228
    %1982 = vmatpush.msra.mxu0 %v227
    %1983 = vmatpush.msra.mxu0 %v226
    %1984 = vmatpush.msra.mxu0 %v225
    %1985 = vmatpush.msra.mxu0 %v224
    %1986 = vmatpush.msra.mxu0 %v223
    %1987 = vmatpush.msra.mxu0 %v222
    %1988 = vmatpush.msra.mxu0 %v221
    %1989 = vmatpush.msra.mxu0 %v220
    %1990 = vmatpush.msra.mxu0 %v219
    %1991 = vmatpush.msra.mxu0 %v218
    %1992 = vmatpush.msra.mxu0 %v217
    %1993 = vmatpush.msra.mxu0 %v216
    %1994 = vmatpush.msra.mxu0 %v215
    %1995 = vmatpush.msra.mxu0 %v214
    %1996 = vmatmul.f32.gmra.mxu0 %v1979
    %v1997 = vpop.f32.mrf.mxu0
    %v1998 = vadd.f32 %v467, %v1997
    %1999 = vdwg.mxu0
    %2000 = vst [vmem:[#allocation2] sm:$0xff] %v1979
    %2001 = vst [vmem:[#allocation3] sm:$0xff] %v1977
    %2002 = vst [vmem:[#allocation4] sm:$0xff] %v1998
    %s2003 = scalar_lea.vmem [#allocation13], 48
    %2004 = vst [vmem:[%s2003] sm:$0xff] %v1998
    %v2005 = vld [vmem:[#allocation2] sm:$0xff]
    %v2006 = vld [vmem:[#allocation3] sm:$0xff]
    %s2007 = scalar_lea.vmem [#allocation5], 56
    %v2008 = vld [vmem:[%s2007] sm:$0xff]
    %2009 = vmatpush.msra.mxu0 %v145
    %2010 = vmatpush.msra.mxu0 %v141
    %2011 = vmatpush.msra.mxu0 %v137
    %2012 = vmatpush.msra.mxu0 %v133
    %2013 = vmatpush.msra.mxu0 %v129
    %2014 = vmatpush.msra.mxu0 %v125
    %2015 = vmatpush.msra.mxu0 %v121
    %2016 = vmatpush.msra.mxu0 %v117
    %2017 = vmatpush.msra.mxu0 %v113
    %2018 = vmatpush.msra.mxu0 %v109
    %2019 = vmatpush.msra.mxu0 %v105
    %2020 = vmatpush.msra.mxu0 %v101
    %2021 = vmatpush.msra.mxu0 %v97
    %2022 = vmatpush.msra.mxu0 %v93
    %2023 = vmatpush.msra.mxu0 %v89
    %2024 = vmatpush.msra.mxu0 %v85
    %2025 = vmatmul.f32.gmra.mxu0 %v2008
    %v2026 = vpop.f32.mrf.mxu0
    %v2027 = vadd.f32 %v235, %v2026
    %2028 = vdwg.mxu0
    %2029 = vmatpush.msra.mxu0 %v209
    %2030 = vmatpush.msra.mxu0 %v205
    %2031 = vmatpush.msra.mxu0 %v201
    %2032 = vmatpush.msra.mxu0 %v197
    %2033 = vmatpush.msra.mxu0 %v193
    %2034 = vmatpush.msra.mxu0 %v189
    %2035 = vmatpush.msra.mxu0 %v185
    %2036 = vmatpush.msra.mxu0 %v181
    %2037 = vmatpush.msra.mxu0 %v177
    %2038 = vmatpush.msra.mxu0 %v173
    %2039 = vmatpush.msra.mxu0 %v169
    %2040 = vmatpush.msra.mxu0 %v165
    %2041 = vmatpush.msra.mxu0 %v161
    %2042 = vmatpush.msra.mxu0 %v157
    %2043 = vmatpush.msra.mxu0 %v153
    %2044 = vmatpush.msra.mxu0 %v149
    %2045 = vmatmul.f32.gmra.mxu0 %v2005
    %v2046 = vpop.f32.mrf.mxu0
    %v2047 = vadd.f32 %v2027, %v2046
    %2048 = vdwg.mxu0
    %2049 = vmatpush.msra.mxu0 %v146
    %2050 = vmatpush.msra.mxu0 %v142
    %2051 = vmatpush.msra.mxu0 %v138
    %2052 = vmatpush.msra.mxu0 %v134
    %2053 = vmatpush.msra.mxu0 %v130
    %2054 = vmatpush.msra.mxu0 %v126
    %2055 = vmatpush.msra.mxu0 %v122
    %2056 = vmatpush.msra.mxu0 %v118
    %2057 = vmatpush.msra.mxu0 %v114
    %2058 = vmatpush.msra.mxu0 %v110
    %2059 = vmatpush.msra.mxu0 %v106
    %2060 = vmatpush.msra.mxu0 %v102
    %2061 = vmatpush.msra.mxu0 %v98
    %2062 = vmatpush.msra.mxu0 %v94
    %2063 = vmatpush.msra.mxu0 %v90
    %2064 = vmatpush.msra.mxu0 %v86
    %2065 = vmatmul.f32.gmra.mxu0 %v2008
    %v2066 = vpop.f32.mrf.mxu0
    %v2067 = vadd.f32 %v236, %v2066
    %2068 = vdwg.mxu0
    %2069 = vmatpush.msra.mxu0 %v210
    %2070 = vmatpush.msra.mxu0 %v206
    %2071 = vmatpush.msra.mxu0 %v202
    %2072 = vmatpush.msra.mxu0 %v198
    %2073 = vmatpush.msra.mxu0 %v194
    %2074 = vmatpush.msra.mxu0 %v190
    %2075 = vmatpush.msra.mxu0 %v186
    %2076 = vmatpush.msra.mxu0 %v182
    %2077 = vmatpush.msra.mxu0 %v178
    %2078 = vmatpush.msra.mxu0 %v174
    %2079 = vmatpush.msra.mxu0 %v170
    %2080 = vmatpush.msra.mxu0 %v166
    %2081 = vmatpush.msra.mxu0 %v162
    %2082 = vmatpush.msra.mxu0 %v158
    %2083 = vmatpush.msra.mxu0 %v154
    %2084 = vmatpush.msra.mxu0 %v150
    %2085 = vmatmul.f32.gmra.mxu0 %v2005
    %v2086 = vpop.f32.mrf.mxu0
    %v2087 = vadd.f32 %v2067, %v2086
    %2088 = vdwg.mxu0
    %2089 = vmatpush.msra.mxu0 %v147
    %2090 = vmatpush.msra.mxu0 %v143
    %2091 = vmatpush.msra.mxu0 %v139
    %2092 = vmatpush.msra.mxu0 %v135
    %2093 = vmatpush.msra.mxu0 %v131
    %2094 = vmatpush.msra.mxu0 %v127
    %2095 = vmatpush.msra.mxu0 %v123
    %2096 = vmatpush.msra.mxu0 %v119
    %2097 = vmatpush.msra.mxu0 %v115
    %2098 = vmatpush.msra.mxu0 %v111
    %2099 = vmatpush.msra.mxu0 %v107
    %2100 = vmatpush.msra.mxu0 %v103
    %2101 = vmatpush.msra.mxu0 %v99
    %2102 = vmatpush.msra.mxu0 %v95
    %2103 = vmatpush.msra.mxu0 %v91
    %2104 = vmatpush.msra.mxu0 %v87
    %2105 = vmatmul.f32.gmra.mxu0 %v2008
    %v2106 = vpop.f32.mrf.mxu0
    %v2107 = vadd.f32 %v237, %v2106
    %2108 = vdwg.mxu0
    %2109 = vmatpush.msra.mxu0 %v211
    %2110 = vmatpush.msra.mxu0 %v207
    %2111 = vmatpush.msra.mxu0 %v203
    %2112 = vmatpush.msra.mxu0 %v199
    %2113 = vmatpush.msra.mxu0 %v195
    %2114 = vmatpush.msra.mxu0 %v191
    %2115 = vmatpush.msra.mxu0 %v187
    %2116 = vmatpush.msra.mxu0 %v183
    %2117 = vmatpush.msra.mxu0 %v179
    %2118 = vmatpush.msra.mxu0 %v175
    %2119 = vmatpush.msra.mxu0 %v171
    %2120 = vmatpush.msra.mxu0 %v167
    %2121 = vmatpush.msra.mxu0 %v163
    %2122 = vmatpush.msra.mxu0 %v159
    %2123 = vmatpush.msra.mxu0 %v155
    %2124 = vmatpush.msra.mxu0 %v151
    %2125 = vmatmul.f32.gmra.mxu0 %v2005
    %v2126 = vpop.f32.mrf.mxu0
    %v2127 = vadd.f32 %v2107, %v2126
    %2128 = vdwg.mxu0
    %2129 = vmatpush.msra.mxu0 %v148
    %2130 = vmatpush.msra.mxu0 %v144
    %2131 = vmatpush.msra.mxu0 %v140
    %2132 = vmatpush.msra.mxu0 %v136
    %2133 = vmatpush.msra.mxu0 %v132
    %2134 = vmatpush.msra.mxu0 %v128
    %2135 = vmatpush.msra.mxu0 %v124
    %2136 = vmatpush.msra.mxu0 %v120
    %2137 = vmatpush.msra.mxu0 %v116
    %2138 = vmatpush.msra.mxu0 %v112
    %2139 = vmatpush.msra.mxu0 %v108
    %2140 = vmatpush.msra.mxu0 %v104
    %2141 = vmatpush.msra.mxu0 %v100
    %2142 = vmatpush.msra.mxu0 %v96
    %2143 = vmatpush.msra.mxu0 %v92
    %2144 = vmatpush.msra.mxu0 %v88
    %2145 = vmatmul.f32.gmra.mxu0 %v2008
    %v2146 = vpop.f32.mrf.mxu0
    %v2147 = vadd.f32 %v238, %v2146
    %2148 = vdwg.mxu0
    %2149 = vmatpush.msra.mxu0 %v212
    %2150 = vmatpush.msra.mxu0 %v208
    %2151 = vmatpush.msra.mxu0 %v204
    %2152 = vmatpush.msra.mxu0 %v200
    %2153 = vmatpush.msra.mxu0 %v196
    %2154 = vmatpush.msra.mxu0 %v192
    %2155 = vmatpush.msra.mxu0 %v188
    %2156 = vmatpush.msra.mxu0 %v184
    %2157 = vmatpush.msra.mxu0 %v180
    %2158 = vmatpush.msra.mxu0 %v176
    %2159 = vmatpush.msra.mxu0 %v172
    %2160 = vmatpush.msra.mxu0 %v168
    %2161 = vmatpush.msra.mxu0 %v164
    %2162 = vmatpush.msra.mxu0 %v160
    %2163 = vmatpush.msra.mxu0 %v156
    %2164 = vmatpush.msra.mxu0 %v152
    %2165 = vmatmul.f32.gmra.mxu0 %v2005
    %v2166 = vpop.f32.mrf.mxu0
    %v2167 = vadd.f32 %v2147, %v2166
    %2168 = vdwg.mxu0
    %v2169 = vxor.u32 %v2047, 2147483648
    %v2170 = vmul.f32 %v2169, 1.442695
    %v2171 = vpow.pop %v2170
    %v2172 = vadd.f32 %v2171, 1.0
    %v2173 = vrcp.pop %v2172
    %v2174 = vmul.f32 %v2172, %v2173
    %v2175 = vsub.f32 1.0, %v2174
    %v2176 = vmul.f32 %v2173, %v2175
    %v2177 = vadd.f32 %v2173, %v2176
    %vm2178 = vweird.f32 %v2172
    %vm2179 = vweird.f32 %v2173
    %vm2180 = vmor %vm2178, %vm2179
    %v2181 = vsel %vm2180, %v2173, %v2177
    %v2182 = vand.u32 2147483647, %v2172
    %vm2183 = vcmp.eq.f32.partialorder %v2182, 8.507059e+37
    %v2184 = vand.u32 %v2172, 2147483648
    %v2185 = vor.u32 1.1754944e-38, %v2184
    %v2186 = vsel %vm2183, %v2185, %v2181
    %v2187 = vmul.f32 1.0, %v2186
    %v2188 = vxor.u32 %v2087, 2147483648
    %v2189 = vmul.f32 %v2188, 1.442695
    %v2190 = vpow.pop %v2189
    %v2191 = vadd.f32 %v2190, 1.0
    %v2192 = vrcp.pop %v2191
    %v2193 = vmul.f32 %v2191, %v2192
    %v2194 = vsub.f32 1.0, %v2193
    %v2195 = vmul.f32 %v2192, %v2194
    %v2196 = vadd.f32 %v2192, %v2195
    %vm2197 = vweird.f32 %v2191
    %vm2198 = vweird.f32 %v2192
    %vm2199 = vmor %vm2197, %vm2198
    %v2200 = vsel %vm2199, %v2192, %v2196
    %v2201 = vand.u32 2147483647, %v2191
    %vm2202 = vcmp.eq.f32.partialorder %v2201, 8.507059e+37
    %v2203 = vand.u32 %v2191, 2147483648
    %v2204 = vor.u32 1.1754944e-38, %v2203
    %v2205 = vsel %vm2202, %v2204, %v2200
    %v2206 = vmul.f32 1.0, %v2205
    %v2207 = vtanh.pop %v2127
    %v2208 = vxor.u32 %v2167, 2147483648
    %v2209 = vmul.f32 %v2208, 1.442695
    %v2210 = vpow.pop %v2209
    %v2211 = vadd.f32 %v2210, 1.0
    %v2212 = vrcp.pop %v2211
    %v2213 = vmul.f32 %v2211, %v2212
    %v2214 = vsub.f32 1.0, %v2213
    %v2215 = vmul.f32 %v2212, %v2214
    %v2216 = vadd.f32 %v2212, %v2215
    %vm2217 = vweird.f32 %v2211
    %vm2218 = vweird.f32 %v2212
    %vm2219 = vmor %vm2217, %vm2218
    %v2220 = vsel %vm2219, %v2212, %v2216
    %v2221 = vand.u32 2147483647, %v2211
    %vm2222 = vcmp.eq.f32.partialorder %v2221, 8.507059e+37
    %v2223 = vand.u32 %v2211, 2147483648
    %v2224 = vor.u32 1.1754944e-38, %v2223
    %v2225 = vsel %vm2222, %v2224, %v2220
    %v2226 = vmul.f32 1.0, %v2225
    %v2227 = vmul.f32 %v2206, %v2006
    %v2228 = vmul.f32 %v2187, %v2207
    %v2229 = vadd.f32 %v2227, %v2228
    %v2230 = vtanh.pop %v2229
    %v2231 = vmul.f32 %v2226, %v2230
    %2232 = vmatpush.msra.mxu0 %v229
    %2233 = vmatpush.msra.mxu0 %v228
    %2234 = vmatpush.msra.mxu0 %v227
    %2235 = vmatpush.msra.mxu0 %v226
    %2236 = vmatpush.msra.mxu0 %v225
    %2237 = vmatpush.msra.mxu0 %v224
    %2238 = vmatpush.msra.mxu0 %v223
    %2239 = vmatpush.msra.mxu0 %v222
    %2240 = vmatpush.msra.mxu0 %v221
    %2241 = vmatpush.msra.mxu0 %v220
    %2242 = vmatpush.msra.mxu0 %v219
    %2243 = vmatpush.msra.mxu0 %v218
    %2244 = vmatpush.msra.mxu0 %v217
    %2245 = vmatpush.msra.mxu0 %v216
    %2246 = vmatpush.msra.mxu0 %v215
    %2247 = vmatpush.msra.mxu0 %v214
    %2248 = vmatmul.f32.gmra.mxu0 %v2231
    %v2249 = vpop.f32.mrf.mxu0
    %v2250 = vadd.f32 %v467, %v2249
    %2251 = vdwg.mxu0
    %2252 = vst [vmem:[#allocation2] sm:$0xff] %v2231
    %2253 = vst [vmem:[#allocation3] sm:$0xff] %v2229
    %2254 = vst [vmem:[#allocation4] sm:$0xff] %v2250
    %s2255 = scalar_lea.vmem [#allocation13], 56
    %2256 = vst [vmem:[%s2255] sm:$0xff] %v2250
    %v2257 = vld [vmem:[#allocation2] sm:$0xff]
    %v2258 = vld [vmem:[#allocation3] sm:$0xff]
    %v2259 = vld [vmem:[#allocation4] sm:$0xff]
    %2260 = vmatpush.msra.mxu0 %v145
    %2261 = vmatpush.msra.mxu0 %v141
    %2262 = vmatpush.msra.mxu0 %v137
    %2263 = vmatpush.msra.mxu0 %v133
    %2264 = vmatpush.msra.mxu0 %v129
    %2265 = vmatpush.msra.mxu0 %v125
    %2266 = vmatpush.msra.mxu0 %v121
    %2267 = vmatpush.msra.mxu0 %v117
    %2268 = vmatpush.msra.mxu0 %v113
    %2269 = vmatpush.msra.mxu0 %v109
    %2270 = vmatpush.msra.mxu0 %v105
    %2271 = vmatpush.msra.mxu0 %v101
    %2272 = vmatpush.msra.mxu0 %v97
    %2273 = vmatpush.msra.mxu0 %v93
    %2274 = vmatpush.msra.mxu0 %v89
    %2275 = vmatpush.msra.mxu0 %v85
    %2276 = vmatmul.f32.gmra.mxu0 %v2259
    %v2277 = vpop.f32.mrf.mxu0
    %v2278 = vadd.f32 %v235, %v2277
    %2279 = vdwg.mxu0
    %2280 = vmatpush.msra.mxu0 %v209
    %2281 = vmatpush.msra.mxu0 %v205
    %2282 = vmatpush.msra.mxu0 %v201
    %2283 = vmatpush.msra.mxu0 %v197
    %2284 = vmatpush.msra.mxu0 %v193
    %2285 = vmatpush.msra.mxu0 %v189
    %2286 = vmatpush.msra.mxu0 %v185
    %2287 = vmatpush.msra.mxu0 %v181
    %2288 = vmatpush.msra.mxu0 %v177
    %2289 = vmatpush.msra.mxu0 %v173
    %2290 = vmatpush.msra.mxu0 %v169
    %2291 = vmatpush.msra.mxu0 %v165
    %2292 = vmatpush.msra.mxu0 %v161
    %2293 = vmatpush.msra.mxu0 %v157
    %2294 = vmatpush.msra.mxu0 %v153
    %2295 = vmatpush.msra.mxu0 %v149
    %2296 = vmatmul.f32.gmra.mxu0 %v2257
    %v2297 = vpop.f32.mrf.mxu0
    %v2298 = vadd.f32 %v2278, %v2297
    %2299 = vdwg.mxu0
    %2300 = vmatpush.msra.mxu0 %v146
    %2301 = vmatpush.msra.mxu0 %v142
    %2302 = vmatpush.msra.mxu0 %v138
    %2303 = vmatpush.msra.mxu0 %v134
    %2304 = vmatpush.msra.mxu0 %v130
    %2305 = vmatpush.msra.mxu0 %v126
    %2306 = vmatpush.msra.mxu0 %v122
    %2307 = vmatpush.msra.mxu0 %v118
    %2308 = vmatpush.msra.mxu0 %v114
    %2309 = vmatpush.msra.mxu0 %v110
    %2310 = vmatpush.msra.mxu0 %v106
    %2311 = vmatpush.msra.mxu0 %v102
    %2312 = vmatpush.msra.mxu0 %v98
    %2313 = vmatpush.msra.mxu0 %v94
    %2314 = vmatpush.msra.mxu0 %v90
    %2315 = vmatpush.msra.mxu0 %v86
    %2316 = vmatmul.f32.gmra.mxu0 %v2259
    %v2317 = vpop.f32.mrf.mxu0
    %v2318 = vadd.f32 %v236, %v2317
    %2319 = vdwg.mxu0
    %2320 = vmatpush.msra.mxu0 %v210
    %2321 = vmatpush.msra.mxu0 %v206
    %2322 = vmatpush.msra.mxu0 %v202
    %2323 = vmatpush.msra.mxu0 %v198
    %2324 = vmatpush.msra.mxu0 %v194
    %2325 = vmatpush.msra.mxu0 %v190
    %2326 = vmatpush.msra.mxu0 %v186
    %2327 = vmatpush.msra.mxu0 %v182
    %2328 = vmatpush.msra.mxu0 %v178
    %2329 = vmatpush.msra.mxu0 %v174
    %2330 = vmatpush.msra.mxu0 %v170
    %2331 = vmatpush.msra.mxu0 %v166
    %2332 = vmatpush.msra.mxu0 %v162
    %2333 = vmatpush.msra.mxu0 %v158
    %2334 = vmatpush.msra.mxu0 %v154
    %2335 = vmatpush.msra.mxu0 %v150
    %2336 = vmatmul.f32.gmra.mxu0 %v2257
    %v2337 = vpop.f32.mrf.mxu0
    %v2338 = vadd.f32 %v2318, %v2337
    %2339 = vdwg.mxu0
    %2340 = vmatpush.msra.mxu0 %v147
    %2341 = vmatpush.msra.mxu0 %v143
    %2342 = vmatpush.msra.mxu0 %v139
    %2343 = vmatpush.msra.mxu0 %v135
    %2344 = vmatpush.msra.mxu0 %v131
    %2345 = vmatpush.msra.mxu0 %v127
    %2346 = vmatpush.msra.mxu0 %v123
    %2347 = vmatpush.msra.mxu0 %v119
    %2348 = vmatpush.msra.mxu0 %v115
    %2349 = vmatpush.msra.mxu0 %v111
    %2350 = vmatpush.msra.mxu0 %v107
    %2351 = vmatpush.msra.mxu0 %v103
    %2352 = vmatpush.msra.mxu0 %v99
    %2353 = vmatpush.msra.mxu0 %v95
    %2354 = vmatpush.msra.mxu0 %v91
    %2355 = vmatpush.msra.mxu0 %v87
    %2356 = vmatmul.f32.gmra.mxu0 %v2259
    %v2357 = vpop.f32.mrf.mxu0
    %v2358 = vadd.f32 %v237, %v2357
    %2359 = vdwg.mxu0
    %2360 = vmatpush.msra.mxu0 %v211
    %2361 = vmatpush.msra.mxu0 %v207
    %2362 = vmatpush.msra.mxu0 %v203
    %2363 = vmatpush.msra.mxu0 %v199
    %2364 = vmatpush.msra.mxu0 %v195
    %2365 = vmatpush.msra.mxu0 %v191
    %2366 = vmatpush.msra.mxu0 %v187
    %2367 = vmatpush.msra.mxu0 %v183
    %2368 = vmatpush.msra.mxu0 %v179
    %2369 = vmatpush.msra.mxu0 %v175
    %2370 = vmatpush.msra.mxu0 %v171
    %2371 = vmatpush.msra.mxu0 %v167
    %2372 = vmatpush.msra.mxu0 %v163
    %2373 = vmatpush.msra.mxu0 %v159
    %2374 = vmatpush.msra.mxu0 %v155
    %2375 = vmatpush.msra.mxu0 %v151
    %2376 = vmatmul.f32.gmra.mxu0 %v2257
    %v2377 = vpop.f32.mrf.mxu0
    %v2378 = vadd.f32 %v2358, %v2377
    %2379 = vdwg.mxu0
    %2380 = vmatpush.msra.mxu0 %v148
    %2381 = vmatpush.msra.mxu0 %v144
    %2382 = vmatpush.msra.mxu0 %v140
    %2383 = vmatpush.msra.mxu0 %v136
    %2384 = vmatpush.msra.mxu0 %v132
    %2385 = vmatpush.msra.mxu0 %v128
    %2386 = vmatpush.msra.mxu0 %v124
    %2387 = vmatpush.msra.mxu0 %v120
    %2388 = vmatpush.msra.mxu0 %v116
    %2389 = vmatpush.msra.mxu0 %v112
    %2390 = vmatpush.msra.mxu0 %v108
    %2391 = vmatpush.msra.mxu0 %v104
    %2392 = vmatpush.msra.mxu0 %v100
    %2393 = vmatpush.msra.mxu0 %v96
    %2394 = vmatpush.msra.mxu0 %v92
    %2395 = vmatpush.msra.mxu0 %v88
    %2396 = vmatmul.f32.gmra.mxu0 %v2259
    %v2397 = vpop.f32.mrf.mxu0
    %v2398 = vadd.f32 %v238, %v2397
    %2399 = vdwg.mxu0
    %2400 = vmatpush.msra.mxu0 %v212
    %2401 = vmatpush.msra.mxu0 %v208
    %2402 = vmatpush.msra.mxu0 %v204
    %2403 = vmatpush.msra.mxu0 %v200
    %2404 = vmatpush.msra.mxu0 %v196
    %2405 = vmatpush.msra.mxu0 %v192
    %2406 = vmatpush.msra.mxu0 %v188
    %2407 = vmatpush.msra.mxu0 %v184
    %2408 = vmatpush.msra.mxu0 %v180
    %2409 = vmatpush.msra.mxu0 %v176
    %2410 = vmatpush.msra.mxu0 %v172
    %2411 = vmatpush.msra.mxu0 %v168
    %2412 = vmatpush.msra.mxu0 %v164
    %2413 = vmatpush.msra.mxu0 %v160
    %2414 = vmatpush.msra.mxu0 %v156
    %2415 = vmatpush.msra.mxu0 %v152
    %2416 = vmatmul.f32.gmra.mxu0 %v2257
    %v2417 = vpop.f32.mrf.mxu0
    %v2418 = vadd.f32 %v2398, %v2417
    %2419 = vdwg.mxu0
    %v2420 = vxor.u32 %v2298, 2147483648
    %v2421 = vmul.f32 %v2420, 1.442695
    %v2422 = vpow.pop %v2421
    %v2423 = vadd.f32 %v2422, 1.0
    %v2424 = vrcp.pop %v2423
    %v2425 = vmul.f32 %v2423, %v2424
    %v2426 = vsub.f32 1.0, %v2425
    %v2427 = vmul.f32 %v2424, %v2426
    %v2428 = vadd.f32 %v2424, %v2427
    %vm2429 = vweird.f32 %v2423
    %vm2430 = vweird.f32 %v2424
    %vm2431 = vmor %vm2429, %vm2430
    %v2432 = vsel %vm2431, %v2424, %v2428
    %v2433 = vand.u32 2147483647, %v2423
    %vm2434 = vcmp.eq.f32.partialorder %v2433, 8.507059e+37
    %v2435 = vand.u32 %v2423, 2147483648
    %v2436 = vor.u32 1.1754944e-38, %v2435
    %v2437 = vsel %vm2434, %v2436, %v2432
    %v2438 = vmul.f32 1.0, %v2437
    %v2439 = vxor.u32 %v2338, 2147483648
    %v2440 = vmul.f32 %v2439, 1.442695
    %v2441 = vpow.pop %v2440
    %v2442 = vadd.f32 %v2441, 1.0
    %v2443 = vrcp.pop %v2442
    %v2444 = vmul.f32 %v2442, %v2443
    %v2445 = vsub.f32 1.0, %v2444
    %v2446 = vmul.f32 %v2443, %v2445
    %v2447 = vadd.f32 %v2443, %v2446
    %vm2448 = vweird.f32 %v2442
    %vm2449 = vweird.f32 %v2443
    %vm2450 = vmor %vm2448, %vm2449
    %v2451 = vsel %vm2450, %v2443, %v2447
    %v2452 = vand.u32 2147483647, %v2442
    %vm2453 = vcmp.eq.f32.partialorder %v2452, 8.507059e+37
    %v2454 = vand.u32 %v2442, 2147483648
    %v2455 = vor.u32 1.1754944e-38, %v2454
    %v2456 = vsel %vm2453, %v2455, %v2451
    %v2457 = vmul.f32 1.0, %v2456
    %v2458 = vtanh.pop %v2378
    %v2459 = vxor.u32 %v2418, 2147483648
    %v2460 = vmul.f32 %v2459, 1.442695
    %v2461 = vpow.pop %v2460
    %v2462 = vadd.f32 %v2461, 1.0
    %v2463 = vrcp.pop %v2462
    %v2464 = vmul.f32 %v2462, %v2463
    %v2465 = vsub.f32 1.0, %v2464
    %v2466 = vmul.f32 %v2463, %v2465
    %v2467 = vadd.f32 %v2463, %v2466
    %vm2468 = vweird.f32 %v2462
    %vm2469 = vweird.f32 %v2463
    %vm2470 = vmor %vm2468, %vm2469
    %v2471 = vsel %vm2470, %v2463, %v2467
    %v2472 = vand.u32 2147483647, %v2462
    %vm2473 = vcmp.eq.f32.partialorder %v2472, 8.507059e+37
    %v2474 = vand.u32 %v2462, 2147483648
    %v2475 = vor.u32 1.1754944e-38, %v2474
    %v2476 = vsel %vm2473, %v2475, %v2471
    %v2477 = vmul.f32 1.0, %v2476
    %v2478 = vmul.f32 %v2457, %v2258
    %v2479 = vmul.f32 %v2438, %v2458
    %v2480 = vadd.f32 %v2478, %v2479
    %v2481 = vtanh.pop %v2480
    %v2482 = vmul.f32 %v2477, %v2481
    %2483 = vmatpush.msra.mxu0 %v229
    %2484 = vmatpush.msra.mxu0 %v228
    %2485 = vmatpush.msra.mxu0 %v227
    %2486 = vmatpush.msra.mxu0 %v226
    %2487 = vmatpush.msra.mxu0 %v225
    %2488 = vmatpush.msra.mxu0 %v224
    %2489 = vmatpush.msra.mxu0 %v223
    %2490 = vmatpush.msra.mxu0 %v222
    %2491 = vmatpush.msra.mxu0 %v221
    %2492 = vmatpush.msra.mxu0 %v220
    %2493 = vmatpush.msra.mxu0 %v219
    %2494 = vmatpush.msra.mxu0 %v218
    %2495 = vmatpush.msra.mxu0 %v217
    %2496 = vmatpush.msra.mxu0 %v216
    %2497 = vmatpush.msra.mxu0 %v215
    %2498 = vmatpush.msra.mxu0 %v214
    %2499 = vmatmul.f32.gmra.mxu0 %v2482
    %v2500 = vpop.f32.mrf.mxu0
    %v2501 = vadd.f32 %v467, %v2500
    %2502 = vdwg.mxu0
    %2503 = vst [vmem:[#allocation2] sm:$0xff] %v2482
    %2504 = vst [vmem:[#allocation3] sm:$0xff] %v2480
    %2505 = vst [vmem:[#allocation4] sm:$0xff] %v2501
    %s2506 = scalar_lea.vmem [#allocation13], 64
    %2507 = vst [vmem:[%s2506] sm:$0xff] %v2501
    %v2508 = vld [vmem:[#allocation2] sm:$0xff]
    %v2509 = vld [vmem:[#allocation3] sm:$0xff]
    %v2510 = vld [vmem:[#allocation4] sm:$0xff]
    %2511 = vmatpush.msra.mxu0 %v145
    %2512 = vmatpush.msra.mxu0 %v141
    %2513 = vmatpush.msra.mxu0 %v137
    %2514 = vmatpush.msra.mxu0 %v133
    %2515 = vmatpush.msra.mxu0 %v129
    %2516 = vmatpush.msra.mxu0 %v125
    %2517 = vmatpush.msra.mxu0 %v121
    %2518 = vmatpush.msra.mxu0 %v117
    %2519 = vmatpush.msra.mxu0 %v113
    %2520 = vmatpush.msra.mxu0 %v109
    %2521 = vmatpush.msra.mxu0 %v105
    %2522 = vmatpush.msra.mxu0 %v101
    %2523 = vmatpush.msra.mxu0 %v97
    %2524 = vmatpush.msra.mxu0 %v93
    %2525 = vmatpush.msra.mxu0 %v89
    %2526 = vmatpush.msra.mxu0 %v85
    %2527 = vmatmul.f32.gmra.mxu0 %v2510
    %v2528 = vpop.f32.mrf.mxu0
    %v2529 = vadd.f32 %v235, %v2528
    %2530 = vdwg.mxu0
    %2531 = vmatpush.msra.mxu0 %v209
    %2532 = vmatpush.msra.mxu0 %v205
    %2533 = vmatpush.msra.mxu0 %v201
    %2534 = vmatpush.msra.mxu0 %v197
    %2535 = vmatpush.msra.mxu0 %v193
    %2536 = vmatpush.msra.mxu0 %v189
    %2537 = vmatpush.msra.mxu0 %v185
    %2538 = vmatpush.msra.mxu0 %v181
    %2539 = vmatpush.msra.mxu0 %v177
    %2540 = vmatpush.msra.mxu0 %v173
    %2541 = vmatpush.msra.mxu0 %v169
    %2542 = vmatpush.msra.mxu0 %v165
    %2543 = vmatpush.msra.mxu0 %v161
    %2544 = vmatpush.msra.mxu0 %v157
    %2545 = vmatpush.msra.mxu0 %v153
    %2546 = vmatpush.msra.mxu0 %v149
    %2547 = vmatmul.f32.gmra.mxu0 %v2508
    %v2548 = vpop.f32.mrf.mxu0
    %v2549 = vadd.f32 %v2529, %v2548
    %2550 = vdwg.mxu0
    %2551 = vmatpush.msra.mxu0 %v146
    %2552 = vmatpush.msra.mxu0 %v142
    %2553 = vmatpush.msra.mxu0 %v138
    %2554 = vmatpush.msra.mxu0 %v134
    %2555 = vmatpush.msra.mxu0 %v130
    %2556 = vmatpush.msra.mxu0 %v126
    %2557 = vmatpush.msra.mxu0 %v122
    %2558 = vmatpush.msra.mxu0 %v118
    %2559 = vmatpush.msra.mxu0 %v114
    %2560 = vmatpush.msra.mxu0 %v110
    %2561 = vmatpush.msra.mxu0 %v106
    %2562 = vmatpush.msra.mxu0 %v102
    %2563 = vmatpush.msra.mxu0 %v98
    %2564 = vmatpush.msra.mxu0 %v94
    %2565 = vmatpush.msra.mxu0 %v90
    %2566 = vmatpush.msra.mxu0 %v86
    %2567 = vmatmul.f32.gmra.mxu0 %v2510
    %v2568 = vpop.f32.mrf.mxu0
    %v2569 = vadd.f32 %v236, %v2568
    %2570 = vdwg.mxu0
    %2571 = vmatpush.msra.mxu0 %v210
    %2572 = vmatpush.msra.mxu0 %v206
    %2573 = vmatpush.msra.mxu0 %v202
    %2574 = vmatpush.msra.mxu0 %v198
    %2575 = vmatpush.msra.mxu0 %v194
    %2576 = vmatpush.msra.mxu0 %v190
    %2577 = vmatpush.msra.mxu0 %v186
    %2578 = vmatpush.msra.mxu0 %v182
    %2579 = vmatpush.msra.mxu0 %v178
    %2580 = vmatpush.msra.mxu0 %v174
    %2581 = vmatpush.msra.mxu0 %v170
    %2582 = vmatpush.msra.mxu0 %v166
    %2583 = vmatpush.msra.mxu0 %v162
    %2584 = vmatpush.msra.mxu0 %v158
    %2585 = vmatpush.msra.mxu0 %v154
    %2586 = vmatpush.msra.mxu0 %v150
    %2587 = vmatmul.f32.gmra.mxu0 %v2508
    %v2588 = vpop.f32.mrf.mxu0
    %v2589 = vadd.f32 %v2569, %v2588
    %2590 = vdwg.mxu0
    %2591 = vmatpush.msra.mxu0 %v147
    %2592 = vmatpush.msra.mxu0 %v143
    %2593 = vmatpush.msra.mxu0 %v139
    %2594 = vmatpush.msra.mxu0 %v135
    %2595 = vmatpush.msra.mxu0 %v131
    %2596 = vmatpush.msra.mxu0 %v127
    %2597 = vmatpush.msra.mxu0 %v123
    %2598 = vmatpush.msra.mxu0 %v119
    %2599 = vmatpush.msra.mxu0 %v115
    %2600 = vmatpush.msra.mxu0 %v111
    %2601 = vmatpush.msra.mxu0 %v107
    %2602 = vmatpush.msra.mxu0 %v103
    %2603 = vmatpush.msra.mxu0 %v99
    %2604 = vmatpush.msra.mxu0 %v95
    %2605 = vmatpush.msra.mxu0 %v91
    %2606 = vmatpush.msra.mxu0 %v87
    %2607 = vmatmul.f32.gmra.mxu0 %v2510
    %v2608 = vpop.f32.mrf.mxu0
    %v2609 = vadd.f32 %v237, %v2608
    %2610 = vdwg.mxu0
    %2611 = vmatpush.msra.mxu0 %v211
    %2612 = vmatpush.msra.mxu0 %v207
    %2613 = vmatpush.msra.mxu0 %v203
    %2614 = vmatpush.msra.mxu0 %v199
    %2615 = vmatpush.msra.mxu0 %v195
    %2616 = vmatpush.msra.mxu0 %v191
    %2617 = vmatpush.msra.mxu0 %v187
    %2618 = vmatpush.msra.mxu0 %v183
    %2619 = vmatpush.msra.mxu0 %v179
    %2620 = vmatpush.msra.mxu0 %v175
    %2621 = vmatpush.msra.mxu0 %v171
    %2622 = vmatpush.msra.mxu0 %v167
    %2623 = vmatpush.msra.mxu0 %v163
    %2624 = vmatpush.msra.mxu0 %v159
    %2625 = vmatpush.msra.mxu0 %v155
    %2626 = vmatpush.msra.mxu0 %v151
    %2627 = vmatmul.f32.gmra.mxu0 %v2508
    %v2628 = vpop.f32.mrf.mxu0
    %v2629 = vadd.f32 %v2609, %v2628
    %2630 = vdwg.mxu0
    %2631 = vmatpush.msra.mxu0 %v148
    %2632 = vmatpush.msra.mxu0 %v144
    %2633 = vmatpush.msra.mxu0 %v140
    %2634 = vmatpush.msra.mxu0 %v136
    %2635 = vmatpush.msra.mxu0 %v132
    %2636 = vmatpush.msra.mxu0 %v128
    %2637 = vmatpush.msra.mxu0 %v124
    %2638 = vmatpush.msra.mxu0 %v120
    %2639 = vmatpush.msra.mxu0 %v116
    %2640 = vmatpush.msra.mxu0 %v112
    %2641 = vmatpush.msra.mxu0 %v108
    %2642 = vmatpush.msra.mxu0 %v104
    %2643 = vmatpush.msra.mxu0 %v100
    %2644 = vmatpush.msra.mxu0 %v96
    %2645 = vmatpush.msra.mxu0 %v92
    %2646 = vmatpush.msra.mxu0 %v88
    %2647 = vmatmul.f32.gmra.mxu0 %v2510
    %v2648 = vpop.f32.mrf.mxu0
    %v2649 = vadd.f32 %v238, %v2648
    %2650 = vdwg.mxu0
    %2651 = vmatpush.msra.mxu0 %v212
    %2652 = vmatpush.msra.mxu0 %v208
    %2653 = vmatpush.msra.mxu0 %v204
    %2654 = vmatpush.msra.mxu0 %v200
    %2655 = vmatpush.msra.mxu0 %v196
    %2656 = vmatpush.msra.mxu0 %v192
    %2657 = vmatpush.msra.mxu0 %v188
    %2658 = vmatpush.msra.mxu0 %v184
    %2659 = vmatpush.msra.mxu0 %v180
    %2660 = vmatpush.msra.mxu0 %v176
    %2661 = vmatpush.msra.mxu0 %v172
    %2662 = vmatpush.msra.mxu0 %v168
    %2663 = vmatpush.msra.mxu0 %v164
    %2664 = vmatpush.msra.mxu0 %v160
    %2665 = vmatpush.msra.mxu0 %v156
    %2666 = vmatpush.msra.mxu0 %v152
    %2667 = vmatmul.f32.gmra.mxu0 %v2508
    %v2668 = vpop.f32.mrf.mxu0
    %v2669 = vadd.f32 %v2649, %v2668
    %2670 = vdwg.mxu0
    %v2671 = vxor.u32 %v2549, 2147483648
    %v2672 = vmul.f32 %v2671, 1.442695
    %v2673 = vpow.pop %v2672
    %v2674 = vadd.f32 %v2673, 1.0
    %v2675 = vrcp.pop %v2674
    %v2676 = vmul.f32 %v2674, %v2675
    %v2677 = vsub.f32 1.0, %v2676
    %v2678 = vmul.f32 %v2675, %v2677
    %v2679 = vadd.f32 %v2675, %v2678
    %vm2680 = vweird.f32 %v2674
    %vm2681 = vweird.f32 %v2675
    %vm2682 = vmor %vm2680, %vm2681
    %v2683 = vsel %vm2682, %v2675, %v2679
    %v2684 = vand.u32 2147483647, %v2674
    %vm2685 = vcmp.eq.f32.partialorder %v2684, 8.507059e+37
    %v2686 = vand.u32 %v2674, 2147483648
    %v2687 = vor.u32 1.1754944e-38, %v2686
    %v2688 = vsel %vm2685, %v2687, %v2683
    %v2689 = vmul.f32 1.0, %v2688
    %v2690 = vxor.u32 %v2589, 2147483648
    %v2691 = vmul.f32 %v2690, 1.442695
    %v2692 = vpow.pop %v2691
    %v2693 = vadd.f32 %v2692, 1.0
    %v2694 = vrcp.pop %v2693
    %v2695 = vmul.f32 %v2693, %v2694
    %v2696 = vsub.f32 1.0, %v2695
    %v2697 = vmul.f32 %v2694, %v2696
    %v2698 = vadd.f32 %v2694, %v2697
    %vm2699 = vweird.f32 %v2693
    %vm2700 = vweird.f32 %v2694
    %vm2701 = vmor %vm2699, %vm2700
    %v2702 = vsel %vm2701, %v2694, %v2698
    %v2703 = vand.u32 2147483647, %v2693
    %vm2704 = vcmp.eq.f32.partialorder %v2703, 8.507059e+37
    %v2705 = vand.u32 %v2693, 2147483648
    %v2706 = vor.u32 1.1754944e-38, %v2705
    %v2707 = vsel %vm2704, %v2706, %v2702
    %v2708 = vmul.f32 1.0, %v2707
    %v2709 = vtanh.pop %v2629
    %v2710 = vxor.u32 %v2669, 2147483648
    %v2711 = vmul.f32 %v2710, 1.442695
    %v2712 = vpow.pop %v2711
    %v2713 = vadd.f32 %v2712, 1.0
    %v2714 = vrcp.pop %v2713
    %v2715 = vmul.f32 %v2713, %v2714
    %v2716 = vsub.f32 1.0, %v2715
    %v2717 = vmul.f32 %v2714, %v2716
    %v2718 = vadd.f32 %v2714, %v2717
    %vm2719 = vweird.f32 %v2713
    %vm2720 = vweird.f32 %v2714
    %vm2721 = vmor %vm2719, %vm2720
    %v2722 = vsel %vm2721, %v2714, %v2718
    %v2723 = vand.u32 2147483647, %v2713
    %vm2724 = vcmp.eq.f32.partialorder %v2723, 8.507059e+37
    %v2725 = vand.u32 %v2713, 2147483648
    %v2726 = vor.u32 1.1754944e-38, %v2725
    %v2727 = vsel %vm2724, %v2726, %v2722
    %v2728 = vmul.f32 1.0, %v2727
    %v2729 = vmul.f32 %v2708, %v2509
    %v2730 = vmul.f32 %v2689, %v2709
    %v2731 = vadd.f32 %v2729, %v2730
    %v2732 = vtanh.pop %v2731
    %v2733 = vmul.f32 %v2728, %v2732
    %2734 = vmatpush.msra.mxu0 %v229
    %2735 = vmatpush.msra.mxu0 %v228
    %2736 = vmatpush.msra.mxu0 %v227
    %2737 = vmatpush.msra.mxu0 %v226
    %2738 = vmatpush.msra.mxu0 %v225
    %2739 = vmatpush.msra.mxu0 %v224
    %2740 = vmatpush.msra.mxu0 %v223
    %2741 = vmatpush.msra.mxu0 %v222
    %2742 = vmatpush.msra.mxu0 %v221
    %2743 = vmatpush.msra.mxu0 %v220
    %2744 = vmatpush.msra.mxu0 %v219
    %2745 = vmatpush.msra.mxu0 %v218
    %2746 = vmatpush.msra.mxu0 %v217
    %2747 = vmatpush.msra.mxu0 %v216
    %2748 = vmatpush.msra.mxu0 %v215
    %2749 = vmatpush.msra.mxu0 %v214
    %2750 = vmatmul.f32.gmra.mxu0 %v2733
    %v2751 = vpop.f32.mrf.mxu0
    %v2752 = vadd.f32 %v467, %v2751
    %2753 = vdwg.mxu0
    %2754 = vst [vmem:[#allocation2] sm:$0xff] %v2733
    %2755 = vst [vmem:[#allocation3] sm:$0xff] %v2731
    %2756 = vst [vmem:[#allocation4] sm:$0xff] %v2752
    %s2757 = scalar_lea.vmem [#allocation13], 72
    %2758 = vst [vmem:[%s2757] sm:$0xff] %v2752
    // Predicated region
    $region38: #{tpu_custom_call.1} parent=1 // pred_check
      _
    $region39: #{tpu_custom_call.1} parent=1 // pred_check_branch
      %2760 = sbr.rel (0) target = $region41
    $region40: #{tpu_custom_call.1} parent=1 // pred_region
      %2762 = vsyncadd [#allocation7], 0
      %s2763 = sshll.u32 [#allocation13], 4
      %s2764 = int_to_ptr.vmem [resolvable:$true] %s2763
      %s2765 = sshll.u32 %s5, 4
      %s2766 = int_to_ptr.hbm [resolvable:$true] %s2765
      %2771 = dma.vmem_to_hbm [thread:$0]  %s2764, 1280, %s2766, [#allocation7], 128, 128, 8
    $region41: #{tpu_custom_call.1} parent=1 // pred_fallthru
      _
    // Predicated region
    $region42: #{tpu_custom_call.1} parent=1 // pred_check
      _
    $region43: #{tpu_custom_call.1} parent=1 // pred_check_branch
      %2773 = sbr.rel (0) target = $region45
    $region44: #{tpu_custom_call.1} parent=1 // pred_region
      %2775 = dma.done [#allocation7], 1280
    $region45: #{tpu_custom_call.1} parent=1 // pred_fallthru
      _
    %2776 = vsyncpa [#allocation6], 1
    %2777 = vsyncpa [#allocation9], 1
    %2778 = vsyncpa [#allocation12], 1
    %2779 = vsyncpa [#allocation7], 1

</llo_original>
